<compile_context>
chip_gen: v5e
topology: v5e:2x2
jax: 0.10.0
libtpu: 0.0.40
codegen_flags: <defaults>
</compile_context>

<pallas_src>
import functools

import jax
import jax.numpy as jnp
from jax.experimental import pallas as pl
from jax.experimental.pallas import tpu as pltpu


def _round_up(x, m):
    return ((x + m - 1) // m) * m


def _pick_t_block(slen, cap=32):
    """Largest divisor of slen not exceeding `cap`, so the in-kernel time loop
    always has a static trip count and stays fully unrolled."""
    best = 1
    for d in range(1, min(slen, cap) + 1):
        if slen % d == 0:
            best = d
    return best


# ----------------------------------------------------------------------------
# Row-tiled linear kernel: Y = X @ W + b   (hoisted LSTM input projection:
# gate inputs for all (slen * b_pad) rows in one GEMM, bias folded in).
# ----------------------------------------------------------------------------
def _linear_kernel(x_ref, w_ref, b_ref, o_ref):
    x = x_ref[...].astype(jnp.bfloat16)
    y = jnp.dot(x, w_ref[...], preferred_element_type=jnp.float32) + b_ref[...]
    o_ref[...] = y.astype(o_ref.dtype)


def linear_forward(x, w_bf16, b_f32, *, tn=None):
    n, k = x.shape
    m = w_bf16.shape[1]
    if tn is None:
        tn = n if n <= 512 else 512          # n is always a multiple of 8
    return pl.pallas_call(
        _linear_kernel,
        out_shape=jax.ShapeDtypeStruct((n, m), jnp.float32),
        grid_spec=pltpu.PrefetchScalarGridSpec(
            num_scalar_prefetch=0,
            grid=(pl.cdiv(n, tn),),
            in_specs=[
                pl.BlockSpec((tn, k), lambda i: (i, 0)),
                pl.BlockSpec((k, m), lambda i: (0, 0)),
                pl.BlockSpec((1, m), lambda i: (0, 0)),
            ],
            out_specs=pl.BlockSpec((tn, m), lambda i: (i, 0)),
        ),
        compiler_params=pltpu.CompilerParams(
            dimension_semantics=("parallel",)),
    )(x, w_bf16, b_f32)


# ----------------------------------------------------------------------------
# Fused LSTM recurrence + MLP kernel.
#   Grid iterates over time CHUNKS of t_block steps (t_block divides slen).
#   Per step: gates = gx[t] + h @ W_hh (MXU), elementwise gate math in f32.
#   h/c carried in VMEM scratch across chunks; per-step h stored into a bf16
#   VMEM scratch slab, then the MLP (Linear->ReLU->Linear->LogSoftmax) runs as
#   a per-chunk epilogue on that resident slab and writes log-probs directly.
#   Gate layout is [i, f, o, g] (each gate padded to r_pad lanes).
# ----------------------------------------------------------------------------
def _lstm_mlp_kernel(gx_ref, whh_ref, w1_ref, b1_ref, w2_ref, b2_ref,
                     logp_ref, hn_ref, cn_ref,
                     h_sc, c_sc, ht_sc, *, r_pad, t_block):
    chunk = pl.program_id(0)
    b_pad = h_sc.shape[0]

    @pl.when(chunk == 0)
    def _():
        h_sc[...] = jnp.zeros_like(h_sc)
        c_sc[...] = jnp.zeros_like(c_sc)

    def step(t, carry):
        h, c = carry
        # whh stays a VMEM-fed operand (not a value held across the unrolled loop).
        gates = gx_ref[t] + jnp.dot(h.astype(jnp.bfloat16), whh_ref[...],
                                    preferred_element_type=jnp.float32)
        sig = jax.nn.sigmoid(gates[:, : 3 * r_pad])       # [i | f | o] in one slab
        g_g = jnp.tanh(gates[:, 3 * r_pad:])              # g
        i_g = sig[:, 0 * r_pad:1 * r_pad]
        f_g = sig[:, 1 * r_pad:2 * r_pad]
        o_g = sig[:, 2 * r_pad:3 * r_pad]
        c_new = f_g * c + i_g * g_g
        h_new = o_g * jnp.tanh(c_new)
        # Dense (b_pad, r_pad)-aligned store into the chunk's hidden slab (bf16).
        ht_sc[pl.ds(t * b_pad, b_pad), :] = h_new.astype(jnp.bfloat16)
        return h_new, c_new

    # t_block divides slen -> static trip count, fully unrolled for LLO visibility.
    h_f, c_f = jax.lax.fori_loop(0, t_block, step, (h_sc[...], c_sc[...]),
                                 unroll=True)
    h_sc[...] = h_f
    c_sc[...] = c_f
    hn_ref[...] = h_f
    cn_ref[...] = c_f

    # ---- Fused MLP epilogue on the resident (t_block*b_pad, r_pad) hidden slab.
    # (Dropout layers are identity in eval mode.)
    hb = ht_sc[...]                                                    # bf16
    z1 = jnp.dot(hb, w1_ref[...], preferred_element_type=jnp.float32) + b1_ref[...]
    z1 = jnp.maximum(z1, 0.0)                                          # ReLU
    z2 = jnp.dot(z1.astype(jnp.bfloat16), w2_ref[...],
                 preferred_element_type=jnp.float32) + b2_ref[...]
    z_max = jnp.max(z2, axis=1, keepdims=True)
    z_sh = z2 - z_max
    lse = jnp.log(jnp.sum(jnp.exp(z_sh), axis=1, keepdims=True))
    logp_ref[...] = (z_sh - lse).astype(logp_ref.dtype)


def lstm_mlp_forward(gx_tm, params, *, r_pad, t_block):
    """gx_tm: (slen, b_pad, 4*r_pad) precomputed gate inputs (time-major).
    Returns (logp_flat (slen*b_pad, v_pad), h_n, c_n)."""
    slen, b_pad, g4 = gx_tm.shape
    m_pad = params["w1"].shape[1]
    v_pad = params["w2"].shape[1]
    num_chunks = slen // t_block        # t_block divides slen by construction

    kernel = functools.partial(_lstm_mlp_kernel, r_pad=r_pad, t_block=t_block)
    return pl.pallas_call(
        kernel,
        out_shape=(
            jax.ShapeDtypeStruct((slen * b_pad, v_pad), jnp.float32),  # log-probs (time-major rows)
            jax.ShapeDtypeStruct((b_pad, r_pad), jnp.float32),         # h_n
            jax.ShapeDtypeStruct((b_pad, r_pad), jnp.float32),         # c_n
        ),
        grid_spec=pltpu.PrefetchScalarGridSpec(
            num_scalar_prefetch=0,
            grid=(num_chunks,),
            in_specs=[
                pl.BlockSpec((t_block, b_pad, g4), lambda c: (c, 0, 0)),
                pl.BlockSpec((r_pad, g4), lambda c: (0, 0)),
                pl.BlockSpec((r_pad, m_pad), lambda c: (0, 0)),
                pl.BlockSpec((1, m_pad), lambda c: (0, 0)),
                pl.BlockSpec((m_pad, v_pad), lambda c: (0, 0)),
                pl.BlockSpec((1, v_pad), lambda c: (0, 0)),
            ],
            out_specs=[
                pl.BlockSpec((t_block * b_pad, v_pad), lambda c: (c, 0)),
                pl.BlockSpec((b_pad, r_pad), lambda c: (0, 0)),
                pl.BlockSpec((b_pad, r_pad), lambda c: (0, 0)),
            ],
            scratch_shapes=[
                pltpu.VMEM((b_pad, r_pad), jnp.float32),              # h carry
                pltpu.VMEM((b_pad, r_pad), jnp.float32),              # c carry
                pltpu.VMEM((t_block * b_pad, r_pad), jnp.bfloat16),   # per-chunk ht slab
            ],
        ),
        compiler_params=pltpu.CompilerParams(
            dimension_semantics=("arbitrary",)),
    )(gx_tm, params["w_hh"], params["w1"], params["b1"],
      params["w2"], params["b2"])


# ----------------------------------------------------------------------------
# Full forward pass (matching CharLSTM.forward, eval-mode dropout).
# ----------------------------------------------------------------------------
def char_lstm_forward(sentence, params, *, rnn_size):
    """sentence: (bsz, slen, vocab). Returns (logprob (bsz*slen, vocab), (h_n, c_n))."""
    bsz, slen, vocab = sentence.shape
    v_in_pad = params["w_ih"].shape[0]
    r_pad = params["w_hh"].shape[0]
    v_out_pad = params["w2"].shape[1]
    b_pad = _round_up(bsz, 8)

    # Build the padded input TIME-MAJOR up front: (slen, b_pad, v_pad). Only the
    # small raw input gets reordered; every later reshape is then free.
    x_tm = jnp.zeros((slen, b_pad, v_in_pad), jnp.float32)
    x_tm = x_tm.at[:, :bsz, :vocab].set(
        jnp.swapaxes(sentence.astype(jnp.float32), 0, 1))

    # 1) Hoisted input projection + bias for ALL timesteps in one row-tiled GEMM.
    gx = linear_forward(x_tm.reshape(slen * b_pad, v_in_pad),
                        params["w_ih"], params["b_lstm"])     # (slen*b_pad, 4*R_pad) f32
    gx_tm = gx.reshape(slen, b_pad, 4 * r_pad)                # free reshape (already time-major)

    # 2+3) Fused sequential recurrence + MLP + LogSoftmax epilogue per time chunk.
    t_block = _pick_t_block(slen)
    logp_flat, h_n, c_n = lstm_mlp_forward(gx_tm, params, r_pad=r_pad, t_block=t_block)

    # Back to PyTorch's batch-major row order (small transpose on the final logits only).
    logp_tm = logp_flat.reshape(slen, b_pad, v_out_pad)
    logprob = jnp.swapaxes(logp_tm[:, :bsz, :vocab], 0, 1).reshape(bsz * slen, vocab)
    state = (h_n[:bsz, :rnn_size][None, :, :], c_n[:bsz, :rnn_size][None, :, :])
    return logprob, state


# ----------------------------------------------------------------------------
# Parameter init: PyTorch-layout weights, then padded / reordered / transposed /
# bf16-cast into the MXU-friendly layouts the kernels expect.
# Gate order is repacked PyTorch [i,f,g,o] -> kernel [i,f,o,g] so one sigmoid
# covers a contiguous 3*R_pad slab and tanh covers the last slab.
# ----------------------------------------------------------------------------
def init_params(key, vocab_size, rnn_size, mlp_size):
    R, V, M = rnn_size, vocab_size, mlp_size
    R_pad, V_pad, M_pad = _round_up(R, 128), _round_up(V, 128), _round_up(M, 128)

    ks = jax.random.split(key, 8)
    k_lstm = 1.0 / jnp.sqrt(R)
    k_mlp1 = 1.0 / jnp.sqrt(R)
    k_mlp2 = 1.0 / jnp.sqrt(M)

    # PyTorch layouts (gate order [i, f, g, o]).
    w_ih = jax.random.uniform(ks[0], (4 * R, V), jnp.float32, -k_lstm, k_lstm)
    w_hh = jax.random.uniform(ks[1], (4 * R, R), jnp.float32, -k_lstm, k_lstm)
    b_ih = jax.random.uniform(ks[2], (4 * R,), jnp.float32, -k_lstm, k_lstm)
    b_hh = jax.random.uniform(ks[3], (4 * R,), jnp.float32, -k_lstm, k_lstm)
    w1 = jax.random.uniform(ks[4], (M, R), jnp.float32, -k_mlp1, k_mlp1)
    b1 = jax.random.uniform(ks[5], (M,), jnp.float32, -k_mlp1, k_mlp1)
    w2 = jax.random.uniform(ks[6], (V, M), jnp.float32, -k_mlp2, k_mlp2)
    b2 = jax.random.uniform(ks[7], (V,), jnp.float32, -k_mlp2, k_mlp2)

    perm = jnp.array([0, 1, 3, 2])   # [i, f, g, o] -> [i, f, o, g]

    def pad_gate_w(w, in_dim, in_pad):
        # (4R, in) -> (in_pad, 4*R_pad), gates reordered, each gate block padded to R_pad lanes.
        w4 = w.reshape(4, R, in_dim)[perm]
        wp = jnp.zeros((4, R_pad, in_pad), jnp.float32).at[:, :R, :in_dim].set(w4)
        return wp.transpose(2, 0, 1).reshape(in_pad, 4 * R_pad)

    def pad_gate_b(b):
        b4 = b.reshape(4, R)[perm]
        bp = jnp.zeros((4, R_pad), jnp.float32).at[:, :R].set(b4)
        return bp.reshape(1, 4 * R_pad)

    w_ih_p = pad_gate_w(w_ih, V, V_pad).astype(jnp.bfloat16)
    w_hh_p = pad_gate_w(w_hh, R, R_pad).astype(jnp.bfloat16)
    b_lstm = pad_gate_b(b_ih + b_hh)                      # f32, folded into the input GEMM

    w1_p = jnp.zeros((R_pad, M_pad), jnp.float32).at[:R, :M].set(w1.T).astype(jnp.bfloat16)
    b1_p = jnp.zeros((1, M_pad), jnp.float32).at[0, :M].set(b1)
    w2_p = jnp.zeros((M_pad, V_pad), jnp.float32).at[:M, :V].set(w2.T).astype(jnp.bfloat16)
    # Padded vocab logits get -1e30 bias so they vanish in the softmax normalizer.
    b2_p = jnp.full((1, V_pad), -1e30, jnp.float32).at[0, :V].set(b2)

    return {
        "w_ih": w_ih_p,     # (V_pad, 4*R_pad) bf16
        "w_hh": w_hh_p,     # (R_pad, 4*R_pad) bf16
        "b_lstm": b_lstm,   # (1, 4*R_pad)     f32
        "w1": w1_p,         # (R_pad, M_pad)   bf16
        "b1": b1_p,         # (1, M_pad)       f32
        "w2": w2_p,         # (M_pad, V_pad)   bf16
        "b2": b2_p,         # (1, V_pad)       f32
    }


if __name__ == "__main__":
    vocab_size, rnn_size, mlp_size = 32, 32, 64
    bsz, slen = 2, 8

    key = jax.random.PRNGKey(0)
    k_x, k_p = jax.random.split(key)
    sentence = jax.random.normal(k_x, (bsz, slen, vocab_size), jnp.float32)
    params = init_params(k_p, vocab_size, rnn_size, mlp_size)

    fwd = jax.jit(lambda s, p: char_lstm_forward(s, p, rnn_size=rnn_size))
    logprob, (h_n, c_n) = fwd(sentence, params)
    jax.block_until_ready((logprob, h_n, c_n))

    assert logprob.shape == (bsz * slen, vocab_size)
    assert h_n.shape == (1, bsz, rnn_size) and c_n.shape == (1, bsz, rnn_size)
    # log-softmax sanity: rows exponentiate to a probability distribution
    assert bool(jnp.allclose(jnp.exp(logprob).sum(axis=1), 1.0, atol=1e-3))
    print("KERNEL_OK")
</pallas_src>

<mosaic_0001>
module attributes {stable_mosaic.version = 11 : i64} {
  func.func @_linear_kernel(%arg0: i32, %arg1: memref<64x128xf32, #tpu.memory_space<vmem>>, %arg2: memref<128x512xbf16, #tpu.memory_space<vmem>>, %arg3: memref<1x512xf32, #tpu.memory_space<vmem>>, %arg4: memref<64x512xf32, #tpu.memory_space<vmem>>) attributes {dimension_semantics = [#tpu.dimension_semantics<parallel>], iteration_bounds = array<i64: 1>, scalar_prefetch = 0 : i64, scratch_operands = 0 : i64, tpu.core_type = #tpu.core_type<tc>, window_params = [{transform_indices = @transform_0, window_bounds = array<i64: 64, 128>}, {pipeline_mode = #tpu.pipeline_mode<synchronous>, transform_indices = @transform_1, window_bounds = array<i64: 128, 512>}, {pipeline_mode = #tpu.pipeline_mode<synchronous>, transform_indices = @transform_2, window_bounds = array<i64: 1, 512>}, {transform_indices = @transform_3, window_bounds = array<i64: 64, 512>}]} {
    %c0 = arith.constant 0 : index
    %c0_0 = arith.constant 0 : index
    %0 = vector.load %arg1[%c0, %c0_0] : memref<64x128xf32, #tpu.memory_space<vmem>>, vector<64x128xf32>
    %1 = arith.truncf %0 : vector<64x128xf32> to vector<64x128xbf16>
    %c0_1 = arith.constant 0 : index
    %c0_2 = arith.constant 0 : index
    %2 = vector.load %arg2[%c0_1, %c0_2] : memref<128x512xbf16, #tpu.memory_space<vmem>>, vector<128x512xbf16>
    %cst = arith.constant dense<0.000000e+00> : vector<64x512xf32>
    %3 = tpu.matmul %1, %2, %cst {dimension_numbers = #tpu.dot_dimension_numbers<[1], [0], [0], [1], [0, 0, 1, 1], [], []>} : vector<64x128xbf16>, vector<128x512xbf16>, vector<64x512xf32> -> vector<64x512xf32>
    %c0_3 = arith.constant 0 : index
    %c0_4 = arith.constant 0 : index
    %4 = vector.load %arg3[%c0_3, %c0_4] : memref<1x512xf32, #tpu.memory_space<vmem>>, vector<1x512xf32>
    %5 = vector.broadcast %4 : vector<1x512xf32> to vector<64x512xf32>
    %6 = arith.addf %3, %5 : vector<64x512xf32>
    %c0_5 = arith.constant 0 : index
    %c0_6 = arith.constant 0 : index
    %7 = vector.load %arg4[%c0_5, %c0_6] : memref<64x512xf32, #tpu.memory_space<vmem>>, vector<64x512xf32>
    tpu.vector_store %arg4[%c0_5, %c0_6], %6 {strides = array<i32>} : memref<64x512xf32, #tpu.memory_space<vmem>>, vector<64x512xf32>,
    return
  }
  func.func @transform_0(%arg0: i32) -> (i32, i32) {
    %c0_i32 = arith.constant 0 : i32
    %c0_i32_0 = arith.constant 0 : i32
    return %arg0, %c0_i32 : i32, i32
  }
  func.func @transform_1(%arg0: i32) -> (i32, i32) {
    %c0_i32 = arith.constant 0 : i32
    %c0_i32_0 = arith.constant 0 : i32
    %c0_i32_1 = arith.constant 0 : i32
    return %c0_i32, %c0_i32_0 : i32, i32
  }
  func.func @transform_2(%arg0: i32) -> (i32, i32) {
    %c0_i32 = arith.constant 0 : i32
    %c0_i32_0 = arith.constant 0 : i32
    %c0_i32_1 = arith.constant 0 : i32
    return %c0_i32, %c0_i32_0 : i32, i32
  }
  func.func @transform_3(%arg0: i32) -> (i32, i32) {
    %c0_i32 = arith.constant 0 : i32
    %c0_i32_0 = arith.constant 0 : i32
    return %arg0, %c0_i32 : i32, i32
  }
}

module attributes {stable_mosaic.version = 11 : i64} {
  func.func @_lstm_mlp_kernel(%arg0: i32, %arg1: memref<8x8x512xf32, #tpu.memory_space<vmem>>, %arg2: memref<128x512xbf16, #tpu.memory_space<vmem>>, %arg3: memref<128x128xbf16, #tpu.memory_space<vmem>>, %arg4: memref<1x128xf32, #tpu.memory_space<vmem>>, %arg5: memref<128x128xbf16, #tpu.memory_space<vmem>>, %arg6: memref<1x128xf32, #tpu.memory_space<vmem>>, %arg7: memref<64x128xf32, #tpu.memory_space<vmem>>, %arg8: memref<8x128xf32, #tpu.memory_space<vmem>>, %arg9: memref<8x128xf32, #tpu.memory_space<vmem>>, %arg10: memref<8x128xf32, #tpu.memory_space<vmem>>, %arg11: memref<8x128xf32, #tpu.memory_space<vmem>>, %arg12: memref<64x128xbf16, #tpu.memory_space<vmem>>) attributes {dimension_semantics = [#tpu.dimension_semantics<arbitrary>], iteration_bounds = array<i64: 1>, scalar_prefetch = 0 : i64, scratch_operands = 3 : i64, tpu.core_type = #tpu.core_type<tc>, window_params = [{transform_indices = @transform_0, window_bounds = array<i64: 8, 8, 512>}, {pipeline_mode = #tpu.pipeline_mode<synchronous>, transform_indices = @transform_1, window_bounds = array<i64: 128, 512>}, {pipeline_mode = #tpu.pipeline_mode<synchronous>, transform_indices = @transform_2, window_bounds = array<i64: 128, 128>}, {pipeline_mode = #tpu.pipeline_mode<synchronous>, transform_indices = @transform_3, window_bounds = array<i64: 1, 128>}, {pipeline_mode = #tpu.pipeline_mode<synchronous>, transform_indices = @transform_4, window_bounds = array<i64: 128, 128>}, {pipeline_mode = #tpu.pipeline_mode<synchronous>, transform_indices = @transform_5, window_bounds = array<i64: 1, 128>}, {transform_indices = @transform_6, window_bounds = array<i64: 64, 128>}, {pipeline_mode = #tpu.pipeline_mode<synchronous>, transform_indices = @transform_7, window_bounds = array<i64: 8, 128>}, {pipeline_mode = #tpu.pipeline_mode<synchronous>, transform_indices = @transform_8, window_bounds = array<i64: 8, 128>}]} {
    %c0_i32 = arith.constant 0 : i32
    %0 = arith.cmpi eq, %arg0, %c0_i32 : i32
    %1 = arith.extui %0 : i1 to i32
    %c0_i32_0 = arith.constant 0 : i32
    %2 = arith.cmpi ne, %1, %c0_i32_0 : i32
    scf.if %2 {
      %cst_93 = arith.constant 0.000000e+00 : f32
      %250 = vector.broadcast %cst_93 : f32 to vector<8x128xf32>
      %c0_94 = arith.constant 0 : index
      %c0_95 = arith.constant 0 : index
      %251 = vector.load %arg10[%c0_94, %c0_95] : memref<8x128xf32, #tpu.memory_space<vmem>>, vector<8x128xf32>
      tpu.vector_store %arg10[%c0_94, %c0_95], %250 {strides = array<i32>} : memref<8x128xf32, #tpu.memory_space<vmem>>, vector<8x128xf32>,
      %cst_96 = arith.constant 0.000000e+00 : f32
      %252 = vector.broadcast %cst_96 : f32 to vector<8x128xf32>
      %c0_97 = arith.constant 0 : index
      %c0_98 = arith.constant 0 : index
      %253 = vector.load %arg11[%c0_97, %c0_98] : memref<8x128xf32, #tpu.memory_space<vmem>>, vector<8x128xf32>
      tpu.vector_store %arg11[%c0_97, %c0_98], %252 {strides = array<i32>} : memref<8x128xf32, #tpu.memory_space<vmem>>, vector<8x128xf32>,
    } else {
    }
    %c0 = arith.constant 0 : index
    %c0_1 = arith.constant 0 : index
    %3 = vector.load %arg10[%c0, %c0_1] : memref<8x128xf32, #tpu.memory_space<vmem>>, vector<8x128xf32>
    %c0_2 = arith.constant 0 : index
    %c0_3 = arith.constant 0 : index
    %4 = vector.load %arg11[%c0_2, %c0_3] : memref<8x128xf32, #tpu.memory_space<vmem>>, vector<8x128xf32>
    %c0_i32_4 = arith.constant 0 : i32
    %5 = arith.index_cast %c0_i32_4 : i32 to index
    %c0_5 = arith.constant 0 : index
    %c0_6 = arith.constant 0 : index
    %6 = vector.load %arg1[%5, %c0_5, %c0_6] : memref<8x8x512xf32, #tpu.memory_space<vmem>>, vector<1x8x512xf32>
    %7 = vector.shape_cast %6 : vector<1x8x512xf32> to vector<8x512xf32>
    %8 = arith.truncf %3 : vector<8x128xf32> to vector<8x128xbf16>
    %c0_7 = arith.constant 0 : index
    %c0_8 = arith.constant 0 : index
    %9 = vector.load %arg2[%c0_7, %c0_8] : memref<128x512xbf16, #tpu.memory_space<vmem>>, vector<128x512xbf16>
    %cst = arith.constant dense<0.000000e+00> : vector<8x512xf32>
    %10 = tpu.matmul %8, %9, %cst {dimension_numbers = #tpu.dot_dimension_numbers<[1], [0], [0], [1], [0, 0, 1, 1], [], []>} : vector<8x128xbf16>, vector<128x512xbf16>, vector<8x512xf32> -> vector<8x512xf32>
    %11 = arith.addf %7, %10 : vector<8x512xf32>
    %12 = vector.extract_strided_slice %11 {offsets = [0, 0], sizes = [8, 384], strides = [1, 1]} : vector<8x512xf32> to vector<8x384xf32>
    %13 = arith.negf %12 : vector<8x384xf32>
    %14 = math.exp %13 : vector<8x384xf32>
    %cst_9 = arith.constant 1.000000e+00 : f32
    %15 = vector.broadcast %cst_9 : f32 to vector<8x384xf32>
    %16 = arith.addf %15, %14 : vector<8x384xf32>
    %17 = arith.divf %15, %16 : vector<8x384xf32>
    %18 = vector.extract_strided_slice %11 {offsets = [0, 384], sizes = [8, 128], strides = [1, 1]} : vector<8x512xf32> to vector<8x128xf32>
    %19 = math.tanh %18 : vector<8x128xf32>
    %20 = vector.extract_strided_slice %17 {offsets = [0, 0], sizes = [8, 128], strides = [1, 1]} : vector<8x384xf32> to vector<8x128xf32>
    %21 = vector.extract_strided_slice %17 {offsets = [0, 128], sizes = [8, 128], strides = [1, 1]} : vector<8x384xf32> to vector<8x128xf32>
    %22 = vector.extract_strided_slice %17 {offsets = [0, 256], sizes = [8, 128], strides = [1, 1]} : vector<8x384xf32> to vector<8x128xf32>
    %23 = arith.mulf %21, %4 : vector<8x128xf32>
    %24 = arith.mulf %20, %19 : vector<8x128xf32>
    %25 = arith.addf %23, %24 : vector<8x128xf32>
    %26 = math.tanh %25 : vector<8x128xf32>
    %27 = arith.mulf %22, %26 : vector<8x128xf32>
    %28 = arith.truncf %27 : vector<8x128xf32> to vector<8x128xbf16>
    %c8_i32 = arith.constant 8 : i32
    %29 = arith.muli %c0_i32_4, %c8_i32 : i32
    %30 = arith.index_cast %29 : i32 to index
    %c0_10 = arith.constant 0 : index
    %31 = vector.load %arg12[%30, %c0_10] : memref<64x128xbf16, #tpu.memory_space<vmem>>, vector<8x128xbf16>
    tpu.vector_store %arg12[%30, %c0_10], %28 {strides = array<i32>} : memref<64x128xbf16, #tpu.memory_space<vmem>>, vector<8x128xbf16>,
    %c1_i32 = arith.constant 1 : i32
    %32 = arith.index_cast %c1_i32 : i32 to index
    %c0_11 = arith.constant 0 : index
    %c0_12 = arith.constant 0 : index
    %33 = vector.load %arg1[%32, %c0_11, %c0_12] : memref<8x8x512xf32, #tpu.memory_space<vmem>>, vector<1x8x512xf32>
    %34 = vector.shape_cast %33 : vector<1x8x512xf32> to vector<8x512xf32>
    %35 = arith.truncf %27 : vector<8x128xf32> to vector<8x128xbf16>
    %c0_13 = arith.constant 0 : index
    %c0_14 = arith.constant 0 : index
    %36 = vector.load %arg2[%c0_13, %c0_14] : memref<128x512xbf16, #tpu.memory_space<vmem>>, vector<128x512xbf16>
    %cst_15 = arith.constant dense<0.000000e+00> : vector<8x512xf32>
    %37 = tpu.matmul %35, %36, %cst_15 {dimension_numbers = #tpu.dot_dimension_numbers<[1], [0], [0], [1], [0, 0, 1, 1], [], []>} : vector<8x128xbf16>, vector<128x512xbf16>, vector<8x512xf32> -> vector<8x512xf32>
    %38 = arith.addf %34, %37 : vector<8x512xf32>
    %39 = vector.extract_strided_slice %38 {offsets = [0, 0], sizes = [8, 384], strides = [1, 1]} : vector<8x512xf32> to vector<8x384xf32>
    %40 = arith.negf %39 : vector<8x384xf32>
    %41 = math.exp %40 : vector<8x384xf32>
    %cst_16 = arith.constant 1.000000e+00 : f32
    %42 = vector.broadcast %cst_16 : f32 to vector<8x384xf32>
    %43 = arith.addf %42, %41 : vector<8x384xf32>
    %44 = arith.divf %42, %43 : vector<8x384xf32>
    %45 = vector.extract_strided_slice %38 {offsets = [0, 384], sizes = [8, 128], strides = [1, 1]} : vector<8x512xf32> to vector<8x128xf32>
    %46 = math.tanh %45 : vector<8x128xf32>
    %47 = vector.extract_strided_slice %44 {offsets = [0, 0], sizes = [8, 128], strides = [1, 1]} : vector<8x384xf32> to vector<8x128xf32>
    %48 = vector.extract_strided_slice %44 {offsets = [0, 128], sizes = [8, 128], strides = [1, 1]} : vector<8x384xf32> to vector<8x128xf32>
    %49 = vector.extract_strided_slice %44 {offsets = [0, 256], sizes = [8, 128], strides = [1, 1]} : vector<8x384xf32> to vector<8x128xf32>
    %50 = arith.mulf %48, %25 : vector<8x128xf32>
    %51 = arith.mulf %47, %46 : vector<8x128xf32>
    %52 = arith.addf %50, %51 : vector<8x128xf32>
    %53 = math.tanh %52 : vector<8x128xf32>
    %54 = arith.mulf %49, %53 : vector<8x128xf32>
    %55 = arith.truncf %54 : vector<8x128xf32> to vector<8x128xbf16>
    %c8_i32_17 = arith.constant 8 : i32
    %56 = arith.muli %c1_i32, %c8_i32_17 : i32
    %57 = arith.index_cast %56 : i32 to index
    %c0_18 = arith.constant 0 : index
    %58 = vector.load %arg12[%57, %c0_18] : memref<64x128xbf16, #tpu.memory_space<vmem>>, vector<8x128xbf16>
    tpu.vector_store %arg12[%57, %c0_18], %55 {strides = array<i32>} : memref<64x128xbf16, #tpu.memory_space<vmem>>, vector<8x128xbf16>,
    %c2_i32 = arith.constant 2 : i32
    %59 = arith.index_cast %c2_i32 : i32 to index
    %c0_19 = arith.constant 0 : index
    %c0_20 = arith.constant 0 : index
    %60 = vector.load %arg1[%59, %c0_19, %c0_20] : memref<8x8x512xf32, #tpu.memory_space<vmem>>, vector<1x8x512xf32>
    %61 = vector.shape_cast %60 : vector<1x8x512xf32> to vector<8x512xf32>
    %62 = arith.truncf %54 : vector<8x128xf32> to vector<8x128xbf16>
    %c0_21 = arith.constant 0 : index
    %c0_22 = arith.constant 0 : index
    %63 = vector.load %arg2[%c0_21, %c0_22] : memref<128x512xbf16, #tpu.memory_space<vmem>>, vector<128x512xbf16>
    %cst_23 = arith.constant dense<0.000000e+00> : vector<8x512xf32>
    %64 = tpu.matmul %62, %63, %cst_23 {dimension_numbers = #tpu.dot_dimension_numbers<[1], [0], [0], [1], [0, 0, 1, 1], [], []>} : vector<8x128xbf16>, vector<128x512xbf16>, vector<8x512xf32> -> vector<8x512xf32>
    %65 = arith.addf %61, %64 : vector<8x512xf32>
    %66 = vector.extract_strided_slice %65 {offsets = [0, 0], sizes = [8, 384], strides = [1, 1]} : vector<8x512xf32> to vector<8x384xf32>
    %67 = arith.negf %66 : vector<8x384xf32>
    %68 = math.exp %67 : vector<8x384xf32>
    %cst_24 = arith.constant 1.000000e+00 : f32
    %69 = vector.broadcast %cst_24 : f32 to vector<8x384xf32>
    %70 = arith.addf %69, %68 : vector<8x384xf32>
    %71 = arith.divf %69, %70 : vector<8x384xf32>
    %72 = vector.extract_strided_slice %65 {offsets = [0, 384], sizes = [8, 128], strides = [1, 1]} : vector<8x512xf32> to vector<8x128xf32>
    %73 = math.tanh %72 : vector<8x128xf32>
    %74 = vector.extract_strided_slice %71 {offsets = [0, 0], sizes = [8, 128], strides = [1, 1]} : vector<8x384xf32> to vector<8x128xf32>
    %75 = vector.extract_strided_slice %71 {offsets = [0, 128], sizes = [8, 128], strides = [1, 1]} : vector<8x384xf32> to vector<8x128xf32>
    %76 = vector.extract_strided_slice %71 {offsets = [0, 256], sizes = [8, 128], strides = [1, 1]} : vector<8x384xf32> to vector<8x128xf32>
    %77 = arith.mulf %75, %52 : vector<8x128xf32>
    %78 = arith.mulf %74, %73 : vector<8x128xf32>
    %79 = arith.addf %77, %78 : vector<8x128xf32>
    %80 = math.tanh %79 : vector<8x128xf32>
    %81 = arith.mulf %76, %80 : vector<8x128xf32>
    %82 = arith.truncf %81 : vector<8x128xf32> to vector<8x128xbf16>
    %c8_i32_25 = arith.constant 8 : i32
    %83 = arith.muli %c2_i32, %c8_i32_25 : i32
    %84 = arith.index_cast %83 : i32 to index
    %c0_26 = arith.constant 0 : index
    %85 = vector.load %arg12[%84, %c0_26] : memref<64x128xbf16, #tpu.memory_space<vmem>>, vector<8x128xbf16>
    tpu.vector_store %arg12[%84, %c0_26], %82 {strides = array<i32>} : memref<64x128xbf16, #tpu.memory_space<vmem>>, vector<8x128xbf16>,
    %c3_i32 = arith.constant 3 : i32
    %86 = arith.index_cast %c3_i32 : i32 to index
    %c0_27 = arith.constant 0 : index
    %c0_28 = arith.constant 0 : index
    %87 = vector.load %arg1[%86, %c0_27, %c0_28] : memref<8x8x512xf32, #tpu.memory_space<vmem>>, vector<1x8x512xf32>
    %88 = vector.shape_cast %87 : vector<1x8x512xf32> to vector<8x512xf32>
    %89 = arith.truncf %81 : vector<8x128xf32> to vector<8x128xbf16>
    %c0_29 = arith.constant 0 : index
    %c0_30 = arith.constant 0 : index
    %90 = vector.load %arg2[%c0_29, %c0_30] : memref<128x512xbf16, #tpu.memory_space<vmem>>, vector<128x512xbf16>
    %cst_31 = arith.constant dense<0.000000e+00> : vector<8x512xf32>
    %91 = tpu.matmul %89, %90, %cst_31 {dimension_numbers = #tpu.dot_dimension_numbers<[1], [0], [0], [1], [0, 0, 1, 1], [], []>} : vector<8x128xbf16>, vector<128x512xbf16>, vector<8x512xf32> -> vector<8x512xf32>
    %92 = arith.addf %88, %91 : vector<8x512xf32>
    %93 = vector.extract_strided_slice %92 {offsets = [0, 0], sizes = [8, 384], strides = [1, 1]} : vector<8x512xf32> to vector<8x384xf32>
    %94 = arith.negf %93 : vector<8x384xf32>
    %95 = math.exp %94 : vector<8x384xf32>
    %cst_32 = arith.constant 1.000000e+00 : f32
    %96 = vector.broadcast %cst_32 : f32 to vector<8x384xf32>
    %97 = arith.addf %96, %95 : vector<8x384xf32>
    %98 = arith.divf %96, %97 : vector<8x384xf32>
    %99 = vector.extract_strided_slice %92 {offsets = [0, 384], sizes = [8, 128], strides = [1, 1]} : vector<8x512xf32> to vector<8x128xf32>
    %100 = math.tanh %99 : vector<8x128xf32>
    %101 = vector.extract_strided_slice %98 {offsets = [0, 0], sizes = [8, 128], strides = [1, 1]} : vector<8x384xf32> to vector<8x128xf32>
    %102 = vector.extract_strided_slice %98 {offsets = [0, 128], sizes = [8, 128], strides = [1, 1]} : vector<8x384xf32> to vector<8x128xf32>
    %103 = vector.extract_strided_slice %98 {offsets = [0, 256], sizes = [8, 128], strides = [1, 1]} : vector<8x384xf32> to vector<8x128xf32>
    %104 = arith.mulf %102, %79 : vector<8x128xf32>
    %105 = arith.mulf %101, %100 : vector<8x128xf32>
    %106 = arith.addf %104, %105 : vector<8x128xf32>
    %107 = math.tanh %106 : vector<8x128xf32>
    %108 = arith.mulf %103, %107 : vector<8x128xf32>
    %109 = arith.truncf %108 : vector<8x128xf32> to vector<8x128xbf16>
    %c8_i32_33 = arith.constant 8 : i32
    %110 = arith.muli %c3_i32, %c8_i32_33 : i32
    %111 = arith.index_cast %110 : i32 to index
    %c0_34 = arith.constant 0 : index
    %112 = vector.load %arg12[%111, %c0_34] : memref<64x128xbf16, #tpu.memory_space<vmem>>, vector<8x128xbf16>
    tpu.vector_store %arg12[%111, %c0_34], %109 {strides = array<i32>} : memref<64x128xbf16, #tpu.memory_space<vmem>>, vector<8x128xbf16>,
    %c4_i32 = arith.constant 4 : i32
    %113 = arith.index_cast %c4_i32 : i32 to index
    %c0_35 = arith.constant 0 : index
    %c0_36 = arith.constant 0 : index
    %114 = vector.load %arg1[%113, %c0_35, %c0_36] : memref<8x8x512xf32, #tpu.memory_space<vmem>>, vector<1x8x512xf32>
    %115 = vector.shape_cast %114 : vector<1x8x512xf32> to vector<8x512xf32>
    %116 = arith.truncf %108 : vector<8x128xf32> to vector<8x128xbf16>
    %c0_37 = arith.constant 0 : index
    %c0_38 = arith.constant 0 : index
    %117 = vector.load %arg2[%c0_37, %c0_38] : memref<128x512xbf16, #tpu.memory_space<vmem>>, vector<128x512xbf16>
    %cst_39 = arith.constant dense<0.000000e+00> : vector<8x512xf32>
    %118 = tpu.matmul %116, %117, %cst_39 {dimension_numbers = #tpu.dot_dimension_numbers<[1], [0], [0], [1], [0, 0, 1, 1], [], []>} : vector<8x128xbf16>, vector<128x512xbf16>, vector<8x512xf32> -> vector<8x512xf32>
    %119 = arith.addf %115, %118 : vector<8x512xf32>
    %120 = vector.extract_strided_slice %119 {offsets = [0, 0], sizes = [8, 384], strides = [1, 1]} : vector<8x512xf32> to vector<8x384xf32>
    %121 = arith.negf %120 : vector<8x384xf32>
    %122 = math.exp %121 : vector<8x384xf32>
    %cst_40 = arith.constant 1.000000e+00 : f32
    %123 = vector.broadcast %cst_40 : f32 to vector<8x384xf32>
    %124 = arith.addf %123, %122 : vector<8x384xf32>
    %125 = arith.divf %123, %124 : vector<8x384xf32>
    %126 = vector.extract_strided_slice %119 {offsets = [0, 384], sizes = [8, 128], strides = [1, 1]} : vector<8x512xf32> to vector<8x128xf32>
    %127 = math.tanh %126 : vector<8x128xf32>
    %128 = vector.extract_strided_slice %125 {offsets = [0, 0], sizes = [8, 128], strides = [1, 1]} : vector<8x384xf32> to vector<8x128xf32>
    %129 = vector.extract_strided_slice %125 {offsets = [0, 128], sizes = [8, 128], strides = [1, 1]} : vector<8x384xf32> to vector<8x128xf32>
    %130 = vector.extract_strided_slice %125 {offsets = [0, 256], sizes = [8, 128], strides = [1, 1]} : vector<8x384xf32> to vector<8x128xf32>
    %131 = arith.mulf %129, %106 : vector<8x128xf32>
    %132 = arith.mulf %128, %127 : vector<8x128xf32>
    %133 = arith.addf %131, %132 : vector<8x128xf32>
    %134 = math.tanh %133 : vector<8x128xf32>
    %135 = arith.mulf %130, %134 : vector<8x128xf32>
    %136 = arith.truncf %135 : vector<8x128xf32> to vector<8x128xbf16>
    %c8_i32_41 = arith.constant 8 : i32
    %137 = arith.muli %c4_i32, %c8_i32_41 : i32
    %138 = arith.index_cast %137 : i32 to index
    %c0_42 = arith.constant 0 : index
    %139 = vector.load %arg12[%138, %c0_42] : memref<64x128xbf16, #tpu.memory_space<vmem>>, vector<8x128xbf16>
    tpu.vector_store %arg12[%138, %c0_42], %136 {strides = array<i32>} : memref<64x128xbf16, #tpu.memory_space<vmem>>, vector<8x128xbf16>,
    %c5_i32 = arith.constant 5 : i32
    %140 = arith.index_cast %c5_i32 : i32 to index
    %c0_43 = arith.constant 0 : index
    %c0_44 = arith.constant 0 : index
    %141 = vector.load %arg1[%140, %c0_43, %c0_44] : memref<8x8x512xf32, #tpu.memory_space<vmem>>, vector<1x8x512xf32>
    %142 = vector.shape_cast %141 : vector<1x8x512xf32> to vector<8x512xf32>
    %143 = arith.truncf %135 : vector<8x128xf32> to vector<8x128xbf16>
    %c0_45 = arith.constant 0 : index
    %c0_46 = arith.constant 0 : index
    %144 = vector.load %arg2[%c0_45, %c0_46] : memref<128x512xbf16, #tpu.memory_space<vmem>>, vector<128x512xbf16>
    %cst_47 = arith.constant dense<0.000000e+00> : vector<8x512xf32>
    %145 = tpu.matmul %143, %144, %cst_47 {dimension_numbers = #tpu.dot_dimension_numbers<[1], [0], [0], [1], [0, 0, 1, 1], [], []>} : vector<8x128xbf16>, vector<128x512xbf16>, vector<8x512xf32> -> vector<8x512xf32>
    %146 = arith.addf %142, %145 : vector<8x512xf32>
    %147 = vector.extract_strided_slice %146 {offsets = [0, 0], sizes = [8, 384], strides = [1, 1]} : vector<8x512xf32> to vector<8x384xf32>
    %148 = arith.negf %147 : vector<8x384xf32>
    %149 = math.exp %148 : vector<8x384xf32>
    %cst_48 = arith.constant 1.000000e+00 : f32
    %150 = vector.broadcast %cst_48 : f32 to vector<8x384xf32>
    %151 = arith.addf %150, %149 : vector<8x384xf32>
    %152 = arith.divf %150, %151 : vector<8x384xf32>
    %153 = vector.extract_strided_slice %146 {offsets = [0, 384], sizes = [8, 128], strides = [1, 1]} : vector<8x512xf32> to vector<8x128xf32>
    %154 = math.tanh %153 : vector<8x128xf32>
    %155 = vector.extract_strided_slice %152 {offsets = [0, 0], sizes = [8, 128], strides = [1, 1]} : vector<8x384xf32> to vector<8x128xf32>
    %156 = vector.extract_strided_slice %152 {offsets = [0, 128], sizes = [8, 128], strides = [1, 1]} : vector<8x384xf32> to vector<8x128xf32>
    %157 = vector.extract_strided_slice %152 {offsets = [0, 256], sizes = [8, 128], strides = [1, 1]} : vector<8x384xf32> to vector<8x128xf32>
    %158 = arith.mulf %156, %133 : vector<8x128xf32>
    %159 = arith.mulf %155, %154 : vector<8x128xf32>
    %160 = arith.addf %158, %159 : vector<8x128xf32>
    %161 = math.tanh %160 : vector<8x128xf32>
    %162 = arith.mulf %157, %161 : vector<8x128xf32>
    %163 = arith.truncf %162 : vector<8x128xf32> to vector<8x128xbf16>
    %c8_i32_49 = arith.constant 8 : i32
    %164 = arith.muli %c5_i32, %c8_i32_49 : i32
    %165 = arith.index_cast %164 : i32 to index
    %c0_50 = arith.constant 0 : index
    %166 = vector.load %arg12[%165, %c0_50] : memref<64x128xbf16, #tpu.memory_space<vmem>>, vector<8x128xbf16>
    tpu.vector_store %arg12[%165, %c0_50], %163 {strides = array<i32>} : memref<64x128xbf16, #tpu.memory_space<vmem>>, vector<8x128xbf16>,
    %c6_i32 = arith.constant 6 : i32
    %167 = arith.index_cast %c6_i32 : i32 to index
    %c0_51 = arith.constant 0 : index
    %c0_52 = arith.constant 0 : index
    %168 = vector.load %arg1[%167, %c0_51, %c0_52] : memref<8x8x512xf32, #tpu.memory_space<vmem>>, vector<1x8x512xf32>
    %169 = vector.shape_cast %168 : vector<1x8x512xf32> to vector<8x512xf32>
    %170 = arith.truncf %162 : vector<8x128xf32> to vector<8x128xbf16>
    %c0_53 = arith.constant 0 : index
    %c0_54 = arith.constant 0 : index
    %171 = vector.load %arg2[%c0_53, %c0_54] : memref<128x512xbf16, #tpu.memory_space<vmem>>, vector<128x512xbf16>
    %cst_55 = arith.constant dense<0.000000e+00> : vector<8x512xf32>
    %172 = tpu.matmul %170, %171, %cst_55 {dimension_numbers = #tpu.dot_dimension_numbers<[1], [0], [0], [1], [0, 0, 1, 1], [], []>} : vector<8x128xbf16>, vector<128x512xbf16>, vector<8x512xf32> -> vector<8x512xf32>
    %173 = arith.addf %169, %172 : vector<8x512xf32>
    %174 = vector.extract_strided_slice %173 {offsets = [0, 0], sizes = [8, 384], strides = [1, 1]} : vector<8x512xf32> to vector<8x384xf32>
    %175 = arith.negf %174 : vector<8x384xf32>
    %176 = math.exp %175 : vector<8x384xf32>
    %cst_56 = arith.constant 1.000000e+00 : f32
    %177 = vector.broadcast %cst_56 : f32 to vector<8x384xf32>
    %178 = arith.addf %177, %176 : vector<8x384xf32>
    %179 = arith.divf %177, %178 : vector<8x384xf32>
    %180 = vector.extract_strided_slice %173 {offsets = [0, 384], sizes = [8, 128], strides = [1, 1]} : vector<8x512xf32> to vector<8x128xf32>
    %181 = math.tanh %180 : vector<8x128xf32>
    %182 = vector.extract_strided_slice %179 {offsets = [0, 0], sizes = [8, 128], strides = [1, 1]} : vector<8x384xf32> to vector<8x128xf32>
    %183 = vector.extract_strided_slice %179 {offsets = [0, 128], sizes = [8, 128], strides = [1, 1]} : vector<8x384xf32> to vector<8x128xf32>
    %184 = vector.extract_strided_slice %179 {offsets = [0, 256], sizes = [8, 128], strides = [1, 1]} : vector<8x384xf32> to vector<8x128xf32>
    %185 = arith.mulf %183, %160 : vector<8x128xf32>
    %186 = arith.mulf %182, %181 : vector<8x128xf32>
    %187 = arith.addf %185, %186 : vector<8x128xf32>
    %188 = math.tanh %187 : vector<8x128xf32>
    %189 = arith.mulf %184, %188 : vector<8x128xf32>
    %190 = arith.truncf %189 : vector<8x128xf32> to vector<8x128xbf16>
    %c8_i32_57 = arith.constant 8 : i32
    %191 = arith.muli %c6_i32, %c8_i32_57 : i32
    %192 = arith.index_cast %191 : i32 to index
    %c0_58 = arith.constant 0 : index
    %193 = vector.load %arg12[%192, %c0_58] : memref<64x128xbf16, #tpu.memory_space<vmem>>, vector<8x128xbf16>
    tpu.vector_store %arg12[%192, %c0_58], %190 {strides = array<i32>} : memref<64x128xbf16, #tpu.memory_space<vmem>>, vector<8x128xbf16>,
    %c7_i32 = arith.constant 7 : i32
    %194 = arith.index_cast %c7_i32 : i32 to index
    %c0_59 = arith.constant 0 : index
    %c0_60 = arith.constant 0 : index
    %195 = vector.load %arg1[%194, %c0_59, %c0_60] : memref<8x8x512xf32, #tpu.memory_space<vmem>>, vector<1x8x512xf32>
    %196 = vector.shape_cast %195 : vector<1x8x512xf32> to vector<8x512xf32>
    %197 = arith.truncf %189 : vector<8x128xf32> to vector<8x128xbf16>
    %c0_61 = arith.constant 0 : index
    %c0_62 = arith.constant 0 : index
    %198 = vector.load %arg2[%c0_61, %c0_62] : memref<128x512xbf16, #tpu.memory_space<vmem>>, vector<128x512xbf16>
    %cst_63 = arith.constant dense<0.000000e+00> : vector<8x512xf32>
    %199 = tpu.matmul %197, %198, %cst_63 {dimension_numbers = #tpu.dot_dimension_numbers<[1], [0], [0], [1], [0, 0, 1, 1], [], []>} : vector<8x128xbf16>, vector<128x512xbf16>, vector<8x512xf32> -> vector<8x512xf32>
    %200 = arith.addf %196, %199 : vector<8x512xf32>
    %201 = vector.extract_strided_slice %200 {offsets = [0, 0], sizes = [8, 384], strides = [1, 1]} : vector<8x512xf32> to vector<8x384xf32>
    %202 = arith.negf %201 : vector<8x384xf32>
    %203 = math.exp %202 : vector<8x384xf32>
    %cst_64 = arith.constant 1.000000e+00 : f32
    %204 = vector.broadcast %cst_64 : f32 to vector<8x384xf32>
    %205 = arith.addf %204, %203 : vector<8x384xf32>
    %206 = arith.divf %204, %205 : vector<8x384xf32>
    %207 = vector.extract_strided_slice %200 {offsets = [0, 384], sizes = [8, 128], strides = [1, 1]} : vector<8x512xf32> to vector<8x128xf32>
    %208 = math.tanh %207 : vector<8x128xf32>
    %209 = vector.extract_strided_slice %206 {offsets = [0, 0], sizes = [8, 128], strides = [1, 1]} : vector<8x384xf32> to vector<8x128xf32>
    %210 = vector.extract_strided_slice %206 {offsets = [0, 128], sizes = [8, 128], strides = [1, 1]} : vector<8x384xf32> to vector<8x128xf32>
    %211 = vector.extract_strided_slice %206 {offsets = [0, 256], sizes = [8, 128], strides = [1, 1]} : vector<8x384xf32> to vector<8x128xf32>
    %212 = arith.mulf %210, %187 : vector<8x128xf32>
    %213 = arith.mulf %209, %208 : vector<8x128xf32>
    %214 = arith.addf %212, %213 : vector<8x128xf32>
    %215 = math.tanh %214 : vector<8x128xf32>
    %216 = arith.mulf %211, %215 : vector<8x128xf32>
    %217 = arith.truncf %216 : vector<8x128xf32> to vector<8x128xbf16>
    %c8_i32_65 = arith.constant 8 : i32
    %218 = arith.muli %c7_i32, %c8_i32_65 : i32
    %219 = arith.index_cast %218 : i32 to index
    %c0_66 = arith.constant 0 : index
    %220 = vector.load %arg12[%219, %c0_66] : memref<64x128xbf16, #tpu.memory_space<vmem>>, vector<8x128xbf16>
    tpu.vector_store %arg12[%219, %c0_66], %217 {strides = array<i32>} : memref<64x128xbf16, #tpu.memory_space<vmem>>, vector<8x128xbf16>,
    %c8_i32_67 = arith.constant 8 : i32
    %c0_68 = arith.constant 0 : index
    %c0_69 = arith.constant 0 : index
    %221 = vector.load %arg10[%c0_68, %c0_69] : memref<8x128xf32, #tpu.memory_space<vmem>>, vector<8x128xf32>
    tpu.vector_store %arg10[%c0_68, %c0_69], %216 {strides = array<i32>} : memref<8x128xf32, #tpu.memory_space<vmem>>, vector<8x128xf32>,
    %c0_70 = arith.constant 0 : index
    %c0_71 = arith.constant 0 : index
    %222 = vector.load %arg11[%c0_70, %c0_71] : memref<8x128xf32, #tpu.memory_space<vmem>>, vector<8x128xf32>
    tpu.vector_store %arg11[%c0_70, %c0_71], %214 {strides = array<i32>} : memref<8x128xf32, #tpu.memory_space<vmem>>, vector<8x128xf32>,
    %c0_72 = arith.constant 0 : index
    %c0_73 = arith.constant 0 : index
    %223 = vector.load %arg8[%c0_72, %c0_73] : memref<8x128xf32, #tpu.memory_space<vmem>>, vector<8x128xf32>
    tpu.vector_store %arg8[%c0_72, %c0_73], %216 {strides = array<i32>} : memref<8x128xf32, #tpu.memory_space<vmem>>, vector<8x128xf32>,
    %c0_74 = arith.constant 0 : index
    %c0_75 = arith.constant 0 : index
    %224 = vector.load %arg9[%c0_74, %c0_75] : memref<8x128xf32, #tpu.memory_space<vmem>>, vector<8x128xf32>
    tpu.vector_store %arg9[%c0_74, %c0_75], %214 {strides = array<i32>} : memref<8x128xf32, #tpu.memory_space<vmem>>, vector<8x128xf32>,
    %c0_76 = arith.constant 0 : index
    %c0_77 = arith.constant 0 : index
    %225 = vector.load %arg12[%c0_76, %c0_77] : memref<64x128xbf16, #tpu.memory_space<vmem>>, vector<64x128xbf16>
    %c0_78 = arith.constant 0 : index
    %c0_79 = arith.constant 0 : index
    %226 = vector.load %arg3[%c0_78, %c0_79] : memref<128x128xbf16, #tpu.memory_space<vmem>>, vector<128x128xbf16>
    %cst_80 = arith.constant dense<0.000000e+00> : vector<64x128xf32>
    %227 = tpu.matmul %225, %226, %cst_80 {dimension_numbers = #tpu.dot_dimension_numbers<[1], [0], [0], [1], [0, 0, 1, 1], [], []>} : vector<64x128xbf16>, vector<128x128xbf16>, vector<64x128xf32> -> vector<64x128xf32>
    %c0_81 = arith.constant 0 : index
    %c0_82 = arith.constant 0 : index
    %228 = vector.load %arg4[%c0_81, %c0_82] : memref<1x128xf32, #tpu.memory_space<vmem>>, vector<1x128xf32>
    %229 = vector.broadcast %228 : vector<1x128xf32> to vector<64x128xf32>
    %230 = arith.addf %227, %229 : vector<64x128xf32>
    %cst_83 = arith.constant 0.000000e+00 : f32
    %231 = vector.broadcast %cst_83 : f32 to vector<64x128xf32>
    %232 = arith.maximumf %230, %231 : vector<64x128xf32>
    %233 = arith.truncf %232 : vector<64x128xf32> to vector<64x128xbf16>
    %c0_84 = arith.constant 0 : index
    %c0_85 = arith.constant 0 : index
    %234 = vector.load %arg5[%c0_84, %c0_85] : memref<128x128xbf16, #tpu.memory_space<vmem>>, vector<128x128xbf16>
    %cst_86 = arith.constant dense<0.000000e+00> : vector<64x128xf32>
    %235 = tpu.matmul %233, %234, %cst_86 {dimension_numbers = #tpu.dot_dimension_numbers<[1], [0], [0], [1], [0, 0, 1, 1], [], []>} : vector<64x128xbf16>, vector<128x128xbf16>, vector<64x128xf32> -> vector<64x128xf32>
    %c0_87 = arith.constant 0 : index
    %c0_88 = arith.constant 0 : index
    %236 = vector.load %arg6[%c0_87, %c0_88] : memref<1x128xf32, #tpu.memory_space<vmem>>, vector<1x128xf32>
    %237 = vector.broadcast %236 : vector<1x128xf32> to vector<64x128xf32>
    %238 = arith.addf %235, %237 : vector<64x128xf32>
    %cst_89 = arith.constant dense<0xFF800000> : vector<64xf32>
    %239 = vector.multi_reduction <maximumf>, %238, %cst_89 [1] : vector<64x128xf32> to vector<64xf32>
    %240 = vector.shape_cast %239 : vector<64xf32> to vector<64x1xf32>
    %241 = vector.broadcast %240 : vector<64x1xf32> to vector<64x128xf32>
    %242 = arith.subf %238, %241 : vector<64x128xf32>
    %243 = math.exp %242 : vector<64x128xf32>
    %cst_90 = arith.constant dense<0.000000e+00> : vector<64xf32>
    %244 = vector.multi_reduction <add>, %243, %cst_90 [1] : vector<64x128xf32> to vector<64xf32>
    %245 = vector.shape_cast %244 : vector<64xf32> to vector<64x1xf32>
    %246 = math.log %245 : vector<64x1xf32>
    %247 = vector.broadcast %246 : vector<64x1xf32> to vector<64x128xf32>
    %248 = arith.subf %242, %247 : vector<64x128xf32>
    %c0_91 = arith.constant 0 : index
    %c0_92 = arith.constant 0 : index
    %249 = vector.load %arg7[%c0_91, %c0_92] : memref<64x128xf32, #tpu.memory_space<vmem>>, vector<64x128xf32>
    tpu.vector_store %arg7[%c0_91, %c0_92], %248 {strides = array<i32>} : memref<64x128xf32, #tpu.memory_space<vmem>>, vector<64x128xf32>,
    return
  }
  func.func @transform_0(%arg0: i32) -> (i32, i32, i32) {
    %c0_i32 = arith.constant 0 : i32
    %c0_i32_0 = arith.constant 0 : i32
    %c0_i32_1 = arith.constant 0 : i32
    return %arg0, %c0_i32, %c0_i32_0 : i32, i32, i32
  }
  func.func @transform_1(%arg0: i32) -> (i32, i32) {
    %c0_i32 = arith.constant 0 : i32
    %c0_i32_0 = arith.constant 0 : i32
    %c0_i32_1 = arith.constant 0 : i32
    return %c0_i32, %c0_i32_0 : i32, i32
  }
  func.func @transform_2(%arg0: i32) -> (i32, i32) {
    %c0_i32 = arith.constant 0 : i32
    %c0_i32_0 = arith.constant 0 : i32
    %c0_i32_1 = arith.constant 0 : i32
    return %c0_i32, %c0_i32_0 : i32, i32
  }
  func.func @transform_3(%arg0: i32) -> (i32, i32) {
    %c0_i32 = arith.constant 0 : i32
    %c0_i32_0 = arith.constant 0 : i32
    %c0_i32_1 = arith.constant 0 : i32
    return %c0_i32, %c0_i32_0 : i32, i32
  }
  func.func @transform_4(%arg0: i32) -> (i32, i32) {
    %c0_i32 = arith.constant 0 : i32
    %c0_i32_0 = arith.constant 0 : i32
    %c0_i32_1 = arith.constant 0 : i32
    return %c0_i32, %c0_i32_0 : i32, i32
  }
  func.func @transform_5(%arg0: i32) -> (i32, i32) {
    %c0_i32 = arith.constant 0 : i32
    %c0_i32_0 = arith.constant 0 : i32
    %c0_i32_1 = arith.constant 0 : i32
    return %c0_i32, %c0_i32_0 : i32, i32
  }
  func.func @transform_6(%arg0: i32) -> (i32, i32) {
    %c0_i32 = arith.constant 0 : i32
    %c0_i32_0 = arith.constant 0 : i32
    return %arg0, %c0_i32 : i32, i32
  }
  func.func @transform_7(%arg0: i32) -> (i32, i32) {
    %c0_i32 = arith.constant 0 : i32
    %c0_i32_0 = arith.constant 0 : i32
    %c0_i32_1 = arith.constant 0 : i32
    return %c0_i32, %c0_i32_0 : i32, i32
  }
  func.func @transform_8(%arg0: i32) -> (i32, i32) {
    %c0_i32 = arith.constant 0 : i32
    %c0_i32_0 = arith.constant 0 : i32
    %c0_i32_1 = arith.constant 0 : i32
    return %c0_i32, %c0_i32_0 : i32, i32
  }
}

</mosaic_0001>

<llo_original>
// kernel: _lambda_.2
$region0: #{_lambda_.2}
  #allocation0 [shape = 'u32[]', space=smem, size = 0x4, offset = 0x4, fixed_abs, tag = 'smem constant byte address 0x4 - core index']
  #allocation1 [shape = 'u32[72,128]{1,0:T(1,128)}', space=vmem, size = 0x9000, scoped, tag = 'internal scratch']
  %s0 = inlined_call_operand.vmem [shape: f32[64,128], index: 0, kind: input, shape index: {}]
  %s1 = inlined_call_operand.hbm [shape: bf16[128,512], index: 1, kind: input, shape index: {}]
  %s2 = inlined_call_operand.vmem [shape: f32[1,512], index: 2, kind: input, shape index: {}]
  %s3 = inlined_call_operand.vmem [shape: f32[64,512], index: 3, kind: output, shape index: {}]
  %s4 = sld [smem:[#allocation0]]
  $region26: #{_lambda_.2} parent=0
    _
  %s6 = ssub.s32 1, %s4
  %s7 = scalar_select 0, %s6, %s4
  $region1: #{_lambda_.2} parent=0
    #allocation2 [shape = 'u8[131072]{0}', space=vmem, size = 0x20000, scoped, tag = 'input window, operand 1, single buffered']
    #allocation3 [shape = 's32[1]{0}', space=sflag, size = 0x4, scoped, tag = 'scoped memory for _lambda_.2']
    %8 = vsyncpa [#allocation3], 0
    // Predicated region
    $region2: #{_lambda_.2} parent=1 // pred_check
      _
    $region3: #{_lambda_.2} parent=1 // pred_check_branch
      %10 = sbr.rel (0) target = $region5
    $region4: #{_lambda_.2} parent=1 // pred_region
      _
    $region5: #{_lambda_.2} parent=1 // pred_fallthru
      _
    // Predicated region
    $region6: #{_lambda_.2} parent=1 // pred_check
      _
    $region7: #{_lambda_.2} parent=1 // pred_check_branch
      %12 = sbr.rel (0) target = $region9
    $region8: #{_lambda_.2} parent=1 // pred_region
      %14 = vsyncadd [#allocation3], 0
      %s15 = sshll.u32 %s1, 4
      %s16 = int_to_ptr.hbm [resolvable:$true] %s15
      %s17 = sshll.u32 [#allocation2], 4
      %s18 = int_to_ptr.vmem [resolvable:$true] %s17
      %23 = dma.hbm_to_vmem [thread:$0]  %s16, 4096, %s18, [#allocation3], 256, 256, 16
    $region9: #{_lambda_.2} parent=1 // pred_fallthru
      _
    // Predicated region
    $region10: #{_lambda_.2} parent=1 // pred_check
      _
    $region11: #{_lambda_.2} parent=1 // pred_check_branch
      %25 = sbr.rel (0) target = $region13
    $region12: #{_lambda_.2} parent=1 // pred_region
      _
    $region13: #{_lambda_.2} parent=1 // pred_fallthru
      _
    // Predicated region
    $region14: #{_lambda_.2} parent=1 // pred_check
      _
    $region15: #{_lambda_.2} parent=1 // pred_check_branch
      %27 = sbr.rel (0) target = $region17
    $region16: #{_lambda_.2} parent=1 // pred_region
      %29 = dma.done [#allocation3], 4096
    $region17: #{_lambda_.2} parent=1 // pred_fallthru
      _
    %v30 = vld [vmem:[%s0] sm:$0xff]
    %v31 = vld [vmem:[%s0 + $0x8] sm:$0xff]
    %v32 = vld [vmem:[%s0 + $0x10] sm:$0xff]
    %v33 = vld [vmem:[%s0 + $0x18] sm:$0xff]
    %v34 = vld [vmem:[%s0 + $0x20] sm:$0xff]
    %v35 = vld [vmem:[%s0 + $0x28] sm:$0xff]
    %v36 = vld [vmem:[%s0 + $0x30] sm:$0xff]
    %v37 = vld [vmem:[%s0 + $0x38] sm:$0xff]
    %v38 = vpack.c.bf16 %v31, %v30
    %v39 = vpack.c.bf16 %v33, %v32
    %v40 = vpack.c.bf16 %v35, %v34
    %v41 = vpack.c.bf16 %v37, %v36
    %v42 = vld [vmem:[#allocation2] sm:$0xff]
    %v43 = vld [vmem:[#allocation2 + $0x8] sm:$0xff]
    %v44 = vld [vmem:[#allocation2 + $0x10] sm:$0xff]
    %v45 = vld [vmem:[#allocation2 + $0x18] sm:$0xff]
    %v46 = vld [vmem:[#allocation2 + $0x20] sm:$0xff]
    %v47 = vld [vmem:[#allocation2 + $0x28] sm:$0xff]
    %v48 = vld [vmem:[#allocation2 + $0x30] sm:$0xff]
    %v49 = vld [vmem:[#allocation2 + $0x38] sm:$0xff]
    %v50 = vld [vmem:[#allocation2 + $0x40] sm:$0xff]
    %v51 = vld [vmem:[#allocation2 + $0x48] sm:$0xff]
    %v52 = vld [vmem:[#allocation2 + $0x50] sm:$0xff]
    %v53 = vld [vmem:[#allocation2 + $0x58] sm:$0xff]
    %v54 = vld [vmem:[#allocation2 + $0x60] sm:$0xff]
    %v55 = vld [vmem:[#allocation2 + $0x68] sm:$0xff]
    %v56 = vld [vmem:[#allocation2 + $0x70] sm:$0xff]
    %v57 = vld [vmem:[#allocation2 + $0x78] sm:$0xff]
    %v58 = vld [vmem:[#allocation2 + $0x80] sm:$0xff]
    %v59 = vld [vmem:[#allocation2 + $0x88] sm:$0xff]
    %v60 = vld [vmem:[#allocation2 + $0x90] sm:$0xff]
    %v61 = vld [vmem:[#allocation2 + $0x98] sm:$0xff]
    %v62 = vld [vmem:[#allocation2 + $0xa0] sm:$0xff]
    %v63 = vld [vmem:[#allocation2 + $0xa8] sm:$0xff]
    %v64 = vld [vmem:[#allocation2 + $0xb0] sm:$0xff]
    %v65 = vld [vmem:[#allocation2 + $0xb8] sm:$0xff]
    %v66 = vld [vmem:[#allocation2 + $0xc0] sm:$0xff]
    %v67 = vld [vmem:[#allocation2 + $0xc8] sm:$0xff]
    %v68 = vld [vmem:[#allocation2 + $0xd0] sm:$0xff]
    %v69 = vld [vmem:[#allocation2 + $0xd8] sm:$0xff]
    %v70 = vld [vmem:[#allocation2 + $0xe0] sm:$0xff]
    %v71 = vld [vmem:[#allocation2 + $0xe8] sm:$0xff]
    %v72 = vld [vmem:[#allocation2 + $0xf0] sm:$0xff]
    %v73 = vld [vmem:[#allocation2 + $0xf8] sm:$0xff]
    %v74 = vld [vmem:[%s2] sm:$0xf]
    %v76 = vperm.slane %v74, 0
    %v77 = vperm.slane %v74, 1
    %v78 = vperm.slane %v74, 2
    %v79 = vperm.slane %v74, 3
    %v116 = vunpack.c.l.b16 %v42
    %v117 = vunpack.c.h.b16 %v42
    %v118 = vunpack.c.l.b16 %v43
    %v119 = vunpack.c.h.b16 %v43
    %v120 = vunpack.c.l.b16 %v44
    %v121 = vunpack.c.h.b16 %v44
    %v122 = vunpack.c.l.b16 %v45
    %v123 = vunpack.c.h.b16 %v45
    %v124 = vunpack.c.l.b16 %v46
    %v125 = vunpack.c.h.b16 %v46
    %v126 = vunpack.c.l.b16 %v47
    %v127 = vunpack.c.h.b16 %v47
    %v128 = vunpack.c.l.b16 %v48
    %v129 = vunpack.c.h.b16 %v48
    %v130 = vunpack.c.l.b16 %v49
    %v131 = vunpack.c.h.b16 %v49
    %v132 = vunpack.c.l.b16 %v50
    %v133 = vunpack.c.h.b16 %v50
    %v134 = vunpack.c.l.b16 %v51
    %v135 = vunpack.c.h.b16 %v51
    %v136 = vunpack.c.l.b16 %v52
    %v137 = vunpack.c.h.b16 %v52
    %v138 = vunpack.c.l.b16 %v53
    %v139 = vunpack.c.h.b16 %v53
    %v140 = vunpack.c.l.b16 %v54
    %v141 = vunpack.c.h.b16 %v54
    %v142 = vunpack.c.l.b16 %v55
    %v143 = vunpack.c.h.b16 %v55
    %v144 = vunpack.c.l.b16 %v56
    %v145 = vunpack.c.h.b16 %v56
    %v146 = vunpack.c.l.b16 %v57
    %v147 = vunpack.c.h.b16 %v57
    %v148 = vunpack.c.l.b16 %v58
    %v149 = vunpack.c.h.b16 %v58
    %v150 = vunpack.c.l.b16 %v59
    %v151 = vunpack.c.h.b16 %v59
    %v152 = vunpack.c.l.b16 %v60
    %v153 = vunpack.c.h.b16 %v60
    %v154 = vunpack.c.l.b16 %v61
    %v155 = vunpack.c.h.b16 %v61
    %v156 = vunpack.c.l.b16 %v62
    %v157 = vunpack.c.h.b16 %v62
    %v158 = vunpack.c.l.b16 %v63
    %v159 = vunpack.c.h.b16 %v63
    %v160 = vunpack.c.l.b16 %v64
    %v161 = vunpack.c.h.b16 %v64
    %v162 = vunpack.c.l.b16 %v65
    %v163 = vunpack.c.h.b16 %v65
    %v164 = vunpack.c.l.b16 %v66
    %v165 = vunpack.c.h.b16 %v66
    %v166 = vunpack.c.l.b16 %v67
    %v167 = vunpack.c.h.b16 %v67
    %v168 = vunpack.c.l.b16 %v68
    %v169 = vunpack.c.h.b16 %v68
    %v170 = vunpack.c.l.b16 %v69
    %v171 = vunpack.c.h.b16 %v69
    %v172 = vunpack.c.l.b16 %v70
    %v173 = vunpack.c.h.b16 %v70
    %v174 = vunpack.c.l.b16 %v71
    %v175 = vunpack.c.h.b16 %v71
    %v176 = vunpack.c.l.b16 %v72
    %v177 = vunpack.c.h.b16 %v72
    %v178 = vunpack.c.l.b16 %v73
    %v179 = vunpack.c.h.b16 %v73
    %v180 = vpack.c.b16 %v120, %v116
    %v181 = vpack.c.b16 %v121, %v117
    %v182 = vpack.c.b16 %v122, %v118
    %v183 = vpack.c.b16 %v123, %v119
    %v184 = vpack.c.b16 %v128, %v124
    %v185 = vpack.c.b16 %v129, %v125
    %v186 = vpack.c.b16 %v130, %v126
    %v187 = vpack.c.b16 %v131, %v127
    %v188 = vpack.c.b16 %v136, %v132
    %v189 = vpack.c.b16 %v137, %v133
    %v190 = vpack.c.b16 %v138, %v134
    %v191 = vpack.c.b16 %v139, %v135
    %v192 = vpack.c.b16 %v144, %v140
    %v193 = vpack.c.b16 %v145, %v141
    %v194 = vpack.c.b16 %v146, %v142
    %v195 = vpack.c.b16 %v147, %v143
    %v196 = vpack.c.b16 %v152, %v148
    %v197 = vpack.c.b16 %v153, %v149
    %v198 = vpack.c.b16 %v154, %v150
    %v199 = vpack.c.b16 %v155, %v151
    %v200 = vpack.c.b16 %v160, %v156
    %v201 = vpack.c.b16 %v161, %v157
    %v202 = vpack.c.b16 %v162, %v158
    %v203 = vpack.c.b16 %v163, %v159
    %v204 = vpack.c.b16 %v168, %v164
    %v205 = vpack.c.b16 %v169, %v165
    %v206 = vpack.c.b16 %v170, %v166
    %v207 = vpack.c.b16 %v171, %v167
    %v208 = vpack.c.b16 %v176, %v172
    %v209 = vpack.c.b16 %v177, %v173
    %v210 = vpack.c.b16 %v178, %v174
    %v211 = vpack.c.b16 %v179, %v175
    %244 = vmatpush.bf16.msra.mxu0 %v208
    %245 = vmatpush.bf16.msra.mxu0 %v204
    %246 = vmatpush.bf16.msra.mxu0 %v200
    %247 = vmatpush.bf16.msra.mxu0 %v196
    %248 = vmatpush.bf16.msra.mxu0 %v192
    %249 = vmatpush.bf16.msra.mxu0 %v188
    %250 = vmatpush.bf16.msra.mxu0 %v184
    %251 = vmatpush.bf16.msra.mxu0 %v180
    %252 = vmatmul.bf16.gmra.mxu0 %v38
    %v253 = vpop.f32.mrf.mxu0
    %v254 = vadd.f32 %v76, %v253
    %v255 = vpop.f32.mrf.mxu0
    %v256 = vadd.f32 %v76, %v255
    %257 = vmatmul.bf16.gmra.mxu0 %v39
    %v258 = vpop.f32.mrf.mxu0
    %v259 = vadd.f32 %v76, %v258
    %v260 = vpop.f32.mrf.mxu0
    %v261 = vadd.f32 %v76, %v260
    %262 = vmatmul.bf16.gmra.mxu0 %v40
    %v263 = vpop.f32.mrf.mxu0
    %v264 = vadd.f32 %v76, %v263
    %v265 = vpop.f32.mrf.mxu0
    %v266 = vadd.f32 %v76, %v265
    %267 = vmatmul.bf16.gmra.mxu0 %v41
    %v268 = vpop.f32.mrf.mxu0
    %v269 = vadd.f32 %v76, %v268
    %v270 = vpop.f32.mrf.mxu0
    %v271 = vadd.f32 %v76, %v270
    %272 = vdwg.mxu0
    %273 = vmatpush.bf16.msra.mxu0 %v209
    %274 = vmatpush.bf16.msra.mxu0 %v205
    %275 = vmatpush.bf16.msra.mxu0 %v201
    %276 = vmatpush.bf16.msra.mxu0 %v197
    %277 = vmatpush.bf16.msra.mxu0 %v193
    %278 = vmatpush.bf16.msra.mxu0 %v189
    %279 = vmatpush.bf16.msra.mxu0 %v185
    %280 = vmatpush.bf16.msra.mxu0 %v181
    %281 = vmatmul.bf16.gmra.mxu0 %v38
    %v282 = vpop.f32.mrf.mxu0
    %v283 = vadd.f32 %v77, %v282
    %v284 = vpop.f32.mrf.mxu0
    %v285 = vadd.f32 %v77, %v284
    %286 = vmatmul.bf16.gmra.mxu0 %v39
    %v287 = vpop.f32.mrf.mxu0
    %v288 = vadd.f32 %v77, %v287
    %v289 = vpop.f32.mrf.mxu0
    %v290 = vadd.f32 %v77, %v289
    %291 = vmatmul.bf16.gmra.mxu0 %v40
    %v292 = vpop.f32.mrf.mxu0
    %v293 = vadd.f32 %v77, %v292
    %v294 = vpop.f32.mrf.mxu0
    %v295 = vadd.f32 %v77, %v294
    %296 = vmatmul.bf16.gmra.mxu0 %v41
    %v297 = vpop.f32.mrf.mxu0
    %v298 = vadd.f32 %v77, %v297
    %v299 = vpop.f32.mrf.mxu0
    %v300 = vadd.f32 %v77, %v299
    %301 = vdwg.mxu0
    %302 = vmatpush.bf16.msra.mxu0 %v210
    %303 = vmatpush.bf16.msra.mxu0 %v206
    %304 = vmatpush.bf16.msra.mxu0 %v202
    %305 = vmatpush.bf16.msra.mxu0 %v198
    %306 = vmatpush.bf16.msra.mxu0 %v194
    %307 = vmatpush.bf16.msra.mxu0 %v190
    %308 = vmatpush.bf16.msra.mxu0 %v186
    %309 = vmatpush.bf16.msra.mxu0 %v182
    %310 = vmatmul.bf16.gmra.mxu0 %v38
    %v311 = vpop.f32.mrf.mxu0
    %v312 = vadd.f32 %v78, %v311
    %v313 = vpop.f32.mrf.mxu0
    %v314 = vadd.f32 %v78, %v313
    %315 = vmatmul.bf16.gmra.mxu0 %v39
    %v316 = vpop.f32.mrf.mxu0
    %v317 = vadd.f32 %v78, %v316
    %v318 = vpop.f32.mrf.mxu0
    %v319 = vadd.f32 %v78, %v318
    %320 = vmatmul.bf16.gmra.mxu0 %v40
    %v321 = vpop.f32.mrf.mxu0
    %v322 = vadd.f32 %v78, %v321
    %v323 = vpop.f32.mrf.mxu0
    %v324 = vadd.f32 %v78, %v323
    %325 = vmatmul.bf16.gmra.mxu0 %v41
    %v326 = vpop.f32.mrf.mxu0
    %v327 = vadd.f32 %v78, %v326
    %v328 = vpop.f32.mrf.mxu0
    %v329 = vadd.f32 %v78, %v328
    %330 = vdwg.mxu0
    %331 = vmatpush.bf16.msra.mxu0 %v211
    %332 = vmatpush.bf16.msra.mxu0 %v207
    %333 = vmatpush.bf16.msra.mxu0 %v203
    %334 = vmatpush.bf16.msra.mxu0 %v199
    %335 = vmatpush.bf16.msra.mxu0 %v195
    %336 = vmatpush.bf16.msra.mxu0 %v191
    %337 = vmatpush.bf16.msra.mxu0 %v187
    %338 = vmatpush.bf16.msra.mxu0 %v183
    %339 = vmatmul.bf16.gmra.mxu0 %v38
    %v340 = vpop.f32.mrf.mxu0
    %v341 = vadd.f32 %v79, %v340
    %v342 = vpop.f32.mrf.mxu0
    %v343 = vadd.f32 %v79, %v342
    %344 = vmatmul.bf16.gmra.mxu0 %v39
    %v345 = vpop.f32.mrf.mxu0
    %v346 = vadd.f32 %v79, %v345
    %v347 = vpop.f32.mrf.mxu0
    %v348 = vadd.f32 %v79, %v347
    %349 = vmatmul.bf16.gmra.mxu0 %v40
    %v350 = vpop.f32.mrf.mxu0
    %v351 = vadd.f32 %v79, %v350
    %v352 = vpop.f32.mrf.mxu0
    %v353 = vadd.f32 %v79, %v352
    %354 = vmatmul.bf16.gmra.mxu0 %v41
    %v355 = vpop.f32.mrf.mxu0
    %v356 = vadd.f32 %v79, %v355
    %v357 = vpop.f32.mrf.mxu0
    %v358 = vadd.f32 %v79, %v357
    %359 = vdwg.mxu0
    %360 = vst [vmem:[%s3] sm:$0xff] %v254
    %361 = vst [vmem:[%s3 + $0x8] sm:$0xff] %v283
    %362 = vst [vmem:[%s3 + $0x10] sm:$0xff] %v312
    %363 = vst [vmem:[%s3 + $0x18] sm:$0xff] %v341
    %364 = vst [vmem:[%s3 + $0x20] sm:$0xff] %v256
    %365 = vst [vmem:[%s3 + $0x28] sm:$0xff] %v285
    %366 = vst [vmem:[%s3 + $0x30] sm:$0xff] %v314
    %367 = vst [vmem:[%s3 + $0x38] sm:$0xff] %v343
    %368 = vst [vmem:[%s3 + $0x40] sm:$0xff] %v259
    %369 = vst [vmem:[%s3 + $0x48] sm:$0xff] %v288
    %370 = vst [vmem:[%s3 + $0x50] sm:$0xff] %v317
    %371 = vst [vmem:[%s3 + $0x58] sm:$0xff] %v346
    %372 = vst [vmem:[%s3 + $0x60] sm:$0xff] %v261
    %373 = vst [vmem:[%s3 + $0x68] sm:$0xff] %v290
    %374 = vst [vmem:[%s3 + $0x70] sm:$0xff] %v319
    %375 = vst [vmem:[%s3 + $0x78] sm:$0xff] %v348
    %376 = vst [vmem:[%s3 + $0x80] sm:$0xff] %v264
    %377 = vst [vmem:[%s3 + $0x88] sm:$0xff] %v293
    %378 = vst [vmem:[%s3 + $0x90] sm:$0xff] %v322
    %379 = vst [vmem:[%s3 + $0x98] sm:$0xff] %v351
    %380 = vst [vmem:[%s3 + $0xa0] sm:$0xff] %v266
    %381 = vst [vmem:[%s3 + $0xa8] sm:$0xff] %v295
    %382 = vst [vmem:[%s3 + $0xb0] sm:$0xff] %v324
    %383 = vst [vmem:[%s3 + $0xb8] sm:$0xff] %v353
    %384 = vst [vmem:[%s3 + $0xc0] sm:$0xff] %v269
    %385 = vst [vmem:[%s3 + $0xc8] sm:$0xff] %v298
    %386 = vst [vmem:[%s3 + $0xd0] sm:$0xff] %v327
    %387 = vst [vmem:[%s3 + $0xd8] sm:$0xff] %v356
    %388 = vst [vmem:[%s3 + $0xe0] sm:$0xff] %v271
    %389 = vst [vmem:[%s3 + $0xe8] sm:$0xff] %v300
    %390 = vst [vmem:[%s3 + $0xf0] sm:$0xff] %v329
    %391 = vst [vmem:[%s3 + $0xf8] sm:$0xff] %v358
    // Predicated region
    $region18: #{_lambda_.2} parent=1 // pred_check
      _
    $region19: #{_lambda_.2} parent=1 // pred_check_branch
      %393 = sbr.rel (0) target = $region21
    $region20: #{_lambda_.2} parent=1 // pred_region
      _
    $region21: #{_lambda_.2} parent=1 // pred_fallthru
      _
    // Predicated region
    $region22: #{_lambda_.2} parent=1 // pred_check
      _
    $region23: #{_lambda_.2} parent=1 // pred_check_branch
      %395 = sbr.rel (0) target = $region25
    $region24: #{_lambda_.2} parent=1 // pred_region
      _
    $region25: #{_lambda_.2} parent=1 // pred_fallthru
      _
    %396 = vsyncpa [#allocation3], 1

// kernel: _lambda_.3
$region0: #{_lambda_.3}
  #allocation0 [shape = 'u32[]', space=smem, size = 0x4, offset = 0x4, fixed_abs, tag = 'smem constant byte address 0x4 - core index']
  #allocation1 [shape = 'u32[72,128]{1,0:T(1,128)}', space=vmem, size = 0x9000, scoped, tag = 'internal scratch']
  #allocation2 [shape = 'f32[8,128]{1,0:T(8,128)}', space=vmem, size = 0x1000, scoped, tag = 'scratch operand']
  #allocation3 [shape = 'f32[8,128]{1,0:T(8,128)}', space=vmem, size = 0x1000, scoped, tag = 'scratch operand']
  #allocation4 [shape = 'bf16[64,128]{1,0:T(8,128)(2,1)}', space=vmem, size = 0x4000, scoped, tag = 'scratch operand']
  %s0 = inlined_call_operand.vmem [shape: f32[8,8,512], index: 0, kind: input, shape index: {}]
  %s1 = inlined_call_operand.hbm [shape: bf16[128,512], index: 1, kind: input, shape index: {}]
  %s2 = inlined_call_operand.vmem [shape: bf16[128,128], index: 2, kind: input, shape index: {}]
  %s3 = inlined_call_operand.vmem [shape: f32[1,128], index: 3, kind: input, shape index: {}]
  %s4 = inlined_call_operand.hbm [shape: bf16[128,128], index: 4, kind: input, shape index: {}]
  %s5 = inlined_call_operand.vmem [shape: f32[1,128], index: 5, kind: input, shape index: {}]
  %s6 = inlined_call_operand.vmem [shape: f32[64,128], index: 6, kind: output, shape index: {0}]
  %s7 = inlined_call_operand.vmem [shape: f32[8,128], index: 7, kind: output, shape index: {1}]
  %s8 = inlined_call_operand.vmem [shape: f32[8,128], index: 8, kind: output, shape index: {2}]
  %9 = xla_tuple %s6, %s7, %s8
  %s10 = sld [smem:[#allocation0]]
  $region62: #{_lambda_.3} parent=0
    _
  %s12 = ssub.s32 1, %s10
  %s13 = scalar_select 0, %s12, %s10
  $region1: #{_lambda_.3} parent=0
    #allocation5 [shape = 'u8[131072]{0}', space=vmem, size = 0x20000, scoped, tag = 'input window, operand 1, single buffered']
    #allocation6 [shape = 's32[1]{0}', space=sflag, size = 0x4, scoped, tag = 'scoped memory for _lambda_.3']
    #allocation7 [shape = 'u8[32768]{0}', space=vmem, size = 0x8000, scoped, tag = 'input window, operand 4, single buffered']
    #allocation8 [shape = 's32[1]{0}', space=sflag, size = 0x4, scoped, tag = 'scoped memory for _lambda_.3']
    %14 = vsyncpa [#allocation6], 0
    %15 = vsyncpa [#allocation8], 0
    // Predicated region
    $region2: #{_lambda_.3} parent=1 // pred_check
      _
    $region3: #{_lambda_.3} parent=1 // pred_check_branch
      %17 = sbr.rel (0) target = $region5
    $region4: #{_lambda_.3} parent=1 // pred_region
      _
    $region5: #{_lambda_.3} parent=1 // pred_fallthru
      _
    // Predicated region
    $region6: #{_lambda_.3} parent=1 // pred_check
      _
    $region7: #{_lambda_.3} parent=1 // pred_check_branch
      %19 = sbr.rel (0) target = $region9
    $region8: #{_lambda_.3} parent=1 // pred_region
      %21 = vsyncadd [#allocation6], 0
      %s22 = sshll.u32 %s1, 4
      %s23 = int_to_ptr.hbm [resolvable:$true] %s22
      %s24 = sshll.u32 [#allocation5], 4
      %s25 = int_to_ptr.vmem [resolvable:$true] %s24
      %30 = dma.hbm_to_vmem [thread:$0]  %s23, 4096, %s25, [#allocation6], 256, 256, 16
    $region9: #{_lambda_.3} parent=1 // pred_fallthru
      _
    // Predicated region
    $region10: #{_lambda_.3} parent=1 // pred_check
      _
    $region11: #{_lambda_.3} parent=1 // pred_check_branch
      %32 = sbr.rel (0) target = $region13
    $region12: #{_lambda_.3} parent=1 // pred_region
      _
    $region13: #{_lambda_.3} parent=1 // pred_fallthru
      _
    // Predicated region
    $region14: #{_lambda_.3} parent=1 // pred_check
      _
    $region15: #{_lambda_.3} parent=1 // pred_check_branch
      %34 = sbr.rel (0) target = $region17
    $region16: #{_lambda_.3} parent=1 // pred_region
      _
    $region17: #{_lambda_.3} parent=1 // pred_fallthru
      _
    // Predicated region
    $region18: #{_lambda_.3} parent=1 // pred_check
      _
    $region19: #{_lambda_.3} parent=1 // pred_check_branch
      %36 = sbr.rel (0) target = $region21
    $region20: #{_lambda_.3} parent=1 // pred_region
      %38 = vsyncadd [#allocation8], 0
      %s39 = sshll.u32 %s4, 4
      %s40 = int_to_ptr.hbm [resolvable:$true] %s39
      %s41 = sshll.u32 [#allocation7], 4
      %s42 = int_to_ptr.vmem [resolvable:$true] %s41
      %47 = dma.hbm_to_vmem [thread:$0]  %s40, 1024, %s42, [#allocation8], 64, 64, 4
    $region21: #{_lambda_.3} parent=1 // pred_fallthru
      _
    // Predicated region
    $region22: #{_lambda_.3} parent=1 // pred_check
      _
    $region23: #{_lambda_.3} parent=1 // pred_check_branch
      %49 = sbr.rel (0) target = $region25
    $region24: #{_lambda_.3} parent=1 // pred_region
      _
    $region25: #{_lambda_.3} parent=1 // pred_fallthru
      _
    // Predicated region
    $region26: #{_lambda_.3} parent=1 // pred_check
      _
    $region27: #{_lambda_.3} parent=1 // pred_check_branch
      %51 = sbr.rel (0) target = $region29
    $region28: #{_lambda_.3} parent=1 // pred_region
      %53 = dma.done [#allocation6], 4096
    $region29: #{_lambda_.3} parent=1 // pred_fallthru
      _
    // Predicated region
    $region30: #{_lambda_.3} parent=1 // pred_check
      _
    $region31: #{_lambda_.3} parent=1 // pred_check_branch
      %55 = sbr.rel (0) target = $region33
    $region32: #{_lambda_.3} parent=1 // pred_region
      %57 = dma.done [#allocation8], 1024
    $region33: #{_lambda_.3} parent=1 // pred_fallthru
      _
    %p58 = scmp.eq.s32.totalorder 0, 0
    // Predicated region
    $region34: #{_lambda_.3} parent=1 // pred_check
      %p59 = pneg %p58
    $region35: #{_lambda_.3} parent=1 // pred_check_branch
      %61 = sbr.rel (%p59) target = $region37
    $region36: #{_lambda_.3} parent=1 // pred_region
      %62 = vst [vmem:[#allocation2] sm:$0xff] 0.0
      %63 = vst [vmem:[#allocation3] sm:$0xff] 0.0
    $region37: #{_lambda_.3} parent=1 // pred_fallthru
      _
    %v64 = vld [vmem:[#allocation2] sm:$0xff]
    %v65 = vld [vmem:[#allocation3] sm:$0xff]
    %v66 = vld [vmem:[%s0] sm:$0xff]
    %v67 = vld [vmem:[%s0 + $0x8] sm:$0xff]
    %v68 = vld [vmem:[%s0 + $0x10] sm:$0xff]
    %v69 = vld [vmem:[%s0 + $0x18] sm:$0xff]
    %v70 = vpack.c.bf16 %v64, %v64
    %v71 = vld [vmem:[#allocation5] sm:$0xff]
    %v72 = vld [vmem:[#allocation5 + $0x8] sm:$0xff]
    %v73 = vld [vmem:[#allocation5 + $0x10] sm:$0xff]
    %v74 = vld [vmem:[#allocation5 + $0x18] sm:$0xff]
    %v75 = vld [vmem:[#allocation5 + $0x20] sm:$0xff]
    %v76 = vld [vmem:[#allocation5 + $0x28] sm:$0xff]
    %v77 = vld [vmem:[#allocation5 + $0x30] sm:$0xff]
    %v78 = vld [vmem:[#allocation5 + $0x38] sm:$0xff]
    %v79 = vld [vmem:[#allocation5 + $0x40] sm:$0xff]
    %v80 = vld [vmem:[#allocation5 + $0x48] sm:$0xff]
    %v81 = vld [vmem:[#allocation5 + $0x50] sm:$0xff]
    %v82 = vld [vmem:[#allocation5 + $0x58] sm:$0xff]
    %v83 = vld [vmem:[#allocation5 + $0x60] sm:$0xff]
    %v84 = vld [vmem:[#allocation5 + $0x68] sm:$0xff]
    %v85 = vld [vmem:[#allocation5 + $0x70] sm:$0xff]
    %v86 = vld [vmem:[#allocation5 + $0x78] sm:$0xff]
    %v87 = vld [vmem:[#allocation5 + $0x80] sm:$0xff]
    %v88 = vld [vmem:[#allocation5 + $0x88] sm:$0xff]
    %v89 = vld [vmem:[#allocation5 + $0x90] sm:$0xff]
    %v90 = vld [vmem:[#allocation5 + $0x98] sm:$0xff]
    %v91 = vld [vmem:[#allocation5 + $0xa0] sm:$0xff]
    %v92 = vld [vmem:[#allocation5 + $0xa8] sm:$0xff]
    %v93 = vld [vmem:[#allocation5 + $0xb0] sm:$0xff]
    %v94 = vld [vmem:[#allocation5 + $0xb8] sm:$0xff]
    %v95 = vld [vmem:[#allocation5 + $0xc0] sm:$0xff]
    %v96 = vld [vmem:[#allocation5 + $0xc8] sm:$0xff]
    %v97 = vld [vmem:[#allocation5 + $0xd0] sm:$0xff]
    %v98 = vld [vmem:[#allocation5 + $0xd8] sm:$0xff]
    %v99 = vld [vmem:[#allocation5 + $0xe0] sm:$0xff]
    %v100 = vld [vmem:[#allocation5 + $0xe8] sm:$0xff]
    %v101 = vld [vmem:[#allocation5 + $0xf0] sm:$0xff]
    %v102 = vld [vmem:[#allocation5 + $0xf8] sm:$0xff]
    %v135 = vunpack.c.l.b16 %v71
    %v136 = vunpack.c.h.b16 %v71
    %v137 = vunpack.c.l.b16 %v72
    %v138 = vunpack.c.h.b16 %v72
    %v139 = vunpack.c.l.b16 %v73
    %v140 = vunpack.c.h.b16 %v73
    %v141 = vunpack.c.l.b16 %v74
    %v142 = vunpack.c.h.b16 %v74
    %v143 = vunpack.c.l.b16 %v75
    %v144 = vunpack.c.h.b16 %v75
    %v145 = vunpack.c.l.b16 %v76
    %v146 = vunpack.c.h.b16 %v76
    %v147 = vunpack.c.l.b16 %v77
    %v148 = vunpack.c.h.b16 %v77
    %v149 = vunpack.c.l.b16 %v78
    %v150 = vunpack.c.h.b16 %v78
    %v151 = vunpack.c.l.b16 %v79
    %v152 = vunpack.c.h.b16 %v79
    %v153 = vunpack.c.l.b16 %v80
    %v154 = vunpack.c.h.b16 %v80
    %v155 = vunpack.c.l.b16 %v81
    %v156 = vunpack.c.h.b16 %v81
    %v157 = vunpack.c.l.b16 %v82
    %v158 = vunpack.c.h.b16 %v82
    %v159 = vunpack.c.l.b16 %v83
    %v160 = vunpack.c.h.b16 %v83
    %v161 = vunpack.c.l.b16 %v84
    %v162 = vunpack.c.h.b16 %v84
    %v163 = vunpack.c.l.b16 %v85
    %v164 = vunpack.c.h.b16 %v85
    %v165 = vunpack.c.l.b16 %v86
    %v166 = vunpack.c.h.b16 %v86
    %v167 = vunpack.c.l.b16 %v87
    %v168 = vunpack.c.h.b16 %v87
    %v169 = vunpack.c.l.b16 %v88
    %v170 = vunpack.c.h.b16 %v88
    %v171 = vunpack.c.l.b16 %v89
    %v172 = vunpack.c.h.b16 %v89
    %v173 = vunpack.c.l.b16 %v90
    %v174 = vunpack.c.h.b16 %v90
    %v175 = vunpack.c.l.b16 %v91
    %v176 = vunpack.c.h.b16 %v91
    %v177 = vunpack.c.l.b16 %v92
    %v178 = vunpack.c.h.b16 %v92
    %v179 = vunpack.c.l.b16 %v93
    %v180 = vunpack.c.h.b16 %v93
    %v181 = vunpack.c.l.b16 %v94
    %v182 = vunpack.c.h.b16 %v94
    %v183 = vunpack.c.l.b16 %v95
    %v184 = vunpack.c.h.b16 %v95
    %v185 = vunpack.c.l.b16 %v96
    %v186 = vunpack.c.h.b16 %v96
    %v187 = vunpack.c.l.b16 %v97
    %v188 = vunpack.c.h.b16 %v97
    %v189 = vunpack.c.l.b16 %v98
    %v190 = vunpack.c.h.b16 %v98
    %v191 = vunpack.c.l.b16 %v99
    %v192 = vunpack.c.h.b16 %v99
    %v193 = vunpack.c.l.b16 %v100
    %v194 = vunpack.c.h.b16 %v100
    %v195 = vunpack.c.l.b16 %v101
    %v196 = vunpack.c.h.b16 %v101
    %v197 = vunpack.c.l.b16 %v102
    %v198 = vunpack.c.h.b16 %v102
    %v199 = vpack.c.b16 %v139, %v135
    %v200 = vpack.c.b16 %v140, %v136
    %v201 = vpack.c.b16 %v141, %v137
    %v202 = vpack.c.b16 %v142, %v138
    %v203 = vpack.c.b16 %v147, %v143
    %v204 = vpack.c.b16 %v148, %v144
    %v205 = vpack.c.b16 %v149, %v145
    %v206 = vpack.c.b16 %v150, %v146
    %v207 = vpack.c.b16 %v155, %v151
    %v208 = vpack.c.b16 %v156, %v152
    %v209 = vpack.c.b16 %v157, %v153
    %v210 = vpack.c.b16 %v158, %v154
    %v211 = vpack.c.b16 %v163, %v159
    %v212 = vpack.c.b16 %v164, %v160
    %v213 = vpack.c.b16 %v165, %v161
    %v214 = vpack.c.b16 %v166, %v162
    %v215 = vpack.c.b16 %v171, %v167
    %v216 = vpack.c.b16 %v172, %v168
    %v217 = vpack.c.b16 %v173, %v169
    %v218 = vpack.c.b16 %v174, %v170
    %v219 = vpack.c.b16 %v179, %v175
    %v220 = vpack.c.b16 %v180, %v176
    %v221 = vpack.c.b16 %v181, %v177
    %v222 = vpack.c.b16 %v182, %v178
    %v223 = vpack.c.b16 %v187, %v183
    %v224 = vpack.c.b16 %v188, %v184
    %v225 = vpack.c.b16 %v189, %v185
    %v226 = vpack.c.b16 %v190, %v186
    %v227 = vpack.c.b16 %v195, %v191
    %v228 = vpack.c.b16 %v196, %v192
    %v229 = vpack.c.b16 %v197, %v193
    %v230 = vpack.c.b16 %v198, %v194
    %263 = vmatpush.bf16.msra.mxu0 %v227
    %264 = vmatpush.bf16.msra.mxu0 %v223
    %265 = vmatpush.bf16.msra.mxu0 %v219
    %266 = vmatpush.bf16.msra.mxu0 %v215
    %267 = vmatpush.bf16.msra.mxu0 %v211
    %268 = vmatpush.bf16.msra.mxu0 %v207
    %269 = vmatpush.bf16.msra.mxu0 %v203
    %270 = vmatpush.bf16.msra.mxu0 %v199
    %271 = vmatmul.bf16.gmra.mxu0 %v70
    %v272 = vpop.f32.mrf.mxu0
    %v273 = vadd.f32 0.0, %v272
    %v274 = vpop.f32.mrf.mxu0
    %275 = vdwg.mxu0
    %276 = vmatpush.bf16.msra.mxu0 %v228
    %277 = vmatpush.bf16.msra.mxu0 %v224
    %278 = vmatpush.bf16.msra.mxu0 %v220
    %279 = vmatpush.bf16.msra.mxu0 %v216
    %280 = vmatpush.bf16.msra.mxu0 %v212
    %281 = vmatpush.bf16.msra.mxu0 %v208
    %282 = vmatpush.bf16.msra.mxu0 %v204
    %283 = vmatpush.bf16.msra.mxu0 %v200
    %284 = vmatmul.bf16.gmra.mxu0 %v70
    %v285 = vpop.f32.mrf.mxu0
    %v286 = vadd.f32 0.0, %v285
    %v287 = vpop.f32.mrf.mxu0
    %288 = vdwg.mxu0
    %289 = vmatpush.bf16.msra.mxu0 %v229
    %290 = vmatpush.bf16.msra.mxu0 %v225
    %291 = vmatpush.bf16.msra.mxu0 %v221
    %292 = vmatpush.bf16.msra.mxu0 %v217
    %293 = vmatpush.bf16.msra.mxu0 %v213
    %294 = vmatpush.bf16.msra.mxu0 %v209
    %295 = vmatpush.bf16.msra.mxu0 %v205
    %296 = vmatpush.bf16.msra.mxu0 %v201
    %297 = vmatmul.bf16.gmra.mxu0 %v70
    %v298 = vpop.f32.mrf.mxu0
    %v299 = vadd.f32 0.0, %v298
    %v300 = vpop.f32.mrf.mxu0
    %301 = vdwg.mxu0
    %302 = vmatpush.bf16.msra.mxu0 %v230
    %303 = vmatpush.bf16.msra.mxu0 %v226
    %304 = vmatpush.bf16.msra.mxu0 %v222
    %305 = vmatpush.bf16.msra.mxu0 %v218
    %306 = vmatpush.bf16.msra.mxu0 %v214
    %307 = vmatpush.bf16.msra.mxu0 %v210
    %308 = vmatpush.bf16.msra.mxu0 %v206
    %309 = vmatpush.bf16.msra.mxu0 %v202
    %310 = vmatmul.bf16.gmra.mxu0 %v70
    %v311 = vpop.f32.mrf.mxu0
    %v312 = vadd.f32 0.0, %v311
    %v313 = vpop.f32.mrf.mxu0
    %314 = vdwg.mxu0
    %v315 = vadd.f32 %v66, %v273
    %v316 = vadd.f32 %v67, %v286
    %v317 = vadd.f32 %v68, %v299
    %v318 = vadd.f32 %v69, %v312
    %v319 = vxor.u32 %v315, 2147483648
    %v320 = vxor.u32 %v316, 2147483648
    %v321 = vxor.u32 %v317, 2147483648
    %v322 = vmul.f32 %v319, 1.442695
    %v323 = vpow.pop %v322
    %v324 = vmul.f32 %v320, 1.442695
    %v325 = vpow.pop %v324
    %v326 = vmul.f32 %v321, 1.442695
    %v327 = vpow.pop %v326
    %v328 = vadd.f32 %v323, 1.0
    %v329 = vadd.f32 %v325, 1.0
    %v330 = vadd.f32 %v327, 1.0
    %v331 = vrcp.pop %v328
    %v332 = vmul.f32 %v328, %v331
    %v333 = vsub.f32 1.0, %v332
    %v334 = vmul.f32 %v331, %v333
    %v335 = vadd.f32 %v331, %v334
    %vm336 = vweird.f32 %v328
    %vm337 = vweird.f32 %v331
    %vm338 = vmor %vm336, %vm337
    %v339 = vsel %vm338, %v331, %v335
    %v340 = vand.u32 2147483647, %v328
    %vm341 = vcmp.eq.f32.partialorder %v340, 8.507059e+37
    %v342 = vand.u32 %v328, 2147483648
    %v343 = vor.u32 1.1754944e-38, %v342
    %v344 = vsel %vm341, %v343, %v339
    %v345 = vmul.f32 1.0, %v344
    %v346 = vrcp.pop %v329
    %v347 = vmul.f32 %v329, %v346
    %v348 = vsub.f32 1.0, %v347
    %v349 = vmul.f32 %v346, %v348
    %v350 = vadd.f32 %v346, %v349
    %vm351 = vweird.f32 %v329
    %vm352 = vweird.f32 %v346
    %vm353 = vmor %vm351, %vm352
    %v354 = vsel %vm353, %v346, %v350
    %v355 = vand.u32 2147483647, %v329
    %vm356 = vcmp.eq.f32.partialorder %v355, 8.507059e+37
    %v357 = vand.u32 %v329, 2147483648
    %v358 = vor.u32 1.1754944e-38, %v357
    %v359 = vsel %vm356, %v358, %v354
    %v360 = vmul.f32 1.0, %v359
    %v361 = vrcp.pop %v330
    %v362 = vmul.f32 %v330, %v361
    %v363 = vsub.f32 1.0, %v362
    %v364 = vmul.f32 %v361, %v363
    %v365 = vadd.f32 %v361, %v364
    %vm366 = vweird.f32 %v330
    %vm367 = vweird.f32 %v361
    %vm368 = vmor %vm366, %vm367
    %v369 = vsel %vm368, %v361, %v365
    %v370 = vand.u32 2147483647, %v330
    %vm371 = vcmp.eq.f32.partialorder %v370, 8.507059e+37
    %v372 = vand.u32 %v330, 2147483648
    %v373 = vor.u32 1.1754944e-38, %v372
    %v374 = vsel %vm371, %v373, %v369
    %v375 = vmul.f32 1.0, %v374
    %v376 = vtanh.pop %v318
    %v377 = vmul.f32 %v360, %v65
    %v378 = vmul.f32 %v345, %v376
    %v379 = vadd.f32 %v377, %v378
    %v380 = vtanh.pop %v379
    %v381 = vmul.f32 %v375, %v380
    %v382 = vpack.c.bf16 %v381, %v381
    %383 = vst [vmem:[#allocation4] sm:$0xf] %v382
    %s384 = scalar_lea.vmem %s0, 32
    %v385 = vld [vmem:[%s384] sm:$0xff]
    %v386 = vld [vmem:[%s384 + $0x8] sm:$0xff]
    %v387 = vld [vmem:[%s384 + $0x10] sm:$0xff]
    %v388 = vld [vmem:[%s384 + $0x18] sm:$0xff]
    %v389 = vld [vmem:[#allocation5] sm:$0xff]
    %v390 = vld [vmem:[#allocation5 + $0x8] sm:$0xff]
    %v391 = vld [vmem:[#allocation5 + $0x10] sm:$0xff]
    %v392 = vld [vmem:[#allocation5 + $0x18] sm:$0xff]
    %v393 = vld [vmem:[#allocation5 + $0x20] sm:$0xff]
    %v394 = vld [vmem:[#allocation5 + $0x28] sm:$0xff]
    %v395 = vld [vmem:[#allocation5 + $0x30] sm:$0xff]
    %v396 = vld [vmem:[#allocation5 + $0x38] sm:$0xff]
    %v397 = vld [vmem:[#allocation5 + $0x40] sm:$0xff]
    %v398 = vld [vmem:[#allocation5 + $0x48] sm:$0xff]
    %v399 = vld [vmem:[#allocation5 + $0x50] sm:$0xff]
    %v400 = vld [vmem:[#allocation5 + $0x58] sm:$0xff]
    %v401 = vld [vmem:[#allocation5 + $0x60] sm:$0xff]
    %v402 = vld [vmem:[#allocation5 + $0x68] sm:$0xff]
    %v403 = vld [vmem:[#allocation5 + $0x70] sm:$0xff]
    %v404 = vld [vmem:[#allocation5 + $0x78] sm:$0xff]
    %v405 = vld [vmem:[#allocation5 + $0x80] sm:$0xff]
    %v406 = vld [vmem:[#allocation5 + $0x88] sm:$0xff]
    %v407 = vld [vmem:[#allocation5 + $0x90] sm:$0xff]
    %v408 = vld [vmem:[#allocation5 + $0x98] sm:$0xff]
    %v409 = vld [vmem:[#allocation5 + $0xa0] sm:$0xff]
    %v410 = vld [vmem:[#allocation5 + $0xa8] sm:$0xff]
    %v411 = vld [vmem:[#allocation5 + $0xb0] sm:$0xff]
    %v412 = vld [vmem:[#allocation5 + $0xb8] sm:$0xff]
    %v413 = vld [vmem:[#allocation5 + $0xc0] sm:$0xff]
    %v414 = vld [vmem:[#allocation5 + $0xc8] sm:$0xff]
    %v415 = vld [vmem:[#allocation5 + $0xd0] sm:$0xff]
    %v416 = vld [vmem:[#allocation5 + $0xd8] sm:$0xff]
    %v417 = vld [vmem:[#allocation5 + $0xe0] sm:$0xff]
    %v418 = vld [vmem:[#allocation5 + $0xe8] sm:$0xff]
    %v419 = vld [vmem:[#allocation5 + $0xf0] sm:$0xff]
    %v420 = vld [vmem:[#allocation5 + $0xf8] sm:$0xff]
    %v453 = vunpack.c.l.b16 %v389
    %v454 = vunpack.c.h.b16 %v389
    %v455 = vunpack.c.l.b16 %v390
    %v456 = vunpack.c.h.b16 %v390
    %v457 = vunpack.c.l.b16 %v391
    %v458 = vunpack.c.h.b16 %v391
    %v459 = vunpack.c.l.b16 %v392
    %v460 = vunpack.c.h.b16 %v392
    %v461 = vunpack.c.l.b16 %v393
    %v462 = vunpack.c.h.b16 %v393
    %v463 = vunpack.c.l.b16 %v394
    %v464 = vunpack.c.h.b16 %v394
    %v465 = vunpack.c.l.b16 %v395
    %v466 = vunpack.c.h.b16 %v395
    %v467 = vunpack.c.l.b16 %v396
    %v468 = vunpack.c.h.b16 %v396
    %v469 = vunpack.c.l.b16 %v397
    %v470 = vunpack.c.h.b16 %v397
    %v471 = vunpack.c.l.b16 %v398
    %v472 = vunpack.c.h.b16 %v398
    %v473 = vunpack.c.l.b16 %v399
    %v474 = vunpack.c.h.b16 %v399
    %v475 = vunpack.c.l.b16 %v400
    %v476 = vunpack.c.h.b16 %v400
    %v477 = vunpack.c.l.b16 %v401
    %v478 = vunpack.c.h.b16 %v401
    %v479 = vunpack.c.l.b16 %v402
    %v480 = vunpack.c.h.b16 %v402
    %v481 = vunpack.c.l.b16 %v403
    %v482 = vunpack.c.h.b16 %v403
    %v483 = vunpack.c.l.b16 %v404
    %v484 = vunpack.c.h.b16 %v404
    %v485 = vunpack.c.l.b16 %v405
    %v486 = vunpack.c.h.b16 %v405
    %v487 = vunpack.c.l.b16 %v406
    %v488 = vunpack.c.h.b16 %v406
    %v489 = vunpack.c.l.b16 %v407
    %v490 = vunpack.c.h.b16 %v407
    %v491 = vunpack.c.l.b16 %v408
    %v492 = vunpack.c.h.b16 %v408
    %v493 = vunpack.c.l.b16 %v409
    %v494 = vunpack.c.h.b16 %v409
    %v495 = vunpack.c.l.b16 %v410
    %v496 = vunpack.c.h.b16 %v410
    %v497 = vunpack.c.l.b16 %v411
    %v498 = vunpack.c.h.b16 %v411
    %v499 = vunpack.c.l.b16 %v412
    %v500 = vunpack.c.h.b16 %v412
    %v501 = vunpack.c.l.b16 %v413
    %v502 = vunpack.c.h.b16 %v413
    %v503 = vunpack.c.l.b16 %v414
    %v504 = vunpack.c.h.b16 %v414
    %v505 = vunpack.c.l.b16 %v415
    %v506 = vunpack.c.h.b16 %v415
    %v507 = vunpack.c.l.b16 %v416
    %v508 = vunpack.c.h.b16 %v416
    %v509 = vunpack.c.l.b16 %v417
    %v510 = vunpack.c.h.b16 %v417
    %v511 = vunpack.c.l.b16 %v418
    %v512 = vunpack.c.h.b16 %v418
    %v513 = vunpack.c.l.b16 %v419
    %v514 = vunpack.c.h.b16 %v419
    %v515 = vunpack.c.l.b16 %v420
    %v516 = vunpack.c.h.b16 %v420
    %v517 = vpack.c.b16 %v457, %v453
    %v518 = vpack.c.b16 %v458, %v454
    %v519 = vpack.c.b16 %v459, %v455
    %v520 = vpack.c.b16 %v460, %v456
    %v521 = vpack.c.b16 %v465, %v461
    %v522 = vpack.c.b16 %v466, %v462
    %v523 = vpack.c.b16 %v467, %v463
    %v524 = vpack.c.b16 %v468, %v464
    %v525 = vpack.c.b16 %v473, %v469
    %v526 = vpack.c.b16 %v474, %v470
    %v527 = vpack.c.b16 %v475, %v471
    %v528 = vpack.c.b16 %v476, %v472
    %v529 = vpack.c.b16 %v481, %v477
    %v530 = vpack.c.b16 %v482, %v478
    %v531 = vpack.c.b16 %v483, %v479
    %v532 = vpack.c.b16 %v484, %v480
    %v533 = vpack.c.b16 %v489, %v485
    %v534 = vpack.c.b16 %v490, %v486
    %v535 = vpack.c.b16 %v491, %v487
    %v536 = vpack.c.b16 %v492, %v488
    %v537 = vpack.c.b16 %v497, %v493
    %v538 = vpack.c.b16 %v498, %v494
    %v539 = vpack.c.b16 %v499, %v495
    %v540 = vpack.c.b16 %v500, %v496
    %v541 = vpack.c.b16 %v505, %v501
    %v542 = vpack.c.b16 %v506, %v502
    %v543 = vpack.c.b16 %v507, %v503
    %v544 = vpack.c.b16 %v508, %v504
    %v545 = vpack.c.b16 %v513, %v509
    %v546 = vpack.c.b16 %v514, %v510
    %v547 = vpack.c.b16 %v515, %v511
    %v548 = vpack.c.b16 %v516, %v512
    %581 = vmatpush.bf16.msra.mxu0 %v545
    %582 = vmatpush.bf16.msra.mxu0 %v541
    %583 = vmatpush.bf16.msra.mxu0 %v537
    %584 = vmatpush.bf16.msra.mxu0 %v533
    %585 = vmatpush.bf16.msra.mxu0 %v529
    %586 = vmatpush.bf16.msra.mxu0 %v525
    %587 = vmatpush.bf16.msra.mxu0 %v521
    %588 = vmatpush.bf16.msra.mxu0 %v517
    %589 = vmatmul.bf16.gmra.mxu0 %v382
    %v590 = vpop.f32.mrf.mxu0
    %v591 = vadd.f32 0.0, %v590
    %v592 = vpop.f32.mrf.mxu0
    %593 = vdwg.mxu0
    %594 = vmatpush.bf16.msra.mxu0 %v546
    %595 = vmatpush.bf16.msra.mxu0 %v542
    %596 = vmatpush.bf16.msra.mxu0 %v538
    %597 = vmatpush.bf16.msra.mxu0 %v534
    %598 = vmatpush.bf16.msra.mxu0 %v530
    %599 = vmatpush.bf16.msra.mxu0 %v526
    %600 = vmatpush.bf16.msra.mxu0 %v522
    %601 = vmatpush.bf16.msra.mxu0 %v518
    %602 = vmatmul.bf16.gmra.mxu0 %v382
    %v603 = vpop.f32.mrf.mxu0
    %v604 = vadd.f32 0.0, %v603
    %v605 = vpop.f32.mrf.mxu0
    %606 = vdwg.mxu0
    %607 = vmatpush.bf16.msra.mxu0 %v547
    %608 = vmatpush.bf16.msra.mxu0 %v543
    %609 = vmatpush.bf16.msra.mxu0 %v539
    %610 = vmatpush.bf16.msra.mxu0 %v535
    %611 = vmatpush.bf16.msra.mxu0 %v531
    %612 = vmatpush.bf16.msra.mxu0 %v527
    %613 = vmatpush.bf16.msra.mxu0 %v523
    %614 = vmatpush.bf16.msra.mxu0 %v519
    %615 = vmatmul.bf16.gmra.mxu0 %v382
    %v616 = vpop.f32.mrf.mxu0
    %v617 = vadd.f32 0.0, %v616
    %v618 = vpop.f32.mrf.mxu0
    %619 = vdwg.mxu0
    %620 = vmatpush.bf16.msra.mxu0 %v548
    %621 = vmatpush.bf16.msra.mxu0 %v544
    %622 = vmatpush.bf16.msra.mxu0 %v540
    %623 = vmatpush.bf16.msra.mxu0 %v536
    %624 = vmatpush.bf16.msra.mxu0 %v532
    %625 = vmatpush.bf16.msra.mxu0 %v528
    %626 = vmatpush.bf16.msra.mxu0 %v524
    %627 = vmatpush.bf16.msra.mxu0 %v520
    %628 = vmatmul.bf16.gmra.mxu0 %v382
    %v629 = vpop.f32.mrf.mxu0
    %v630 = vadd.f32 0.0, %v629
    %v631 = vpop.f32.mrf.mxu0
    %632 = vdwg.mxu0
    %v633 = vadd.f32 %v385, %v591
    %v634 = vadd.f32 %v386, %v604
    %v635 = vadd.f32 %v387, %v617
    %v636 = vadd.f32 %v388, %v630
    %v637 = vxor.u32 %v633, 2147483648
    %v638 = vxor.u32 %v634, 2147483648
    %v639 = vxor.u32 %v635, 2147483648
    %v640 = vmul.f32 %v637, 1.442695
    %v641 = vpow.pop %v640
    %v642 = vmul.f32 %v638, 1.442695
    %v643 = vpow.pop %v642
    %v644 = vmul.f32 %v639, 1.442695
    %v645 = vpow.pop %v644
    %v646 = vadd.f32 %v641, 1.0
    %v647 = vadd.f32 %v643, 1.0
    %v648 = vadd.f32 %v645, 1.0
    %v649 = vrcp.pop %v646
    %v650 = vmul.f32 %v646, %v649
    %v651 = vsub.f32 1.0, %v650
    %v652 = vmul.f32 %v649, %v651
    %v653 = vadd.f32 %v649, %v652
    %vm654 = vweird.f32 %v646
    %vm655 = vweird.f32 %v649
    %vm656 = vmor %vm654, %vm655
    %v657 = vsel %vm656, %v649, %v653
    %v658 = vand.u32 2147483647, %v646
    %vm659 = vcmp.eq.f32.partialorder %v658, 8.507059e+37
    %v660 = vand.u32 %v646, 2147483648
    %v661 = vor.u32 1.1754944e-38, %v660
    %v662 = vsel %vm659, %v661, %v657
    %v663 = vmul.f32 1.0, %v662
    %v664 = vrcp.pop %v647
    %v665 = vmul.f32 %v647, %v664
    %v666 = vsub.f32 1.0, %v665
    %v667 = vmul.f32 %v664, %v666
    %v668 = vadd.f32 %v664, %v667
    %vm669 = vweird.f32 %v647
    %vm670 = vweird.f32 %v664
    %vm671 = vmor %vm669, %vm670
    %v672 = vsel %vm671, %v664, %v668
    %v673 = vand.u32 2147483647, %v647
    %vm674 = vcmp.eq.f32.partialorder %v673, 8.507059e+37
    %v675 = vand.u32 %v647, 2147483648
    %v676 = vor.u32 1.1754944e-38, %v675
    %v677 = vsel %vm674, %v676, %v672
    %v678 = vmul.f32 1.0, %v677
    %v679 = vrcp.pop %v648
    %v680 = vmul.f32 %v648, %v679
    %v681 = vsub.f32 1.0, %v680
    %v682 = vmul.f32 %v679, %v681
    %v683 = vadd.f32 %v679, %v682
    %vm684 = vweird.f32 %v648
    %vm685 = vweird.f32 %v679
    %vm686 = vmor %vm684, %vm685
    %v687 = vsel %vm686, %v679, %v683
    %v688 = vand.u32 2147483647, %v648
    %vm689 = vcmp.eq.f32.partialorder %v688, 8.507059e+37
    %v690 = vand.u32 %v648, 2147483648
    %v691 = vor.u32 1.1754944e-38, %v690
    %v692 = vsel %vm689, %v691, %v687
    %v693 = vmul.f32 1.0, %v692
    %v694 = vtanh.pop %v636
    %v695 = vmul.f32 %v678, %v379
    %v696 = vmul.f32 %v663, %v694
    %v697 = vadd.f32 %v695, %v696
    %v698 = vtanh.pop %v697
    %v699 = vmul.f32 %v693, %v698
    %v700 = vpack.c.bf16 %v699, %v699
    %701 = vst [vmem:[#allocation4 + $0x4] sm:$0xf] %v700
    %s702 = scalar_lea.vmem %s0, 64
    %v703 = vld [vmem:[%s702] sm:$0xff]
    %v704 = vld [vmem:[%s702 + $0x8] sm:$0xff]
    %v705 = vld [vmem:[%s702 + $0x10] sm:$0xff]
    %v706 = vld [vmem:[%s702 + $0x18] sm:$0xff]
    %v707 = vld [vmem:[#allocation5] sm:$0xff]
    %v708 = vld [vmem:[#allocation5 + $0x8] sm:$0xff]
    %v709 = vld [vmem:[#allocation5 + $0x10] sm:$0xff]
    %v710 = vld [vmem:[#allocation5 + $0x18] sm:$0xff]
    %v711 = vld [vmem:[#allocation5 + $0x20] sm:$0xff]
    %v712 = vld [vmem:[#allocation5 + $0x28] sm:$0xff]
    %v713 = vld [vmem:[#allocation5 + $0x30] sm:$0xff]
    %v714 = vld [vmem:[#allocation5 + $0x38] sm:$0xff]
    %v715 = vld [vmem:[#allocation5 + $0x40] sm:$0xff]
    %v716 = vld [vmem:[#allocation5 + $0x48] sm:$0xff]
    %v717 = vld [vmem:[#allocation5 + $0x50] sm:$0xff]
    %v718 = vld [vmem:[#allocation5 + $0x58] sm:$0xff]
    %v719 = vld [vmem:[#allocation5 + $0x60] sm:$0xff]
    %v720 = vld [vmem:[#allocation5 + $0x68] sm:$0xff]
    %v721 = vld [vmem:[#allocation5 + $0x70] sm:$0xff]
    %v722 = vld [vmem:[#allocation5 + $0x78] sm:$0xff]
    %v723 = vld [vmem:[#allocation5 + $0x80] sm:$0xff]
    %v724 = vld [vmem:[#allocation5 + $0x88] sm:$0xff]
    %v725 = vld [vmem:[#allocation5 + $0x90] sm:$0xff]
    %v726 = vld [vmem:[#allocation5 + $0x98] sm:$0xff]
    %v727 = vld [vmem:[#allocation5 + $0xa0] sm:$0xff]
    %v728 = vld [vmem:[#allocation5 + $0xa8] sm:$0xff]
    %v729 = vld [vmem:[#allocation5 + $0xb0] sm:$0xff]
    %v730 = vld [vmem:[#allocation5 + $0xb8] sm:$0xff]
    %v731 = vld [vmem:[#allocation5 + $0xc0] sm:$0xff]
    %v732 = vld [vmem:[#allocation5 + $0xc8] sm:$0xff]
    %v733 = vld [vmem:[#allocation5 + $0xd0] sm:$0xff]
    %v734 = vld [vmem:[#allocation5 + $0xd8] sm:$0xff]
    %v735 = vld [vmem:[#allocation5 + $0xe0] sm:$0xff]
    %v736 = vld [vmem:[#allocation5 + $0xe8] sm:$0xff]
    %v737 = vld [vmem:[#allocation5 + $0xf0] sm:$0xff]
    %v738 = vld [vmem:[#allocation5 + $0xf8] sm:$0xff]
    %v771 = vunpack.c.l.b16 %v707
    %v772 = vunpack.c.h.b16 %v707
    %v773 = vunpack.c.l.b16 %v708
    %v774 = vunpack.c.h.b16 %v708
    %v775 = vunpack.c.l.b16 %v709
    %v776 = vunpack.c.h.b16 %v709
    %v777 = vunpack.c.l.b16 %v710
    %v778 = vunpack.c.h.b16 %v710
    %v779 = vunpack.c.l.b16 %v711
    %v780 = vunpack.c.h.b16 %v711
    %v781 = vunpack.c.l.b16 %v712
    %v782 = vunpack.c.h.b16 %v712
    %v783 = vunpack.c.l.b16 %v713
    %v784 = vunpack.c.h.b16 %v713
    %v785 = vunpack.c.l.b16 %v714
    %v786 = vunpack.c.h.b16 %v714
    %v787 = vunpack.c.l.b16 %v715
    %v788 = vunpack.c.h.b16 %v715
    %v789 = vunpack.c.l.b16 %v716
    %v790 = vunpack.c.h.b16 %v716
    %v791 = vunpack.c.l.b16 %v717
    %v792 = vunpack.c.h.b16 %v717
    %v793 = vunpack.c.l.b16 %v718
    %v794 = vunpack.c.h.b16 %v718
    %v795 = vunpack.c.l.b16 %v719
    %v796 = vunpack.c.h.b16 %v719
    %v797 = vunpack.c.l.b16 %v720
    %v798 = vunpack.c.h.b16 %v720
    %v799 = vunpack.c.l.b16 %v721
    %v800 = vunpack.c.h.b16 %v721
    %v801 = vunpack.c.l.b16 %v722
    %v802 = vunpack.c.h.b16 %v722
    %v803 = vunpack.c.l.b16 %v723
    %v804 = vunpack.c.h.b16 %v723
    %v805 = vunpack.c.l.b16 %v724
    %v806 = vunpack.c.h.b16 %v724
    %v807 = vunpack.c.l.b16 %v725
    %v808 = vunpack.c.h.b16 %v725
    %v809 = vunpack.c.l.b16 %v726
    %v810 = vunpack.c.h.b16 %v726
    %v811 = vunpack.c.l.b16 %v727
    %v812 = vunpack.c.h.b16 %v727
    %v813 = vunpack.c.l.b16 %v728
    %v814 = vunpack.c.h.b16 %v728
    %v815 = vunpack.c.l.b16 %v729
    %v816 = vunpack.c.h.b16 %v729
    %v817 = vunpack.c.l.b16 %v730
    %v818 = vunpack.c.h.b16 %v730
    %v819 = vunpack.c.l.b16 %v731
    %v820 = vunpack.c.h.b16 %v731
    %v821 = vunpack.c.l.b16 %v732
    %v822 = vunpack.c.h.b16 %v732
    %v823 = vunpack.c.l.b16 %v733
    %v824 = vunpack.c.h.b16 %v733
    %v825 = vunpack.c.l.b16 %v734
    %v826 = vunpack.c.h.b16 %v734
    %v827 = vunpack.c.l.b16 %v735
    %v828 = vunpack.c.h.b16 %v735
    %v829 = vunpack.c.l.b16 %v736
    %v830 = vunpack.c.h.b16 %v736
    %v831 = vunpack.c.l.b16 %v737
    %v832 = vunpack.c.h.b16 %v737
    %v833 = vunpack.c.l.b16 %v738
    %v834 = vunpack.c.h.b16 %v738
    %v835 = vpack.c.b16 %v775, %v771
    %v836 = vpack.c.b16 %v776, %v772
    %v837 = vpack.c.b16 %v777, %v773
    %v838 = vpack.c.b16 %v778, %v774
    %v839 = vpack.c.b16 %v783, %v779
    %v840 = vpack.c.b16 %v784, %v780
    %v841 = vpack.c.b16 %v785, %v781
    %v842 = vpack.c.b16 %v786, %v782
    %v843 = vpack.c.b16 %v791, %v787
    %v844 = vpack.c.b16 %v792, %v788
    %v845 = vpack.c.b16 %v793, %v789
    %v846 = vpack.c.b16 %v794, %v790
    %v847 = vpack.c.b16 %v799, %v795
    %v848 = vpack.c.b16 %v800, %v796
    %v849 = vpack.c.b16 %v801, %v797
    %v850 = vpack.c.b16 %v802, %v798
    %v851 = vpack.c.b16 %v807, %v803
    %v852 = vpack.c.b16 %v808, %v804
    %v853 = vpack.c.b16 %v809, %v805
    %v854 = vpack.c.b16 %v810, %v806
    %v855 = vpack.c.b16 %v815, %v811
    %v856 = vpack.c.b16 %v816, %v812
    %v857 = vpack.c.b16 %v817, %v813
    %v858 = vpack.c.b16 %v818, %v814
    %v859 = vpack.c.b16 %v823, %v819
    %v860 = vpack.c.b16 %v824, %v820
    %v861 = vpack.c.b16 %v825, %v821
    %v862 = vpack.c.b16 %v826, %v822
    %v863 = vpack.c.b16 %v831, %v827
    %v864 = vpack.c.b16 %v832, %v828
    %v865 = vpack.c.b16 %v833, %v829
    %v866 = vpack.c.b16 %v834, %v830
    %899 = vmatpush.bf16.msra.mxu0 %v863
    %900 = vmatpush.bf16.msra.mxu0 %v859
    %901 = vmatpush.bf16.msra.mxu0 %v855
    %902 = vmatpush.bf16.msra.mxu0 %v851
    %903 = vmatpush.bf16.msra.mxu0 %v847
    %904 = vmatpush.bf16.msra.mxu0 %v843
    %905 = vmatpush.bf16.msra.mxu0 %v839
    %906 = vmatpush.bf16.msra.mxu0 %v835
    %907 = vmatmul.bf16.gmra.mxu0 %v700
    %v908 = vpop.f32.mrf.mxu0
    %v909 = vadd.f32 0.0, %v908
    %v910 = vpop.f32.mrf.mxu0
    %911 = vdwg.mxu0
    %912 = vmatpush.bf16.msra.mxu0 %v864
    %913 = vmatpush.bf16.msra.mxu0 %v860
    %914 = vmatpush.bf16.msra.mxu0 %v856
    %915 = vmatpush.bf16.msra.mxu0 %v852
    %916 = vmatpush.bf16.msra.mxu0 %v848
    %917 = vmatpush.bf16.msra.mxu0 %v844
    %918 = vmatpush.bf16.msra.mxu0 %v840
    %919 = vmatpush.bf16.msra.mxu0 %v836
    %920 = vmatmul.bf16.gmra.mxu0 %v700
    %v921 = vpop.f32.mrf.mxu0
    %v922 = vadd.f32 0.0, %v921
    %v923 = vpop.f32.mrf.mxu0
    %924 = vdwg.mxu0
    %925 = vmatpush.bf16.msra.mxu0 %v865
    %926 = vmatpush.bf16.msra.mxu0 %v861
    %927 = vmatpush.bf16.msra.mxu0 %v857
    %928 = vmatpush.bf16.msra.mxu0 %v853
    %929 = vmatpush.bf16.msra.mxu0 %v849
    %930 = vmatpush.bf16.msra.mxu0 %v845
    %931 = vmatpush.bf16.msra.mxu0 %v841
    %932 = vmatpush.bf16.msra.mxu0 %v837
    %933 = vmatmul.bf16.gmra.mxu0 %v700
    %v934 = vpop.f32.mrf.mxu0
    %v935 = vadd.f32 0.0, %v934
    %v936 = vpop.f32.mrf.mxu0
    %937 = vdwg.mxu0
    %938 = vmatpush.bf16.msra.mxu0 %v866
    %939 = vmatpush.bf16.msra.mxu0 %v862
    %940 = vmatpush.bf16.msra.mxu0 %v858
    %941 = vmatpush.bf16.msra.mxu0 %v854
    %942 = vmatpush.bf16.msra.mxu0 %v850
    %943 = vmatpush.bf16.msra.mxu0 %v846
    %944 = vmatpush.bf16.msra.mxu0 %v842
    %945 = vmatpush.bf16.msra.mxu0 %v838
    %946 = vmatmul.bf16.gmra.mxu0 %v700
    %v947 = vpop.f32.mrf.mxu0
    %v948 = vadd.f32 0.0, %v947
    %v949 = vpop.f32.mrf.mxu0
    %950 = vdwg.mxu0
    %v951 = vadd.f32 %v703, %v909
    %v952 = vadd.f32 %v704, %v922
    %v953 = vadd.f32 %v705, %v935
    %v954 = vadd.f32 %v706, %v948
    %v955 = vxor.u32 %v951, 2147483648
    %v956 = vxor.u32 %v952, 2147483648
    %v957 = vxor.u32 %v953, 2147483648
    %v958 = vmul.f32 %v955, 1.442695
    %v959 = vpow.pop %v958
    %v960 = vmul.f32 %v956, 1.442695
    %v961 = vpow.pop %v960
    %v962 = vmul.f32 %v957, 1.442695
    %v963 = vpow.pop %v962
    %v964 = vadd.f32 %v959, 1.0
    %v965 = vadd.f32 %v961, 1.0
    %v966 = vadd.f32 %v963, 1.0
    %v967 = vrcp.pop %v964
    %v968 = vmul.f32 %v964, %v967
    %v969 = vsub.f32 1.0, %v968
    %v970 = vmul.f32 %v967, %v969
    %v971 = vadd.f32 %v967, %v970
    %vm972 = vweird.f32 %v964
    %vm973 = vweird.f32 %v967
    %vm974 = vmor %vm972, %vm973
    %v975 = vsel %vm974, %v967, %v971
    %v976 = vand.u32 2147483647, %v964
    %vm977 = vcmp.eq.f32.partialorder %v976, 8.507059e+37
    %v978 = vand.u32 %v964, 2147483648
    %v979 = vor.u32 1.1754944e-38, %v978
    %v980 = vsel %vm977, %v979, %v975
    %v981 = vmul.f32 1.0, %v980
    %v982 = vrcp.pop %v965
    %v983 = vmul.f32 %v965, %v982
    %v984 = vsub.f32 1.0, %v983
    %v985 = vmul.f32 %v982, %v984
    %v986 = vadd.f32 %v982, %v985
    %vm987 = vweird.f32 %v965
    %vm988 = vweird.f32 %v982
    %vm989 = vmor %vm987, %vm988
    %v990 = vsel %vm989, %v982, %v986
    %v991 = vand.u32 2147483647, %v965
    %vm992 = vcmp.eq.f32.partialorder %v991, 8.507059e+37
    %v993 = vand.u32 %v965, 2147483648
    %v994 = vor.u32 1.1754944e-38, %v993
    %v995 = vsel %vm992, %v994, %v990
    %v996 = vmul.f32 1.0, %v995
    %v997 = vrcp.pop %v966
    %v998 = vmul.f32 %v966, %v997
    %v999 = vsub.f32 1.0, %v998
    %v1000 = vmul.f32 %v997, %v999
    %v1001 = vadd.f32 %v997, %v1000
    %vm1002 = vweird.f32 %v966
    %vm1003 = vweird.f32 %v997
    %vm1004 = vmor %vm1002, %vm1003
    %v1005 = vsel %vm1004, %v997, %v1001
    %v1006 = vand.u32 2147483647, %v966
    %vm1007 = vcmp.eq.f32.partialorder %v1006, 8.507059e+37
    %v1008 = vand.u32 %v966, 2147483648
    %v1009 = vor.u32 1.1754944e-38, %v1008
    %v1010 = vsel %vm1007, %v1009, %v1005
    %v1011 = vmul.f32 1.0, %v1010
    %v1012 = vtanh.pop %v954
    %v1013 = vmul.f32 %v996, %v697
    %v1014 = vmul.f32 %v981, %v1012
    %v1015 = vadd.f32 %v1013, %v1014
    %v1016 = vtanh.pop %v1015
    %v1017 = vmul.f32 %v1011, %v1016
    %v1018 = vpack.c.bf16 %v1017, %v1017
    %1019 = vst [vmem:[#allocation4 + $0x8] sm:$0xf] %v1018
    %s1020 = scalar_lea.vmem %s0, 96
    %v1021 = vld [vmem:[%s1020] sm:$0xff]
    %v1022 = vld [vmem:[%s1020 + $0x8] sm:$0xff]
    %v1023 = vld [vmem:[%s1020 + $0x10] sm:$0xff]
    %v1024 = vld [vmem:[%s1020 + $0x18] sm:$0xff]
    %v1025 = vld [vmem:[#allocation5] sm:$0xff]
    %v1026 = vld [vmem:[#allocation5 + $0x8] sm:$0xff]
    %v1027 = vld [vmem:[#allocation5 + $0x10] sm:$0xff]
    %v1028 = vld [vmem:[#allocation5 + $0x18] sm:$0xff]
    %v1029 = vld [vmem:[#allocation5 + $0x20] sm:$0xff]
    %v1030 = vld [vmem:[#allocation5 + $0x28] sm:$0xff]
    %v1031 = vld [vmem:[#allocation5 + $0x30] sm:$0xff]
    %v1032 = vld [vmem:[#allocation5 + $0x38] sm:$0xff]
    %v1033 = vld [vmem:[#allocation5 + $0x40] sm:$0xff]
    %v1034 = vld [vmem:[#allocation5 + $0x48] sm:$0xff]
    %v1035 = vld [vmem:[#allocation5 + $0x50] sm:$0xff]
    %v1036 = vld [vmem:[#allocation5 + $0x58] sm:$0xff]
    %v1037 = vld [vmem:[#allocation5 + $0x60] sm:$0xff]
    %v1038 = vld [vmem:[#allocation5 + $0x68] sm:$0xff]
    %v1039 = vld [vmem:[#allocation5 + $0x70] sm:$0xff]
    %v1040 = vld [vmem:[#allocation5 + $0x78] sm:$0xff]
    %v1041 = vld [vmem:[#allocation5 + $0x80] sm:$0xff]
    %v1042 = vld [vmem:[#allocation5 + $0x88] sm:$0xff]
    %v1043 = vld [vmem:[#allocation5 + $0x90] sm:$0xff]
    %v1044 = vld [vmem:[#allocation5 + $0x98] sm:$0xff]
    %v1045 = vld [vmem:[#allocation5 + $0xa0] sm:$0xff]
    %v1046 = vld [vmem:[#allocation5 + $0xa8] sm:$0xff]
    %v1047 = vld [vmem:[#allocation5 + $0xb0] sm:$0xff]
    %v1048 = vld [vmem:[#allocation5 + $0xb8] sm:$0xff]
    %v1049 = vld [vmem:[#allocation5 + $0xc0] sm:$0xff]
    %v1050 = vld [vmem:[#allocation5 + $0xc8] sm:$0xff]
    %v1051 = vld [vmem:[#allocation5 + $0xd0] sm:$0xff]
    %v1052 = vld [vmem:[#allocation5 + $0xd8] sm:$0xff]
    %v1053 = vld [vmem:[#allocation5 + $0xe0] sm:$0xff]
    %v1054 = vld [vmem:[#allocation5 + $0xe8] sm:$0xff]
    %v1055 = vld [vmem:[#allocation5 + $0xf0] sm:$0xff]
    %v1056 = vld [vmem:[#allocation5 + $0xf8] sm:$0xff]
    %v1089 = vunpack.c.l.b16 %v1025
    %v1090 = vunpack.c.h.b16 %v1025
    %v1091 = vunpack.c.l.b16 %v1026
    %v1092 = vunpack.c.h.b16 %v1026
    %v1093 = vunpack.c.l.b16 %v1027
    %v1094 = vunpack.c.h.b16 %v1027
    %v1095 = vunpack.c.l.b16 %v1028
    %v1096 = vunpack.c.h.b16 %v1028
    %v1097 = vunpack.c.l.b16 %v1029
    %v1098 = vunpack.c.h.b16 %v1029
    %v1099 = vunpack.c.l.b16 %v1030
    %v1100 = vunpack.c.h.b16 %v1030
    %v1101 = vunpack.c.l.b16 %v1031
    %v1102 = vunpack.c.h.b16 %v1031
    %v1103 = vunpack.c.l.b16 %v1032
    %v1104 = vunpack.c.h.b16 %v1032
    %v1105 = vunpack.c.l.b16 %v1033
    %v1106 = vunpack.c.h.b16 %v1033
    %v1107 = vunpack.c.l.b16 %v1034
    %v1108 = vunpack.c.h.b16 %v1034
    %v1109 = vunpack.c.l.b16 %v1035
    %v1110 = vunpack.c.h.b16 %v1035
    %v1111 = vunpack.c.l.b16 %v1036
    %v1112 = vunpack.c.h.b16 %v1036
    %v1113 = vunpack.c.l.b16 %v1037
    %v1114 = vunpack.c.h.b16 %v1037
    %v1115 = vunpack.c.l.b16 %v1038
    %v1116 = vunpack.c.h.b16 %v1038
    %v1117 = vunpack.c.l.b16 %v1039
    %v1118 = vunpack.c.h.b16 %v1039
    %v1119 = vunpack.c.l.b16 %v1040
    %v1120 = vunpack.c.h.b16 %v1040
    %v1121 = vunpack.c.l.b16 %v1041
    %v1122 = vunpack.c.h.b16 %v1041
    %v1123 = vunpack.c.l.b16 %v1042
    %v1124 = vunpack.c.h.b16 %v1042
    %v1125 = vunpack.c.l.b16 %v1043
    %v1126 = vunpack.c.h.b16 %v1043
    %v1127 = vunpack.c.l.b16 %v1044
    %v1128 = vunpack.c.h.b16 %v1044
    %v1129 = vunpack.c.l.b16 %v1045
    %v1130 = vunpack.c.h.b16 %v1045
    %v1131 = vunpack.c.l.b16 %v1046
    %v1132 = vunpack.c.h.b16 %v1046
    %v1133 = vunpack.c.l.b16 %v1047
    %v1134 = vunpack.c.h.b16 %v1047
    %v1135 = vunpack.c.l.b16 %v1048
    %v1136 = vunpack.c.h.b16 %v1048
    %v1137 = vunpack.c.l.b16 %v1049
    %v1138 = vunpack.c.h.b16 %v1049
    %v1139 = vunpack.c.l.b16 %v1050
    %v1140 = vunpack.c.h.b16 %v1050
    %v1141 = vunpack.c.l.b16 %v1051
    %v1142 = vunpack.c.h.b16 %v1051
    %v1143 = vunpack.c.l.b16 %v1052
    %v1144 = vunpack.c.h.b16 %v1052
    %v1145 = vunpack.c.l.b16 %v1053
    %v1146 = vunpack.c.h.b16 %v1053
    %v1147 = vunpack.c.l.b16 %v1054
    %v1148 = vunpack.c.h.b16 %v1054
    %v1149 = vunpack.c.l.b16 %v1055
    %v1150 = vunpack.c.h.b16 %v1055
    %v1151 = vunpack.c.l.b16 %v1056
    %v1152 = vunpack.c.h.b16 %v1056
    %v1153 = vpack.c.b16 %v1093, %v1089
    %v1154 = vpack.c.b16 %v1094, %v1090
    %v1155 = vpack.c.b16 %v1095, %v1091
    %v1156 = vpack.c.b16 %v1096, %v1092
    %v1157 = vpack.c.b16 %v1101, %v1097
    %v1158 = vpack.c.b16 %v1102, %v1098
    %v1159 = vpack.c.b16 %v1103, %v1099
    %v1160 = vpack.c.b16 %v1104, %v1100
    %v1161 = vpack.c.b16 %v1109, %v1105
    %v1162 = vpack.c.b16 %v1110, %v1106
    %v1163 = vpack.c.b16 %v1111, %v1107
    %v1164 = vpack.c.b16 %v1112, %v1108
    %v1165 = vpack.c.b16 %v1117, %v1113
    %v1166 = vpack.c.b16 %v1118, %v1114
    %v1167 = vpack.c.b16 %v1119, %v1115
    %v1168 = vpack.c.b16 %v1120, %v1116
    %v1169 = vpack.c.b16 %v1125, %v1121
    %v1170 = vpack.c.b16 %v1126, %v1122
    %v1171 = vpack.c.b16 %v1127, %v1123
    %v1172 = vpack.c.b16 %v1128, %v1124
    %v1173 = vpack.c.b16 %v1133, %v1129
    %v1174 = vpack.c.b16 %v1134, %v1130
    %v1175 = vpack.c.b16 %v1135, %v1131
    %v1176 = vpack.c.b16 %v1136, %v1132
    %v1177 = vpack.c.b16 %v1141, %v1137
    %v1178 = vpack.c.b16 %v1142, %v1138
    %v1179 = vpack.c.b16 %v1143, %v1139
    %v1180 = vpack.c.b16 %v1144, %v1140
    %v1181 = vpack.c.b16 %v1149, %v1145
    %v1182 = vpack.c.b16 %v1150, %v1146
    %v1183 = vpack.c.b16 %v1151, %v1147
    %v1184 = vpack.c.b16 %v1152, %v1148
    %1217 = vmatpush.bf16.msra.mxu0 %v1181
    %1218 = vmatpush.bf16.msra.mxu0 %v1177
    %1219 = vmatpush.bf16.msra.mxu0 %v1173
    %1220 = vmatpush.bf16.msra.mxu0 %v1169
    %1221 = vmatpush.bf16.msra.mxu0 %v1165
    %1222 = vmatpush.bf16.msra.mxu0 %v1161
    %1223 = vmatpush.bf16.msra.mxu0 %v1157
    %1224 = vmatpush.bf16.msra.mxu0 %v1153
    %1225 = vmatmul.bf16.gmra.mxu0 %v1018
    %v1226 = vpop.f32.mrf.mxu0
    %v1227 = vadd.f32 0.0, %v1226
    %v1228 = vpop.f32.mrf.mxu0
    %1229 = vdwg.mxu0
    %1230 = vmatpush.bf16.msra.mxu0 %v1182
    %1231 = vmatpush.bf16.msra.mxu0 %v1178
    %1232 = vmatpush.bf16.msra.mxu0 %v1174
    %1233 = vmatpush.bf16.msra.mxu0 %v1170
    %1234 = vmatpush.bf16.msra.mxu0 %v1166
    %1235 = vmatpush.bf16.msra.mxu0 %v1162
    %1236 = vmatpush.bf16.msra.mxu0 %v1158
    %1237 = vmatpush.bf16.msra.mxu0 %v1154
    %1238 = vmatmul.bf16.gmra.mxu0 %v1018
    %v1239 = vpop.f32.mrf.mxu0
    %v1240 = vadd.f32 0.0, %v1239
    %v1241 = vpop.f32.mrf.mxu0
    %1242 = vdwg.mxu0
    %1243 = vmatpush.bf16.msra.mxu0 %v1183
    %1244 = vmatpush.bf16.msra.mxu0 %v1179
    %1245 = vmatpush.bf16.msra.mxu0 %v1175
    %1246 = vmatpush.bf16.msra.mxu0 %v1171
    %1247 = vmatpush.bf16.msra.mxu0 %v1167
    %1248 = vmatpush.bf16.msra.mxu0 %v1163
    %1249 = vmatpush.bf16.msra.mxu0 %v1159
    %1250 = vmatpush.bf16.msra.mxu0 %v1155
    %1251 = vmatmul.bf16.gmra.mxu0 %v1018
    %v1252 = vpop.f32.mrf.mxu0
    %v1253 = vadd.f32 0.0, %v1252
    %v1254 = vpop.f32.mrf.mxu0
    %1255 = vdwg.mxu0
    %1256 = vmatpush.bf16.msra.mxu0 %v1184
    %1257 = vmatpush.bf16.msra.mxu0 %v1180
    %1258 = vmatpush.bf16.msra.mxu0 %v1176
    %1259 = vmatpush.bf16.msra.mxu0 %v1172
    %1260 = vmatpush.bf16.msra.mxu0 %v1168
    %1261 = vmatpush.bf16.msra.mxu0 %v1164
    %1262 = vmatpush.bf16.msra.mxu0 %v1160
    %1263 = vmatpush.bf16.msra.mxu0 %v1156
    %1264 = vmatmul.bf16.gmra.mxu0 %v1018
    %v1265 = vpop.f32.mrf.mxu0
    %v1266 = vadd.f32 0.0, %v1265
    %v1267 = vpop.f32.mrf.mxu0
    %1268 = vdwg.mxu0
    %v1269 = vadd.f32 %v1021, %v1227
    %v1270 = vadd.f32 %v1022, %v1240
    %v1271 = vadd.f32 %v1023, %v1253
    %v1272 = vadd.f32 %v1024, %v1266
    %v1273 = vxor.u32 %v1269, 2147483648
    %v1274 = vxor.u32 %v1270, 2147483648
    %v1275 = vxor.u32 %v1271, 2147483648
    %v1276 = vmul.f32 %v1273, 1.442695
    %v1277 = vpow.pop %v1276
    %v1278 = vmul.f32 %v1274, 1.442695
    %v1279 = vpow.pop %v1278
    %v1280 = vmul.f32 %v1275, 1.442695
    %v1281 = vpow.pop %v1280
    %v1282 = vadd.f32 %v1277, 1.0
    %v1283 = vadd.f32 %v1279, 1.0
    %v1284 = vadd.f32 %v1281, 1.0
    %v1285 = vrcp.pop %v1282
    %v1286 = vmul.f32 %v1282, %v1285
    %v1287 = vsub.f32 1.0, %v1286
    %v1288 = vmul.f32 %v1285, %v1287
    %v1289 = vadd.f32 %v1285, %v1288
    %vm1290 = vweird.f32 %v1282
    %vm1291 = vweird.f32 %v1285
    %vm1292 = vmor %vm1290, %vm1291
    %v1293 = vsel %vm1292, %v1285, %v1289
    %v1294 = vand.u32 2147483647, %v1282
    %vm1295 = vcmp.eq.f32.partialorder %v1294, 8.507059e+37
    %v1296 = vand.u32 %v1282, 2147483648
    %v1297 = vor.u32 1.1754944e-38, %v1296
    %v1298 = vsel %vm1295, %v1297, %v1293
    %v1299 = vmul.f32 1.0, %v1298
    %v1300 = vrcp.pop %v1283
    %v1301 = vmul.f32 %v1283, %v1300
    %v1302 = vsub.f32 1.0, %v1301
    %v1303 = vmul.f32 %v1300, %v1302
    %v1304 = vadd.f32 %v1300, %v1303
    %vm1305 = vweird.f32 %v1283
    %vm1306 = vweird.f32 %v1300
    %vm1307 = vmor %vm1305, %vm1306
    %v1308 = vsel %vm1307, %v1300, %v1304
    %v1309 = vand.u32 2147483647, %v1283
    %vm1310 = vcmp.eq.f32.partialorder %v1309, 8.507059e+37
    %v1311 = vand.u32 %v1283, 2147483648
    %v1312 = vor.u32 1.1754944e-38, %v1311
    %v1313 = vsel %vm1310, %v1312, %v1308
    %v1314 = vmul.f32 1.0, %v1313
    %v1315 = vrcp.pop %v1284
    %v1316 = vmul.f32 %v1284, %v1315
    %v1317 = vsub.f32 1.0, %v1316
    %v1318 = vmul.f32 %v1315, %v1317
    %v1319 = vadd.f32 %v1315, %v1318
    %vm1320 = vweird.f32 %v1284
    %vm1321 = vweird.f32 %v1315
    %vm1322 = vmor %vm1320, %vm1321
    %v1323 = vsel %vm1322, %v1315, %v1319
    %v1324 = vand.u32 2147483647, %v1284
    %vm1325 = vcmp.eq.f32.partialorder %v1324, 8.507059e+37
    %v1326 = vand.u32 %v1284, 2147483648
    %v1327 = vor.u32 1.1754944e-38, %v1326
    %v1328 = vsel %vm1325, %v1327, %v1323
    %v1329 = vmul.f32 1.0, %v1328
    %v1330 = vtanh.pop %v1272
    %v1331 = vmul.f32 %v1314, %v1015
    %v1332 = vmul.f32 %v1299, %v1330
    %v1333 = vadd.f32 %v1331, %v1332
    %v1334 = vtanh.pop %v1333
    %v1335 = vmul.f32 %v1329, %v1334
    %v1336 = vpack.c.bf16 %v1335, %v1335
    %1337 = vst [vmem:[#allocation4 + $0xc] sm:$0xf] %v1336
    %s1338 = scalar_lea.vmem %s0, 128
    %v1339 = vld [vmem:[%s1338] sm:$0xff]
    %v1340 = vld [vmem:[%s1338 + $0x8] sm:$0xff]
    %v1341 = vld [vmem:[%s1338 + $0x10] sm:$0xff]
    %v1342 = vld [vmem:[%s1338 + $0x18] sm:$0xff]
    %v1343 = vld [vmem:[#allocation5] sm:$0xff]
    %v1344 = vld [vmem:[#allocation5 + $0x8] sm:$0xff]
    %v1345 = vld [vmem:[#allocation5 + $0x10] sm:$0xff]
    %v1346 = vld [vmem:[#allocation5 + $0x18] sm:$0xff]
    %v1347 = vld [vmem:[#allocation5 + $0x20] sm:$0xff]
    %v1348 = vld [vmem:[#allocation5 + $0x28] sm:$0xff]
    %v1349 = vld [vmem:[#allocation5 + $0x30] sm:$0xff]
    %v1350 = vld [vmem:[#allocation5 + $0x38] sm:$0xff]
    %v1351 = vld [vmem:[#allocation5 + $0x40] sm:$0xff]
    %v1352 = vld [vmem:[#allocation5 + $0x48] sm:$0xff]
    %v1353 = vld [vmem:[#allocation5 + $0x50] sm:$0xff]
    %v1354 = vld [vmem:[#allocation5 + $0x58] sm:$0xff]
    %v1355 = vld [vmem:[#allocation5 + $0x60] sm:$0xff]
    %v1356 = vld [vmem:[#allocation5 + $0x68] sm:$0xff]
    %v1357 = vld [vmem:[#allocation5 + $0x70] sm:$0xff]
    %v1358 = vld [vmem:[#allocation5 + $0x78] sm:$0xff]
    %v1359 = vld [vmem:[#allocation5 + $0x80] sm:$0xff]
    %v1360 = vld [vmem:[#allocation5 + $0x88] sm:$0xff]
    %v1361 = vld [vmem:[#allocation5 + $0x90] sm:$0xff]
    %v1362 = vld [vmem:[#allocation5 + $0x98] sm:$0xff]
    %v1363 = vld [vmem:[#allocation5 + $0xa0] sm:$0xff]
    %v1364 = vld [vmem:[#allocation5 + $0xa8] sm:$0xff]
    %v1365 = vld [vmem:[#allocation5 + $0xb0] sm:$0xff]
    %v1366 = vld [vmem:[#allocation5 + $0xb8] sm:$0xff]
    %v1367 = vld [vmem:[#allocation5 + $0xc0] sm:$0xff]
    %v1368 = vld [vmem:[#allocation5 + $0xc8] sm:$0xff]
    %v1369 = vld [vmem:[#allocation5 + $0xd0] sm:$0xff]
    %v1370 = vld [vmem:[#allocation5 + $0xd8] sm:$0xff]
    %v1371 = vld [vmem:[#allocation5 + $0xe0] sm:$0xff]
    %v1372 = vld [vmem:[#allocation5 + $0xe8] sm:$0xff]
    %v1373 = vld [vmem:[#allocation5 + $0xf0] sm:$0xff]
    %v1374 = vld [vmem:[#allocation5 + $0xf8] sm:$0xff]
    %v1407 = vunpack.c.l.b16 %v1343
    %v1408 = vunpack.c.h.b16 %v1343
    %v1409 = vunpack.c.l.b16 %v1344
    %v1410 = vunpack.c.h.b16 %v1344
    %v1411 = vunpack.c.l.b16 %v1345
    %v1412 = vunpack.c.h.b16 %v1345
    %v1413 = vunpack.c.l.b16 %v1346
    %v1414 = vunpack.c.h.b16 %v1346
    %v1415 = vunpack.c.l.b16 %v1347
    %v1416 = vunpack.c.h.b16 %v1347
    %v1417 = vunpack.c.l.b16 %v1348
    %v1418 = vunpack.c.h.b16 %v1348
    %v1419 = vunpack.c.l.b16 %v1349
    %v1420 = vunpack.c.h.b16 %v1349
    %v1421 = vunpack.c.l.b16 %v1350
    %v1422 = vunpack.c.h.b16 %v1350
    %v1423 = vunpack.c.l.b16 %v1351
    %v1424 = vunpack.c.h.b16 %v1351
    %v1425 = vunpack.c.l.b16 %v1352
    %v1426 = vunpack.c.h.b16 %v1352
    %v1427 = vunpack.c.l.b16 %v1353
    %v1428 = vunpack.c.h.b16 %v1353
    %v1429 = vunpack.c.l.b16 %v1354
    %v1430 = vunpack.c.h.b16 %v1354
    %v1431 = vunpack.c.l.b16 %v1355
    %v1432 = vunpack.c.h.b16 %v1355
    %v1433 = vunpack.c.l.b16 %v1356
    %v1434 = vunpack.c.h.b16 %v1356
    %v1435 = vunpack.c.l.b16 %v1357
    %v1436 = vunpack.c.h.b16 %v1357
    %v1437 = vunpack.c.l.b16 %v1358
    %v1438 = vunpack.c.h.b16 %v1358
    %v1439 = vunpack.c.l.b16 %v1359
    %v1440 = vunpack.c.h.b16 %v1359
    %v1441 = vunpack.c.l.b16 %v1360
    %v1442 = vunpack.c.h.b16 %v1360
    %v1443 = vunpack.c.l.b16 %v1361
    %v1444 = vunpack.c.h.b16 %v1361
    %v1445 = vunpack.c.l.b16 %v1362
    %v1446 = vunpack.c.h.b16 %v1362
    %v1447 = vunpack.c.l.b16 %v1363
    %v1448 = vunpack.c.h.b16 %v1363
    %v1449 = vunpack.c.l.b16 %v1364
    %v1450 = vunpack.c.h.b16 %v1364
    %v1451 = vunpack.c.l.b16 %v1365
    %v1452 = vunpack.c.h.b16 %v1365
    %v1453 = vunpack.c.l.b16 %v1366
    %v1454 = vunpack.c.h.b16 %v1366
    %v1455 = vunpack.c.l.b16 %v1367
    %v1456 = vunpack.c.h.b16 %v1367
    %v1457 = vunpack.c.l.b16 %v1368
    %v1458 = vunpack.c.h.b16 %v1368
    %v1459 = vunpack.c.l.b16 %v1369
    %v1460 = vunpack.c.h.b16 %v1369
    %v1461 = vunpack.c.l.b16 %v1370
    %v1462 = vunpack.c.h.b16 %v1370
    %v1463 = vunpack.c.l.b16 %v1371
    %v1464 = vunpack.c.h.b16 %v1371
    %v1465 = vunpack.c.l.b16 %v1372
    %v1466 = vunpack.c.h.b16 %v1372
    %v1467 = vunpack.c.l.b16 %v1373
    %v1468 = vunpack.c.h.b16 %v1373
    %v1469 = vunpack.c.l.b16 %v1374
    %v1470 = vunpack.c.h.b16 %v1374
    %v1471 = vpack.c.b16 %v1411, %v1407
    %v1472 = vpack.c.b16 %v1412, %v1408
    %v1473 = vpack.c.b16 %v1413, %v1409
    %v1474 = vpack.c.b16 %v1414, %v1410
    %v1475 = vpack.c.b16 %v1419, %v1415
    %v1476 = vpack.c.b16 %v1420, %v1416
    %v1477 = vpack.c.b16 %v1421, %v1417
    %v1478 = vpack.c.b16 %v1422, %v1418
    %v1479 = vpack.c.b16 %v1427, %v1423
    %v1480 = vpack.c.b16 %v1428, %v1424
    %v1481 = vpack.c.b16 %v1429, %v1425
    %v1482 = vpack.c.b16 %v1430, %v1426
    %v1483 = vpack.c.b16 %v1435, %v1431
    %v1484 = vpack.c.b16 %v1436, %v1432
    %v1485 = vpack.c.b16 %v1437, %v1433
    %v1486 = vpack.c.b16 %v1438, %v1434
    %v1487 = vpack.c.b16 %v1443, %v1439
    %v1488 = vpack.c.b16 %v1444, %v1440
    %v1489 = vpack.c.b16 %v1445, %v1441
    %v1490 = vpack.c.b16 %v1446, %v1442
    %v1491 = vpack.c.b16 %v1451, %v1447
    %v1492 = vpack.c.b16 %v1452, %v1448
    %v1493 = vpack.c.b16 %v1453, %v1449
    %v1494 = vpack.c.b16 %v1454, %v1450
    %v1495 = vpack.c.b16 %v1459, %v1455
    %v1496 = vpack.c.b16 %v1460, %v1456
    %v1497 = vpack.c.b16 %v1461, %v1457
    %v1498 = vpack.c.b16 %v1462, %v1458
    %v1499 = vpack.c.b16 %v1467, %v1463
    %v1500 = vpack.c.b16 %v1468, %v1464
    %v1501 = vpack.c.b16 %v1469, %v1465
    %v1502 = vpack.c.b16 %v1470, %v1466
    %1535 = vmatpush.bf16.msra.mxu0 %v1499
    %1536 = vmatpush.bf16.msra.mxu0 %v1495
    %1537 = vmatpush.bf16.msra.mxu0 %v1491
    %1538 = vmatpush.bf16.msra.mxu0 %v1487
    %1539 = vmatpush.bf16.msra.mxu0 %v1483
    %1540 = vmatpush.bf16.msra.mxu0 %v1479
    %1541 = vmatpush.bf16.msra.mxu0 %v1475
    %1542 = vmatpush.bf16.msra.mxu0 %v1471
    %1543 = vmatmul.bf16.gmra.mxu0 %v1336
    %v1544 = vpop.f32.mrf.mxu0
    %v1545 = vadd.f32 0.0, %v1544
    %v1546 = vpop.f32.mrf.mxu0
    %1547 = vdwg.mxu0
    %1548 = vmatpush.bf16.msra.mxu0 %v1500
    %1549 = vmatpush.bf16.msra.mxu0 %v1496
    %1550 = vmatpush.bf16.msra.mxu0 %v1492
    %1551 = vmatpush.bf16.msra.mxu0 %v1488
    %1552 = vmatpush.bf16.msra.mxu0 %v1484
    %1553 = vmatpush.bf16.msra.mxu0 %v1480
    %1554 = vmatpush.bf16.msra.mxu0 %v1476
    %1555 = vmatpush.bf16.msra.mxu0 %v1472
    %1556 = vmatmul.bf16.gmra.mxu0 %v1336
    %v1557 = vpop.f32.mrf.mxu0
    %v1558 = vadd.f32 0.0, %v1557
    %v1559 = vpop.f32.mrf.mxu0
    %1560 = vdwg.mxu0
    %1561 = vmatpush.bf16.msra.mxu0 %v1501
    %1562 = vmatpush.bf16.msra.mxu0 %v1497
    %1563 = vmatpush.bf16.msra.mxu0 %v1493
    %1564 = vmatpush.bf16.msra.mxu0 %v1489
    %1565 = vmatpush.bf16.msra.mxu0 %v1485
    %1566 = vmatpush.bf16.msra.mxu0 %v1481
    %1567 = vmatpush.bf16.msra.mxu0 %v1477
    %1568 = vmatpush.bf16.msra.mxu0 %v1473
    %1569 = vmatmul.bf16.gmra.mxu0 %v1336
    %v1570 = vpop.f32.mrf.mxu0
    %v1571 = vadd.f32 0.0, %v1570
    %v1572 = vpop.f32.mrf.mxu0
    %1573 = vdwg.mxu0
    %1574 = vmatpush.bf16.msra.mxu0 %v1502
    %1575 = vmatpush.bf16.msra.mxu0 %v1498
    %1576 = vmatpush.bf16.msra.mxu0 %v1494
    %1577 = vmatpush.bf16.msra.mxu0 %v1490
    %1578 = vmatpush.bf16.msra.mxu0 %v1486
    %1579 = vmatpush.bf16.msra.mxu0 %v1482
    %1580 = vmatpush.bf16.msra.mxu0 %v1478
    %1581 = vmatpush.bf16.msra.mxu0 %v1474
    %1582 = vmatmul.bf16.gmra.mxu0 %v1336
    %v1583 = vpop.f32.mrf.mxu0
    %v1584 = vadd.f32 0.0, %v1583
    %v1585 = vpop.f32.mrf.mxu0
    %1586 = vdwg.mxu0
    %v1587 = vadd.f32 %v1339, %v1545
    %v1588 = vadd.f32 %v1340, %v1558
    %v1589 = vadd.f32 %v1341, %v1571
    %v1590 = vadd.f32 %v1342, %v1584
    %v1591 = vxor.u32 %v1587, 2147483648
    %v1592 = vxor.u32 %v1588, 2147483648
    %v1593 = vxor.u32 %v1589, 2147483648
    %v1594 = vmul.f32 %v1591, 1.442695
    %v1595 = vpow.pop %v1594
    %v1596 = vmul.f32 %v1592, 1.442695
    %v1597 = vpow.pop %v1596
    %v1598 = vmul.f32 %v1593, 1.442695
    %v1599 = vpow.pop %v1598
    %v1600 = vadd.f32 %v1595, 1.0
    %v1601 = vadd.f32 %v1597, 1.0
    %v1602 = vadd.f32 %v1599, 1.0
    %v1603 = vrcp.pop %v1600
    %v1604 = vmul.f32 %v1600, %v1603
    %v1605 = vsub.f32 1.0, %v1604
    %v1606 = vmul.f32 %v1603, %v1605
    %v1607 = vadd.f32 %v1603, %v1606
    %vm1608 = vweird.f32 %v1600
    %vm1609 = vweird.f32 %v1603
    %vm1610 = vmor %vm1608, %vm1609
    %v1611 = vsel %vm1610, %v1603, %v1607
    %v1612 = vand.u32 2147483647, %v1600
    %vm1613 = vcmp.eq.f32.partialorder %v1612, 8.507059e+37
    %v1614 = vand.u32 %v1600, 2147483648
    %v1615 = vor.u32 1.1754944e-38, %v1614
    %v1616 = vsel %vm1613, %v1615, %v1611
    %v1617 = vmul.f32 1.0, %v1616
    %v1618 = vrcp.pop %v1601
    %v1619 = vmul.f32 %v1601, %v1618
    %v1620 = vsub.f32 1.0, %v1619
    %v1621 = vmul.f32 %v1618, %v1620
    %v1622 = vadd.f32 %v1618, %v1621
    %vm1623 = vweird.f32 %v1601
    %vm1624 = vweird.f32 %v1618
    %vm1625 = vmor %vm1623, %vm1624
    %v1626 = vsel %vm1625, %v1618, %v1622
    %v1627 = vand.u32 2147483647, %v1601
    %vm1628 = vcmp.eq.f32.partialorder %v1627, 8.507059e+37
    %v1629 = vand.u32 %v1601, 2147483648
    %v1630 = vor.u32 1.1754944e-38, %v1629
    %v1631 = vsel %vm1628, %v1630, %v1626
    %v1632 = vmul.f32 1.0, %v1631
    %v1633 = vrcp.pop %v1602
    %v1634 = vmul.f32 %v1602, %v1633
    %v1635 = vsub.f32 1.0, %v1634
    %v1636 = vmul.f32 %v1633, %v1635
    %v1637 = vadd.f32 %v1633, %v1636
    %vm1638 = vweird.f32 %v1602
    %vm1639 = vweird.f32 %v1633
    %vm1640 = vmor %vm1638, %vm1639
    %v1641 = vsel %vm1640, %v1633, %v1637
    %v1642 = vand.u32 2147483647, %v1602
    %vm1643 = vcmp.eq.f32.partialorder %v1642, 8.507059e+37
    %v1644 = vand.u32 %v1602, 2147483648
    %v1645 = vor.u32 1.1754944e-38, %v1644
    %v1646 = vsel %vm1643, %v1645, %v1641
    %v1647 = vmul.f32 1.0, %v1646
    %v1648 = vtanh.pop %v1590
    %v1649 = vmul.f32 %v1632, %v1333
    %v1650 = vmul.f32 %v1617, %v1648
    %v1651 = vadd.f32 %v1649, %v1650
    %v1652 = vtanh.pop %v1651
    %v1653 = vmul.f32 %v1647, %v1652
    %v1654 = vpack.c.bf16 %v1653, %v1653
    %1655 = vst [vmem:[#allocation4 + $0x10] sm:$0xf] %v1654
    %s1656 = scalar_lea.vmem %s0, 160
    %v1657 = vld [vmem:[%s1656] sm:$0xff]
    %v1658 = vld [vmem:[%s1656 + $0x8] sm:$0xff]
    %v1659 = vld [vmem:[%s1656 + $0x10] sm:$0xff]
    %v1660 = vld [vmem:[%s1656 + $0x18] sm:$0xff]
    %v1661 = vld [vmem:[#allocation5] sm:$0xff]
    %v1662 = vld [vmem:[#allocation5 + $0x8] sm:$0xff]
    %v1663 = vld [vmem:[#allocation5 + $0x10] sm:$0xff]
    %v1664 = vld [vmem:[#allocation5 + $0x18] sm:$0xff]
    %v1665 = vld [vmem:[#allocation5 + $0x20] sm:$0xff]
    %v1666 = vld [vmem:[#allocation5 + $0x28] sm:$0xff]
    %v1667 = vld [vmem:[#allocation5 + $0x30] sm:$0xff]
    %v1668 = vld [vmem:[#allocation5 + $0x38] sm:$0xff]
    %v1669 = vld [vmem:[#allocation5 + $0x40] sm:$0xff]
    %v1670 = vld [vmem:[#allocation5 + $0x48] sm:$0xff]
    %v1671 = vld [vmem:[#allocation5 + $0x50] sm:$0xff]
    %v1672 = vld [vmem:[#allocation5 + $0x58] sm:$0xff]
    %v1673 = vld [vmem:[#allocation5 + $0x60] sm:$0xff]
    %v1674 = vld [vmem:[#allocation5 + $0x68] sm:$0xff]
    %v1675 = vld [vmem:[#allocation5 + $0x70] sm:$0xff]
    %v1676 = vld [vmem:[#allocation5 + $0x78] sm:$0xff]
    %v1677 = vld [vmem:[#allocation5 + $0x80] sm:$0xff]
    %v1678 = vld [vmem:[#allocation5 + $0x88] sm:$0xff]
    %v1679 = vld [vmem:[#allocation5 + $0x90] sm:$0xff]
    %v1680 = vld [vmem:[#allocation5 + $0x98] sm:$0xff]
    %v1681 = vld [vmem:[#allocation5 + $0xa0] sm:$0xff]
    %v1682 = vld [vmem:[#allocation5 + $0xa8] sm:$0xff]
    %v1683 = vld [vmem:[#allocation5 + $0xb0] sm:$0xff]
    %v1684 = vld [vmem:[#allocation5 + $0xb8] sm:$0xff]
    %v1685 = vld [vmem:[#allocation5 + $0xc0] sm:$0xff]
    %v1686 = vld [vmem:[#allocation5 + $0xc8] sm:$0xff]
    %v1687 = vld [vmem:[#allocation5 + $0xd0] sm:$0xff]
    %v1688 = vld [vmem:[#allocation5 + $0xd8] sm:$0xff]
    %v1689 = vld [vmem:[#allocation5 + $0xe0] sm:$0xff]
    %v1690 = vld [vmem:[#allocation5 + $0xe8] sm:$0xff]
    %v1691 = vld [vmem:[#allocation5 + $0xf0] sm:$0xff]
    %v1692 = vld [vmem:[#allocation5 + $0xf8] sm:$0xff]
    %v1725 = vunpack.c.l.b16 %v1661
    %v1726 = vunpack.c.h.b16 %v1661
    %v1727 = vunpack.c.l.b16 %v1662
    %v1728 = vunpack.c.h.b16 %v1662
    %v1729 = vunpack.c.l.b16 %v1663
    %v1730 = vunpack.c.h.b16 %v1663
    %v1731 = vunpack.c.l.b16 %v1664
    %v1732 = vunpack.c.h.b16 %v1664
    %v1733 = vunpack.c.l.b16 %v1665
    %v1734 = vunpack.c.h.b16 %v1665
    %v1735 = vunpack.c.l.b16 %v1666
    %v1736 = vunpack.c.h.b16 %v1666
    %v1737 = vunpack.c.l.b16 %v1667
    %v1738 = vunpack.c.h.b16 %v1667
    %v1739 = vunpack.c.l.b16 %v1668
    %v1740 = vunpack.c.h.b16 %v1668
    %v1741 = vunpack.c.l.b16 %v1669
    %v1742 = vunpack.c.h.b16 %v1669
    %v1743 = vunpack.c.l.b16 %v1670
    %v1744 = vunpack.c.h.b16 %v1670
    %v1745 = vunpack.c.l.b16 %v1671
    %v1746 = vunpack.c.h.b16 %v1671
    %v1747 = vunpack.c.l.b16 %v1672
    %v1748 = vunpack.c.h.b16 %v1672
    %v1749 = vunpack.c.l.b16 %v1673
    %v1750 = vunpack.c.h.b16 %v1673
    %v1751 = vunpack.c.l.b16 %v1674
    %v1752 = vunpack.c.h.b16 %v1674
    %v1753 = vunpack.c.l.b16 %v1675
    %v1754 = vunpack.c.h.b16 %v1675
    %v1755 = vunpack.c.l.b16 %v1676
    %v1756 = vunpack.c.h.b16 %v1676
    %v1757 = vunpack.c.l.b16 %v1677
    %v1758 = vunpack.c.h.b16 %v1677
    %v1759 = vunpack.c.l.b16 %v1678
    %v1760 = vunpack.c.h.b16 %v1678
    %v1761 = vunpack.c.l.b16 %v1679
    %v1762 = vunpack.c.h.b16 %v1679
    %v1763 = vunpack.c.l.b16 %v1680
    %v1764 = vunpack.c.h.b16 %v1680
    %v1765 = vunpack.c.l.b16 %v1681
    %v1766 = vunpack.c.h.b16 %v1681
    %v1767 = vunpack.c.l.b16 %v1682
    %v1768 = vunpack.c.h.b16 %v1682
    %v1769 = vunpack.c.l.b16 %v1683
    %v1770 = vunpack.c.h.b16 %v1683
    %v1771 = vunpack.c.l.b16 %v1684
    %v1772 = vunpack.c.h.b16 %v1684
    %v1773 = vunpack.c.l.b16 %v1685
    %v1774 = vunpack.c.h.b16 %v1685
    %v1775 = vunpack.c.l.b16 %v1686
    %v1776 = vunpack.c.h.b16 %v1686
    %v1777 = vunpack.c.l.b16 %v1687
    %v1778 = vunpack.c.h.b16 %v1687
    %v1779 = vunpack.c.l.b16 %v1688
    %v1780 = vunpack.c.h.b16 %v1688
    %v1781 = vunpack.c.l.b16 %v1689
    %v1782 = vunpack.c.h.b16 %v1689
    %v1783 = vunpack.c.l.b16 %v1690
    %v1784 = vunpack.c.h.b16 %v1690
    %v1785 = vunpack.c.l.b16 %v1691
    %v1786 = vunpack.c.h.b16 %v1691
    %v1787 = vunpack.c.l.b16 %v1692
    %v1788 = vunpack.c.h.b16 %v1692
    %v1789 = vpack.c.b16 %v1729, %v1725
    %v1790 = vpack.c.b16 %v1730, %v1726
    %v1791 = vpack.c.b16 %v1731, %v1727
    %v1792 = vpack.c.b16 %v1732, %v1728
    %v1793 = vpack.c.b16 %v1737, %v1733
    %v1794 = vpack.c.b16 %v1738, %v1734
    %v1795 = vpack.c.b16 %v1739, %v1735
    %v1796 = vpack.c.b16 %v1740, %v1736
    %v1797 = vpack.c.b16 %v1745, %v1741
    %v1798 = vpack.c.b16 %v1746, %v1742
    %v1799 = vpack.c.b16 %v1747, %v1743
    %v1800 = vpack.c.b16 %v1748, %v1744
    %v1801 = vpack.c.b16 %v1753, %v1749
    %v1802 = vpack.c.b16 %v1754, %v1750
    %v1803 = vpack.c.b16 %v1755, %v1751
    %v1804 = vpack.c.b16 %v1756, %v1752
    %v1805 = vpack.c.b16 %v1761, %v1757
    %v1806 = vpack.c.b16 %v1762, %v1758
    %v1807 = vpack.c.b16 %v1763, %v1759
    %v1808 = vpack.c.b16 %v1764, %v1760
    %v1809 = vpack.c.b16 %v1769, %v1765
    %v1810 = vpack.c.b16 %v1770, %v1766
    %v1811 = vpack.c.b16 %v1771, %v1767
    %v1812 = vpack.c.b16 %v1772, %v1768
    %v1813 = vpack.c.b16 %v1777, %v1773
    %v1814 = vpack.c.b16 %v1778, %v1774
    %v1815 = vpack.c.b16 %v1779, %v1775
    %v1816 = vpack.c.b16 %v1780, %v1776
    %v1817 = vpack.c.b16 %v1785, %v1781
    %v1818 = vpack.c.b16 %v1786, %v1782
    %v1819 = vpack.c.b16 %v1787, %v1783
    %v1820 = vpack.c.b16 %v1788, %v1784
    %1853 = vmatpush.bf16.msra.mxu0 %v1817
    %1854 = vmatpush.bf16.msra.mxu0 %v1813
    %1855 = vmatpush.bf16.msra.mxu0 %v1809
    %1856 = vmatpush.bf16.msra.mxu0 %v1805
    %1857 = vmatpush.bf16.msra.mxu0 %v1801
    %1858 = vmatpush.bf16.msra.mxu0 %v1797
    %1859 = vmatpush.bf16.msra.mxu0 %v1793
    %1860 = vmatpush.bf16.msra.mxu0 %v1789
    %1861 = vmatmul.bf16.gmra.mxu0 %v1654
    %v1862 = vpop.f32.mrf.mxu0
    %v1863 = vadd.f32 0.0, %v1862
    %v1864 = vpop.f32.mrf.mxu0
    %1865 = vdwg.mxu0
    %1866 = vmatpush.bf16.msra.mxu0 %v1818
    %1867 = vmatpush.bf16.msra.mxu0 %v1814
    %1868 = vmatpush.bf16.msra.mxu0 %v1810
    %1869 = vmatpush.bf16.msra.mxu0 %v1806
    %1870 = vmatpush.bf16.msra.mxu0 %v1802
    %1871 = vmatpush.bf16.msra.mxu0 %v1798
    %1872 = vmatpush.bf16.msra.mxu0 %v1794
    %1873 = vmatpush.bf16.msra.mxu0 %v1790
    %1874 = vmatmul.bf16.gmra.mxu0 %v1654
    %v1875 = vpop.f32.mrf.mxu0
    %v1876 = vadd.f32 0.0, %v1875
    %v1877 = vpop.f32.mrf.mxu0
    %1878 = vdwg.mxu0
    %1879 = vmatpush.bf16.msra.mxu0 %v1819
    %1880 = vmatpush.bf16.msra.mxu0 %v1815
    %1881 = vmatpush.bf16.msra.mxu0 %v1811
    %1882 = vmatpush.bf16.msra.mxu0 %v1807
    %1883 = vmatpush.bf16.msra.mxu0 %v1803
    %1884 = vmatpush.bf16.msra.mxu0 %v1799
    %1885 = vmatpush.bf16.msra.mxu0 %v1795
    %1886 = vmatpush.bf16.msra.mxu0 %v1791
    %1887 = vmatmul.bf16.gmra.mxu0 %v1654
    %v1888 = vpop.f32.mrf.mxu0
    %v1889 = vadd.f32 0.0, %v1888
    %v1890 = vpop.f32.mrf.mxu0
    %1891 = vdwg.mxu0
    %1892 = vmatpush.bf16.msra.mxu0 %v1820
    %1893 = vmatpush.bf16.msra.mxu0 %v1816
    %1894 = vmatpush.bf16.msra.mxu0 %v1812
    %1895 = vmatpush.bf16.msra.mxu0 %v1808
    %1896 = vmatpush.bf16.msra.mxu0 %v1804
    %1897 = vmatpush.bf16.msra.mxu0 %v1800
    %1898 = vmatpush.bf16.msra.mxu0 %v1796
    %1899 = vmatpush.bf16.msra.mxu0 %v1792
    %1900 = vmatmul.bf16.gmra.mxu0 %v1654
    %v1901 = vpop.f32.mrf.mxu0
    %v1902 = vadd.f32 0.0, %v1901
    %v1903 = vpop.f32.mrf.mxu0
    %1904 = vdwg.mxu0
    %v1905 = vadd.f32 %v1657, %v1863
    %v1906 = vadd.f32 %v1658, %v1876
    %v1907 = vadd.f32 %v1659, %v1889
    %v1908 = vadd.f32 %v1660, %v1902
    %v1909 = vxor.u32 %v1905, 2147483648
    %v1910 = vxor.u32 %v1906, 2147483648
    %v1911 = vxor.u32 %v1907, 2147483648
    %v1912 = vmul.f32 %v1909, 1.442695
    %v1913 = vpow.pop %v1912
    %v1914 = vmul.f32 %v1910, 1.442695
    %v1915 = vpow.pop %v1914
    %v1916 = vmul.f32 %v1911, 1.442695
    %v1917 = vpow.pop %v1916
    %v1918 = vadd.f32 %v1913, 1.0
    %v1919 = vadd.f32 %v1915, 1.0
    %v1920 = vadd.f32 %v1917, 1.0
    %v1921 = vrcp.pop %v1918
    %v1922 = vmul.f32 %v1918, %v1921
    %v1923 = vsub.f32 1.0, %v1922
    %v1924 = vmul.f32 %v1921, %v1923
    %v1925 = vadd.f32 %v1921, %v1924
    %vm1926 = vweird.f32 %v1918
    %vm1927 = vweird.f32 %v1921
    %vm1928 = vmor %vm1926, %vm1927
    %v1929 = vsel %vm1928, %v1921, %v1925
    %v1930 = vand.u32 2147483647, %v1918
    %vm1931 = vcmp.eq.f32.partialorder %v1930, 8.507059e+37
    %v1932 = vand.u32 %v1918, 2147483648
    %v1933 = vor.u32 1.1754944e-38, %v1932
    %v1934 = vsel %vm1931, %v1933, %v1929
    %v1935 = vmul.f32 1.0, %v1934
    %v1936 = vrcp.pop %v1919
    %v1937 = vmul.f32 %v1919, %v1936
    %v1938 = vsub.f32 1.0, %v1937
    %v1939 = vmul.f32 %v1936, %v1938
    %v1940 = vadd.f32 %v1936, %v1939
    %vm1941 = vweird.f32 %v1919
    %vm1942 = vweird.f32 %v1936
    %vm1943 = vmor %vm1941, %vm1942
    %v1944 = vsel %vm1943, %v1936, %v1940
    %v1945 = vand.u32 2147483647, %v1919
    %vm1946 = vcmp.eq.f32.partialorder %v1945, 8.507059e+37
    %v1947 = vand.u32 %v1919, 2147483648
    %v1948 = vor.u32 1.1754944e-38, %v1947
    %v1949 = vsel %vm1946, %v1948, %v1944
    %v1950 = vmul.f32 1.0, %v1949
    %v1951 = vrcp.pop %v1920
    %v1952 = vmul.f32 %v1920, %v1951
    %v1953 = vsub.f32 1.0, %v1952
    %v1954 = vmul.f32 %v1951, %v1953
    %v1955 = vadd.f32 %v1951, %v1954
    %vm1956 = vweird.f32 %v1920
    %vm1957 = vweird.f32 %v1951
    %vm1958 = vmor %vm1956, %vm1957
    %v1959 = vsel %vm1958, %v1951, %v1955
    %v1960 = vand.u32 2147483647, %v1920
    %vm1961 = vcmp.eq.f32.partialorder %v1960, 8.507059e+37
    %v1962 = vand.u32 %v1920, 2147483648
    %v1963 = vor.u32 1.1754944e-38, %v1962
    %v1964 = vsel %vm1961, %v1963, %v1959
    %v1965 = vmul.f32 1.0, %v1964
    %v1966 = vtanh.pop %v1908
    %v1967 = vmul.f32 %v1950, %v1651
    %v1968 = vmul.f32 %v1935, %v1966
    %v1969 = vadd.f32 %v1967, %v1968
    %v1970 = vtanh.pop %v1969
    %v1971 = vmul.f32 %v1965, %v1970
    %v1972 = vpack.c.bf16 %v1971, %v1971
    %1973 = vst [vmem:[#allocation4 + $0x14] sm:$0xf] %v1972
    %s1974 = scalar_lea.vmem %s0, 192
    %v1975 = vld [vmem:[%s1974] sm:$0xff]
    %v1976 = vld [vmem:[%s1974 + $0x8] sm:$0xff]
    %v1977 = vld [vmem:[%s1974 + $0x10] sm:$0xff]
    %v1978 = vld [vmem:[%s1974 + $0x18] sm:$0xff]
    %v1979 = vld [vmem:[#allocation5] sm:$0xff]
    %v1980 = vld [vmem:[#allocation5 + $0x8] sm:$0xff]
    %v1981 = vld [vmem:[#allocation5 + $0x10] sm:$0xff]
    %v1982 = vld [vmem:[#allocation5 + $0x18] sm:$0xff]
    %v1983 = vld [vmem:[#allocation5 + $0x20] sm:$0xff]
    %v1984 = vld [vmem:[#allocation5 + $0x28] sm:$0xff]
    %v1985 = vld [vmem:[#allocation5 + $0x30] sm:$0xff]
    %v1986 = vld [vmem:[#allocation5 + $0x38] sm:$0xff]
    %v1987 = vld [vmem:[#allocation5 + $0x40] sm:$0xff]
    %v1988 = vld [vmem:[#allocation5 + $0x48] sm:$0xff]
    %v1989 = vld [vmem:[#allocation5 + $0x50] sm:$0xff]
    %v1990 = vld [vmem:[#allocation5 + $0x58] sm:$0xff]
    %v1991 = vld [vmem:[#allocation5 + $0x60] sm:$0xff]
    %v1992 = vld [vmem:[#allocation5 + $0x68] sm:$0xff]
    %v1993 = vld [vmem:[#allocation5 + $0x70] sm:$0xff]
    %v1994 = vld [vmem:[#allocation5 + $0x78] sm:$0xff]
    %v1995 = vld [vmem:[#allocation5 + $0x80] sm:$0xff]
    %v1996 = vld [vmem:[#allocation5 + $0x88] sm:$0xff]
    %v1997 = vld [vmem:[#allocation5 + $0x90] sm:$0xff]
    %v1998 = vld [vmem:[#allocation5 + $0x98] sm:$0xff]
    %v1999 = vld [vmem:[#allocation5 + $0xa0] sm:$0xff]
    %v2000 = vld [vmem:[#allocation5 + $0xa8] sm:$0xff]
    %v2001 = vld [vmem:[#allocation5 + $0xb0] sm:$0xff]
    %v2002 = vld [vmem:[#allocation5 + $0xb8] sm:$0xff]
    %v2003 = vld [vmem:[#allocation5 + $0xc0] sm:$0xff]
    %v2004 = vld [vmem:[#allocation5 + $0xc8] sm:$0xff]
    %v2005 = vld [vmem:[#allocation5 + $0xd0] sm:$0xff]
    %v2006 = vld [vmem:[#allocation5 + $0xd8] sm:$0xff]
    %v2007 = vld [vmem:[#allocation5 + $0xe0] sm:$0xff]
    %v2008 = vld [vmem:[#allocation5 + $0xe8] sm:$0xff]
    %v2009 = vld [vmem:[#allocation5 + $0xf0] sm:$0xff]
    %v2010 = vld [vmem:[#allocation5 + $0xf8] sm:$0xff]
    %v2043 = vunpack.c.l.b16 %v1979
    %v2044 = vunpack.c.h.b16 %v1979
    %v2045 = vunpack.c.l.b16 %v1980
    %v2046 = vunpack.c.h.b16 %v1980
    %v2047 = vunpack.c.l.b16 %v1981
    %v2048 = vunpack.c.h.b16 %v1981
    %v2049 = vunpack.c.l.b16 %v1982
    %v2050 = vunpack.c.h.b16 %v1982
    %v2051 = vunpack.c.l.b16 %v1983
    %v2052 = vunpack.c.h.b16 %v1983
    %v2053 = vunpack.c.l.b16 %v1984
    %v2054 = vunpack.c.h.b16 %v1984
    %v2055 = vunpack.c.l.b16 %v1985
    %v2056 = vunpack.c.h.b16 %v1985
    %v2057 = vunpack.c.l.b16 %v1986
    %v2058 = vunpack.c.h.b16 %v1986
    %v2059 = vunpack.c.l.b16 %v1987
    %v2060 = vunpack.c.h.b16 %v1987
    %v2061 = vunpack.c.l.b16 %v1988
    %v2062 = vunpack.c.h.b16 %v1988
    %v2063 = vunpack.c.l.b16 %v1989
    %v2064 = vunpack.c.h.b16 %v1989
    %v2065 = vunpack.c.l.b16 %v1990
    %v2066 = vunpack.c.h.b16 %v1990
    %v2067 = vunpack.c.l.b16 %v1991
    %v2068 = vunpack.c.h.b16 %v1991
    %v2069 = vunpack.c.l.b16 %v1992
    %v2070 = vunpack.c.h.b16 %v1992
    %v2071 = vunpack.c.l.b16 %v1993
    %v2072 = vunpack.c.h.b16 %v1993
    %v2073 = vunpack.c.l.b16 %v1994
    %v2074 = vunpack.c.h.b16 %v1994
    %v2075 = vunpack.c.l.b16 %v1995
    %v2076 = vunpack.c.h.b16 %v1995
    %v2077 = vunpack.c.l.b16 %v1996
    %v2078 = vunpack.c.h.b16 %v1996
    %v2079 = vunpack.c.l.b16 %v1997
    %v2080 = vunpack.c.h.b16 %v1997
    %v2081 = vunpack.c.l.b16 %v1998
    %v2082 = vunpack.c.h.b16 %v1998
    %v2083 = vunpack.c.l.b16 %v1999
    %v2084 = vunpack.c.h.b16 %v1999
    %v2085 = vunpack.c.l.b16 %v2000
    %v2086 = vunpack.c.h.b16 %v2000
    %v2087 = vunpack.c.l.b16 %v2001
    %v2088 = vunpack.c.h.b16 %v2001
    %v2089 = vunpack.c.l.b16 %v2002
    %v2090 = vunpack.c.h.b16 %v2002
    %v2091 = vunpack.c.l.b16 %v2003
    %v2092 = vunpack.c.h.b16 %v2003
    %v2093 = vunpack.c.l.b16 %v2004
    %v2094 = vunpack.c.h.b16 %v2004
    %v2095 = vunpack.c.l.b16 %v2005
    %v2096 = vunpack.c.h.b16 %v2005
    %v2097 = vunpack.c.l.b16 %v2006
    %v2098 = vunpack.c.h.b16 %v2006
    %v2099 = vunpack.c.l.b16 %v2007
    %v2100 = vunpack.c.h.b16 %v2007
    %v2101 = vunpack.c.l.b16 %v2008
    %v2102 = vunpack.c.h.b16 %v2008
    %v2103 = vunpack.c.l.b16 %v2009
    %v2104 = vunpack.c.h.b16 %v2009
    %v2105 = vunpack.c.l.b16 %v2010
    %v2106 = vunpack.c.h.b16 %v2010
    %v2107 = vpack.c.b16 %v2047, %v2043
    %v2108 = vpack.c.b16 %v2048, %v2044
    %v2109 = vpack.c.b16 %v2049, %v2045
    %v2110 = vpack.c.b16 %v2050, %v2046
    %v2111 = vpack.c.b16 %v2055, %v2051
    %v2112 = vpack.c.b16 %v2056, %v2052
    %v2113 = vpack.c.b16 %v2057, %v2053
    %v2114 = vpack.c.b16 %v2058, %v2054
    %v2115 = vpack.c.b16 %v2063, %v2059
    %v2116 = vpack.c.b16 %v2064, %v2060
    %v2117 = vpack.c.b16 %v2065, %v2061
    %v2118 = vpack.c.b16 %v2066, %v2062
    %v2119 = vpack.c.b16 %v2071, %v2067
    %v2120 = vpack.c.b16 %v2072, %v2068
    %v2121 = vpack.c.b16 %v2073, %v2069
    %v2122 = vpack.c.b16 %v2074, %v2070
    %v2123 = vpack.c.b16 %v2079, %v2075
    %v2124 = vpack.c.b16 %v2080, %v2076
    %v2125 = vpack.c.b16 %v2081, %v2077
    %v2126 = vpack.c.b16 %v2082, %v2078
    %v2127 = vpack.c.b16 %v2087, %v2083
    %v2128 = vpack.c.b16 %v2088, %v2084
    %v2129 = vpack.c.b16 %v2089, %v2085
    %v2130 = vpack.c.b16 %v2090, %v2086
    %v2131 = vpack.c.b16 %v2095, %v2091
    %v2132 = vpack.c.b16 %v2096, %v2092
    %v2133 = vpack.c.b16 %v2097, %v2093
    %v2134 = vpack.c.b16 %v2098, %v2094
    %v2135 = vpack.c.b16 %v2103, %v2099
    %v2136 = vpack.c.b16 %v2104, %v2100
    %v2137 = vpack.c.b16 %v2105, %v2101
    %v2138 = vpack.c.b16 %v2106, %v2102
    %2171 = vmatpush.bf16.msra.mxu0 %v2135
    %2172 = vmatpush.bf16.msra.mxu0 %v2131
    %2173 = vmatpush.bf16.msra.mxu0 %v2127
    %2174 = vmatpush.bf16.msra.mxu0 %v2123
    %2175 = vmatpush.bf16.msra.mxu0 %v2119
    %2176 = vmatpush.bf16.msra.mxu0 %v2115
    %2177 = vmatpush.bf16.msra.mxu0 %v2111
    %2178 = vmatpush.bf16.msra.mxu0 %v2107
    %2179 = vmatmul.bf16.gmra.mxu0 %v1972
    %v2180 = vpop.f32.mrf.mxu0
    %v2181 = vadd.f32 0.0, %v2180
    %v2182 = vpop.f32.mrf.mxu0
    %2183 = vdwg.mxu0
    %2184 = vmatpush.bf16.msra.mxu0 %v2136
    %2185 = vmatpush.bf16.msra.mxu0 %v2132
    %2186 = vmatpush.bf16.msra.mxu0 %v2128
    %2187 = vmatpush.bf16.msra.mxu0 %v2124
    %2188 = vmatpush.bf16.msra.mxu0 %v2120
    %2189 = vmatpush.bf16.msra.mxu0 %v2116
    %2190 = vmatpush.bf16.msra.mxu0 %v2112
    %2191 = vmatpush.bf16.msra.mxu0 %v2108
    %2192 = vmatmul.bf16.gmra.mxu0 %v1972
    %v2193 = vpop.f32.mrf.mxu0
    %v2194 = vadd.f32 0.0, %v2193
    %v2195 = vpop.f32.mrf.mxu0
    %2196 = vdwg.mxu0
    %2197 = vmatpush.bf16.msra.mxu0 %v2137
    %2198 = vmatpush.bf16.msra.mxu0 %v2133
    %2199 = vmatpush.bf16.msra.mxu0 %v2129
    %2200 = vmatpush.bf16.msra.mxu0 %v2125
    %2201 = vmatpush.bf16.msra.mxu0 %v2121
    %2202 = vmatpush.bf16.msra.mxu0 %v2117
    %2203 = vmatpush.bf16.msra.mxu0 %v2113
    %2204 = vmatpush.bf16.msra.mxu0 %v2109
    %2205 = vmatmul.bf16.gmra.mxu0 %v1972
    %v2206 = vpop.f32.mrf.mxu0
    %v2207 = vadd.f32 0.0, %v2206
    %v2208 = vpop.f32.mrf.mxu0
    %2209 = vdwg.mxu0
    %2210 = vmatpush.bf16.msra.mxu0 %v2138
    %2211 = vmatpush.bf16.msra.mxu0 %v2134
    %2212 = vmatpush.bf16.msra.mxu0 %v2130
    %2213 = vmatpush.bf16.msra.mxu0 %v2126
    %2214 = vmatpush.bf16.msra.mxu0 %v2122
    %2215 = vmatpush.bf16.msra.mxu0 %v2118
    %2216 = vmatpush.bf16.msra.mxu0 %v2114
    %2217 = vmatpush.bf16.msra.mxu0 %v2110
    %2218 = vmatmul.bf16.gmra.mxu0 %v1972
    %v2219 = vpop.f32.mrf.mxu0
    %v2220 = vadd.f32 0.0, %v2219
    %v2221 = vpop.f32.mrf.mxu0
    %2222 = vdwg.mxu0
    %v2223 = vadd.f32 %v1975, %v2181
    %v2224 = vadd.f32 %v1976, %v2194
    %v2225 = vadd.f32 %v1977, %v2207
    %v2226 = vadd.f32 %v1978, %v2220
    %v2227 = vxor.u32 %v2223, 2147483648
    %v2228 = vxor.u32 %v2224, 2147483648
    %v2229 = vxor.u32 %v2225, 2147483648
    %v2230 = vmul.f32 %v2227, 1.442695
    %v2231 = vpow.pop %v2230
    %v2232 = vmul.f32 %v2228, 1.442695
    %v2233 = vpow.pop %v2232
    %v2234 = vmul.f32 %v2229, 1.442695
    %v2235 = vpow.pop %v2234
    %v2236 = vadd.f32 %v2231, 1.0
    %v2237 = vadd.f32 %v2233, 1.0
    %v2238 = vadd.f32 %v2235, 1.0
    %v2239 = vrcp.pop %v2236
    %v2240 = vmul.f32 %v2236, %v2239
    %v2241 = vsub.f32 1.0, %v2240
    %v2242 = vmul.f32 %v2239, %v2241
    %v2243 = vadd.f32 %v2239, %v2242
    %vm2244 = vweird.f32 %v2236
    %vm2245 = vweird.f32 %v2239
    %vm2246 = vmor %vm2244, %vm2245
    %v2247 = vsel %vm2246, %v2239, %v2243
    %v2248 = vand.u32 2147483647, %v2236
    %vm2249 = vcmp.eq.f32.partialorder %v2248, 8.507059e+37
    %v2250 = vand.u32 %v2236, 2147483648
    %v2251 = vor.u32 1.1754944e-38, %v2250
    %v2252 = vsel %vm2249, %v2251, %v2247
    %v2253 = vmul.f32 1.0, %v2252
    %v2254 = vrcp.pop %v2237
    %v2255 = vmul.f32 %v2237, %v2254
    %v2256 = vsub.f32 1.0, %v2255
    %v2257 = vmul.f32 %v2254, %v2256
    %v2258 = vadd.f32 %v2254, %v2257
    %vm2259 = vweird.f32 %v2237
    %vm2260 = vweird.f32 %v2254
    %vm2261 = vmor %vm2259, %vm2260
    %v2262 = vsel %vm2261, %v2254, %v2258
    %v2263 = vand.u32 2147483647, %v2237
    %vm2264 = vcmp.eq.f32.partialorder %v2263, 8.507059e+37
    %v2265 = vand.u32 %v2237, 2147483648
    %v2266 = vor.u32 1.1754944e-38, %v2265
    %v2267 = vsel %vm2264, %v2266, %v2262
    %v2268 = vmul.f32 1.0, %v2267
    %v2269 = vrcp.pop %v2238
    %v2270 = vmul.f32 %v2238, %v2269
    %v2271 = vsub.f32 1.0, %v2270
    %v2272 = vmul.f32 %v2269, %v2271
    %v2273 = vadd.f32 %v2269, %v2272
    %vm2274 = vweird.f32 %v2238
    %vm2275 = vweird.f32 %v2269
    %vm2276 = vmor %vm2274, %vm2275
    %v2277 = vsel %vm2276, %v2269, %v2273
    %v2278 = vand.u32 2147483647, %v2238
    %vm2279 = vcmp.eq.f32.partialorder %v2278, 8.507059e+37
    %v2280 = vand.u32 %v2238, 2147483648
    %v2281 = vor.u32 1.1754944e-38, %v2280
    %v2282 = vsel %vm2279, %v2281, %v2277
    %v2283 = vmul.f32 1.0, %v2282
    %v2284 = vtanh.pop %v2226
    %v2285 = vmul.f32 %v2268, %v1969
    %v2286 = vmul.f32 %v2253, %v2284
    %v2287 = vadd.f32 %v2285, %v2286
    %v2288 = vtanh.pop %v2287
    %v2289 = vmul.f32 %v2283, %v2288
    %v2290 = vpack.c.bf16 %v2289, %v2289
    %2291 = vst [vmem:[#allocation4 + $0x18] sm:$0xf] %v2290
    %s2292 = scalar_lea.vmem %s0, 224
    %v2293 = vld [vmem:[%s2292] sm:$0xff]
    %v2294 = vld [vmem:[%s2292 + $0x8] sm:$0xff]
    %v2295 = vld [vmem:[%s2292 + $0x10] sm:$0xff]
    %v2296 = vld [vmem:[%s2292 + $0x18] sm:$0xff]
    %v2297 = vld [vmem:[#allocation5] sm:$0xff]
    %v2298 = vld [vmem:[#allocation5 + $0x8] sm:$0xff]
    %v2299 = vld [vmem:[#allocation5 + $0x10] sm:$0xff]
    %v2300 = vld [vmem:[#allocation5 + $0x18] sm:$0xff]
    %v2301 = vld [vmem:[#allocation5 + $0x20] sm:$0xff]
    %v2302 = vld [vmem:[#allocation5 + $0x28] sm:$0xff]
    %v2303 = vld [vmem:[#allocation5 + $0x30] sm:$0xff]
    %v2304 = vld [vmem:[#allocation5 + $0x38] sm:$0xff]
    %v2305 = vld [vmem:[#allocation5 + $0x40] sm:$0xff]
    %v2306 = vld [vmem:[#allocation5 + $0x48] sm:$0xff]
    %v2307 = vld [vmem:[#allocation5 + $0x50] sm:$0xff]
    %v2308 = vld [vmem:[#allocation5 + $0x58] sm:$0xff]
    %v2309 = vld [vmem:[#allocation5 + $0x60] sm:$0xff]
    %v2310 = vld [vmem:[#allocation5 + $0x68] sm:$0xff]
    %v2311 = vld [vmem:[#allocation5 + $0x70] sm:$0xff]
    %v2312 = vld [vmem:[#allocation5 + $0x78] sm:$0xff]
    %v2313 = vld [vmem:[#allocation5 + $0x80] sm:$0xff]
    %v2314 = vld [vmem:[#allocation5 + $0x88] sm:$0xff]
    %v2315 = vld [vmem:[#allocation5 + $0x90] sm:$0xff]
    %v2316 = vld [vmem:[#allocation5 + $0x98] sm:$0xff]
    %v2317 = vld [vmem:[#allocation5 + $0xa0] sm:$0xff]
    %v2318 = vld [vmem:[#allocation5 + $0xa8] sm:$0xff]
    %v2319 = vld [vmem:[#allocation5 + $0xb0] sm:$0xff]
    %v2320 = vld [vmem:[#allocation5 + $0xb8] sm:$0xff]
    %v2321 = vld [vmem:[#allocation5 + $0xc0] sm:$0xff]
    %v2322 = vld [vmem:[#allocation5 + $0xc8] sm:$0xff]
    %v2323 = vld [vmem:[#allocation5 + $0xd0] sm:$0xff]
    %v2324 = vld [vmem:[#allocation5 + $0xd8] sm:$0xff]
    %v2325 = vld [vmem:[#allocation5 + $0xe0] sm:$0xff]
    %v2326 = vld [vmem:[#allocation5 + $0xe8] sm:$0xff]
    %v2327 = vld [vmem:[#allocation5 + $0xf0] sm:$0xff]
    %v2328 = vld [vmem:[#allocation5 + $0xf8] sm:$0xff]
    %v2361 = vunpack.c.l.b16 %v2297
    %v2362 = vunpack.c.h.b16 %v2297
    %v2363 = vunpack.c.l.b16 %v2298
    %v2364 = vunpack.c.h.b16 %v2298
    %v2365 = vunpack.c.l.b16 %v2299
    %v2366 = vunpack.c.h.b16 %v2299
    %v2367 = vunpack.c.l.b16 %v2300
    %v2368 = vunpack.c.h.b16 %v2300
    %v2369 = vunpack.c.l.b16 %v2301
    %v2370 = vunpack.c.h.b16 %v2301
    %v2371 = vunpack.c.l.b16 %v2302
    %v2372 = vunpack.c.h.b16 %v2302
    %v2373 = vunpack.c.l.b16 %v2303
    %v2374 = vunpack.c.h.b16 %v2303
    %v2375 = vunpack.c.l.b16 %v2304
    %v2376 = vunpack.c.h.b16 %v2304
    %v2377 = vunpack.c.l.b16 %v2305
    %v2378 = vunpack.c.h.b16 %v2305
    %v2379 = vunpack.c.l.b16 %v2306
    %v2380 = vunpack.c.h.b16 %v2306
    %v2381 = vunpack.c.l.b16 %v2307
    %v2382 = vunpack.c.h.b16 %v2307
    %v2383 = vunpack.c.l.b16 %v2308
    %v2384 = vunpack.c.h.b16 %v2308
    %v2385 = vunpack.c.l.b16 %v2309
    %v2386 = vunpack.c.h.b16 %v2309
    %v2387 = vunpack.c.l.b16 %v2310
    %v2388 = vunpack.c.h.b16 %v2310
    %v2389 = vunpack.c.l.b16 %v2311
    %v2390 = vunpack.c.h.b16 %v2311
    %v2391 = vunpack.c.l.b16 %v2312
    %v2392 = vunpack.c.h.b16 %v2312
    %v2393 = vunpack.c.l.b16 %v2313
    %v2394 = vunpack.c.h.b16 %v2313
    %v2395 = vunpack.c.l.b16 %v2314
    %v2396 = vunpack.c.h.b16 %v2314
    %v2397 = vunpack.c.l.b16 %v2315
    %v2398 = vunpack.c.h.b16 %v2315
    %v2399 = vunpack.c.l.b16 %v2316
    %v2400 = vunpack.c.h.b16 %v2316
    %v2401 = vunpack.c.l.b16 %v2317
    %v2402 = vunpack.c.h.b16 %v2317
    %v2403 = vunpack.c.l.b16 %v2318
    %v2404 = vunpack.c.h.b16 %v2318
    %v2405 = vunpack.c.l.b16 %v2319
    %v2406 = vunpack.c.h.b16 %v2319
    %v2407 = vunpack.c.l.b16 %v2320
    %v2408 = vunpack.c.h.b16 %v2320
    %v2409 = vunpack.c.l.b16 %v2321
    %v2410 = vunpack.c.h.b16 %v2321
    %v2411 = vunpack.c.l.b16 %v2322
    %v2412 = vunpack.c.h.b16 %v2322
    %v2413 = vunpack.c.l.b16 %v2323
    %v2414 = vunpack.c.h.b16 %v2323
    %v2415 = vunpack.c.l.b16 %v2324
    %v2416 = vunpack.c.h.b16 %v2324
    %v2417 = vunpack.c.l.b16 %v2325
    %v2418 = vunpack.c.h.b16 %v2325
    %v2419 = vunpack.c.l.b16 %v2326
    %v2420 = vunpack.c.h.b16 %v2326
    %v2421 = vunpack.c.l.b16 %v2327
    %v2422 = vunpack.c.h.b16 %v2327
    %v2423 = vunpack.c.l.b16 %v2328
    %v2424 = vunpack.c.h.b16 %v2328
    %v2425 = vpack.c.b16 %v2365, %v2361
    %v2426 = vpack.c.b16 %v2366, %v2362
    %v2427 = vpack.c.b16 %v2367, %v2363
    %v2428 = vpack.c.b16 %v2368, %v2364
    %v2429 = vpack.c.b16 %v2373, %v2369
    %v2430 = vpack.c.b16 %v2374, %v2370
    %v2431 = vpack.c.b16 %v2375, %v2371
    %v2432 = vpack.c.b16 %v2376, %v2372
    %v2433 = vpack.c.b16 %v2381, %v2377
    %v2434 = vpack.c.b16 %v2382, %v2378
    %v2435 = vpack.c.b16 %v2383, %v2379
    %v2436 = vpack.c.b16 %v2384, %v2380
    %v2437 = vpack.c.b16 %v2389, %v2385
    %v2438 = vpack.c.b16 %v2390, %v2386
    %v2439 = vpack.c.b16 %v2391, %v2387
    %v2440 = vpack.c.b16 %v2392, %v2388
    %v2441 = vpack.c.b16 %v2397, %v2393
    %v2442 = vpack.c.b16 %v2398, %v2394
    %v2443 = vpack.c.b16 %v2399, %v2395
    %v2444 = vpack.c.b16 %v2400, %v2396
    %v2445 = vpack.c.b16 %v2405, %v2401
    %v2446 = vpack.c.b16 %v2406, %v2402
    %v2447 = vpack.c.b16 %v2407, %v2403
    %v2448 = vpack.c.b16 %v2408, %v2404
    %v2449 = vpack.c.b16 %v2413, %v2409
    %v2450 = vpack.c.b16 %v2414, %v2410
    %v2451 = vpack.c.b16 %v2415, %v2411
    %v2452 = vpack.c.b16 %v2416, %v2412
    %v2453 = vpack.c.b16 %v2421, %v2417
    %v2454 = vpack.c.b16 %v2422, %v2418
    %v2455 = vpack.c.b16 %v2423, %v2419
    %v2456 = vpack.c.b16 %v2424, %v2420
    %2489 = vmatpush.bf16.msra.mxu0 %v2453
    %2490 = vmatpush.bf16.msra.mxu0 %v2449
    %2491 = vmatpush.bf16.msra.mxu0 %v2445
    %2492 = vmatpush.bf16.msra.mxu0 %v2441
    %2493 = vmatpush.bf16.msra.mxu0 %v2437
    %2494 = vmatpush.bf16.msra.mxu0 %v2433
    %2495 = vmatpush.bf16.msra.mxu0 %v2429
    %2496 = vmatpush.bf16.msra.mxu0 %v2425
    %2497 = vmatmul.bf16.gmra.mxu0 %v2290
    %v2498 = vpop.f32.mrf.mxu0
    %v2499 = vadd.f32 0.0, %v2498
    %v2500 = vpop.f32.mrf.mxu0
    %2501 = vdwg.mxu0
    %2502 = vmatpush.bf16.msra.mxu0 %v2454
    %2503 = vmatpush.bf16.msra.mxu0 %v2450
    %2504 = vmatpush.bf16.msra.mxu0 %v2446
    %2505 = vmatpush.bf16.msra.mxu0 %v2442
    %2506 = vmatpush.bf16.msra.mxu0 %v2438
    %2507 = vmatpush.bf16.msra.mxu0 %v2434
    %2508 = vmatpush.bf16.msra.mxu0 %v2430
    %2509 = vmatpush.bf16.msra.mxu0 %v2426
    %2510 = vmatmul.bf16.gmra.mxu0 %v2290
    %v2511 = vpop.f32.mrf.mxu0
    %v2512 = vadd.f32 0.0, %v2511
    %v2513 = vpop.f32.mrf.mxu0
    %2514 = vdwg.mxu0
    %2515 = vmatpush.bf16.msra.mxu0 %v2455
    %2516 = vmatpush.bf16.msra.mxu0 %v2451
    %2517 = vmatpush.bf16.msra.mxu0 %v2447
    %2518 = vmatpush.bf16.msra.mxu0 %v2443
    %2519 = vmatpush.bf16.msra.mxu0 %v2439
    %2520 = vmatpush.bf16.msra.mxu0 %v2435
    %2521 = vmatpush.bf16.msra.mxu0 %v2431
    %2522 = vmatpush.bf16.msra.mxu0 %v2427
    %2523 = vmatmul.bf16.gmra.mxu0 %v2290
    %v2524 = vpop.f32.mrf.mxu0
    %v2525 = vadd.f32 0.0, %v2524
    %v2526 = vpop.f32.mrf.mxu0
    %2527 = vdwg.mxu0
    %2528 = vmatpush.bf16.msra.mxu0 %v2456
    %2529 = vmatpush.bf16.msra.mxu0 %v2452
    %2530 = vmatpush.bf16.msra.mxu0 %v2448
    %2531 = vmatpush.bf16.msra.mxu0 %v2444
    %2532 = vmatpush.bf16.msra.mxu0 %v2440
    %2533 = vmatpush.bf16.msra.mxu0 %v2436
    %2534 = vmatpush.bf16.msra.mxu0 %v2432
    %2535 = vmatpush.bf16.msra.mxu0 %v2428
    %2536 = vmatmul.bf16.gmra.mxu0 %v2290
    %v2537 = vpop.f32.mrf.mxu0
    %v2538 = vadd.f32 0.0, %v2537
    %v2539 = vpop.f32.mrf.mxu0
    %2540 = vdwg.mxu0
    %v2541 = vadd.f32 %v2293, %v2499
    %v2542 = vadd.f32 %v2294, %v2512
    %v2543 = vadd.f32 %v2295, %v2525
    %v2544 = vadd.f32 %v2296, %v2538
    %v2545 = vxor.u32 %v2541, 2147483648
    %v2546 = vxor.u32 %v2542, 2147483648
    %v2547 = vxor.u32 %v2543, 2147483648
    %v2548 = vmul.f32 %v2545, 1.442695
    %v2549 = vpow.pop %v2548
    %v2550 = vmul.f32 %v2546, 1.442695
    %v2551 = vpow.pop %v2550
    %v2552 = vmul.f32 %v2547, 1.442695
    %v2553 = vpow.pop %v2552
    %v2554 = vadd.f32 %v2549, 1.0
    %v2555 = vadd.f32 %v2551, 1.0
    %v2556 = vadd.f32 %v2553, 1.0
    %v2557 = vrcp.pop %v2554
    %v2558 = vmul.f32 %v2554, %v2557
    %v2559 = vsub.f32 1.0, %v2558
    %v2560 = vmul.f32 %v2557, %v2559
    %v2561 = vadd.f32 %v2557, %v2560
    %vm2562 = vweird.f32 %v2554
    %vm2563 = vweird.f32 %v2557
    %vm2564 = vmor %vm2562, %vm2563
    %v2565 = vsel %vm2564, %v2557, %v2561
    %v2566 = vand.u32 2147483647, %v2554
    %vm2567 = vcmp.eq.f32.partialorder %v2566, 8.507059e+37
    %v2568 = vand.u32 %v2554, 2147483648
    %v2569 = vor.u32 1.1754944e-38, %v2568
    %v2570 = vsel %vm2567, %v2569, %v2565
    %v2571 = vmul.f32 1.0, %v2570
    %v2572 = vrcp.pop %v2555
    %v2573 = vmul.f32 %v2555, %v2572
    %v2574 = vsub.f32 1.0, %v2573
    %v2575 = vmul.f32 %v2572, %v2574
    %v2576 = vadd.f32 %v2572, %v2575
    %vm2577 = vweird.f32 %v2555
    %vm2578 = vweird.f32 %v2572
    %vm2579 = vmor %vm2577, %vm2578
    %v2580 = vsel %vm2579, %v2572, %v2576
    %v2581 = vand.u32 2147483647, %v2555
    %vm2582 = vcmp.eq.f32.partialorder %v2581, 8.507059e+37
    %v2583 = vand.u32 %v2555, 2147483648
    %v2584 = vor.u32 1.1754944e-38, %v2583
    %v2585 = vsel %vm2582, %v2584, %v2580
    %v2586 = vmul.f32 1.0, %v2585
    %v2587 = vrcp.pop %v2556
    %v2588 = vmul.f32 %v2556, %v2587
    %v2589 = vsub.f32 1.0, %v2588
    %v2590 = vmul.f32 %v2587, %v2589
    %v2591 = vadd.f32 %v2587, %v2590
    %vm2592 = vweird.f32 %v2556
    %vm2593 = vweird.f32 %v2587
    %vm2594 = vmor %vm2592, %vm2593
    %v2595 = vsel %vm2594, %v2587, %v2591
    %v2596 = vand.u32 2147483647, %v2556
    %vm2597 = vcmp.eq.f32.partialorder %v2596, 8.507059e+37
    %v2598 = vand.u32 %v2556, 2147483648
    %v2599 = vor.u32 1.1754944e-38, %v2598
    %v2600 = vsel %vm2597, %v2599, %v2595
    %v2601 = vmul.f32 1.0, %v2600
    %v2602 = vtanh.pop %v2544
    %v2603 = vmul.f32 %v2586, %v2287
    %v2604 = vmul.f32 %v2571, %v2602
    %v2605 = vadd.f32 %v2603, %v2604
    %v2606 = vtanh.pop %v2605
    %v2607 = vmul.f32 %v2601, %v2606
    %v2608 = vpack.c.bf16 %v2607, %v2607
    %2609 = vst [vmem:[#allocation4 + $0x1c] sm:$0xf] %v2608
    %2610 = vst [vmem:[#allocation2] sm:$0xff] %v2607
    %2611 = vst [vmem:[#allocation3] sm:$0xff] %v2605
    %2612 = vst [vmem:[%s7] sm:$0xff] %v2607
    %2613 = vst [vmem:[%s8] sm:$0xff] %v2605
    %v2614 = vld [vmem:[#allocation4] sm:$0xf]
    %v2615 = vld [vmem:[#allocation4 + $0x4] sm:$0xf]
    %v2616 = vld [vmem:[#allocation4 + $0x8] sm:$0xf]
    %v2617 = vld [vmem:[#allocation4 + $0xc] sm:$0xf]
    %v2618 = vld [vmem:[#allocation4 + $0x10] sm:$0xf]
    %v2619 = vld [vmem:[#allocation4 + $0x14] sm:$0xf]
    %v2620 = vld [vmem:[#allocation4 + $0x18] sm:$0xf]
    %v2621 = vld [vmem:[#allocation4 + $0x1c] sm:$0xf]
    %v2622 = vld [vmem:[%s2] sm:$0xf]
    %v2623 = vld [vmem:[%s2 + $0x4] sm:$0xf]
    %v2624 = vld [vmem:[%s2 + $0x8] sm:$0xf]
    %v2625 = vld [vmem:[%s2 + $0xc] sm:$0xf]
    %v2626 = vld [vmem:[%s2 + $0x10] sm:$0xf]
    %v2627 = vld [vmem:[%s2 + $0x14] sm:$0xf]
    %v2628 = vld [vmem:[%s2 + $0x18] sm:$0xf]
    %v2629 = vld [vmem:[%s2 + $0x1c] sm:$0xf]
    %v2630 = vld [vmem:[%s2 + $0x20] sm:$0xf]
    %v2631 = vld [vmem:[%s2 + $0x24] sm:$0xf]
    %v2632 = vld [vmem:[%s2 + $0x28] sm:$0xf]
    %v2633 = vld [vmem:[%s2 + $0x2c] sm:$0xf]
    %v2634 = vld [vmem:[%s2 + $0x30] sm:$0xf]
    %v2635 = vld [vmem:[%s2 + $0x34] sm:$0xf]
    %v2636 = vld [vmem:[%s2 + $0x38] sm:$0xf]
    %v2637 = vld [vmem:[%s2 + $0x3c] sm:$0xf]
    %v2638 = vld [vmem:[%s3] sm:$0x1]
    %v2640 = vperm.slane %v2638, 0
    %v2650 = vunpack.c.l.b16 %v2614
    %v2651 = vunpack.c.l.b16 %v2615
    %v2652 = vunpack.c.l.b16 %v2616
    %v2653 = vunpack.c.l.b16 %v2617
    %v2654 = vunpack.c.l.b16 %v2618
    %v2655 = vunpack.c.l.b16 %v2619
    %v2656 = vunpack.c.l.b16 %v2620
    %v2657 = vunpack.c.l.b16 %v2621
    %v2658 = vpack.c.b16 %v2651, %v2650
    %v2659 = vpack.c.b16 %v2653, %v2652
    %v2660 = vpack.c.b16 %v2655, %v2654
    %v2661 = vpack.c.b16 %v2657, %v2656
    %v2682 = vunpack.c.l.b16 %v2622
    %v2683 = vunpack.c.l.b16 %v2623
    %v2684 = vunpack.c.l.b16 %v2624
    %v2685 = vunpack.c.l.b16 %v2625
    %v2686 = vunpack.c.l.b16 %v2626
    %v2687 = vunpack.c.l.b16 %v2627
    %v2688 = vunpack.c.l.b16 %v2628
    %v2689 = vunpack.c.l.b16 %v2629
    %v2690 = vunpack.c.l.b16 %v2630
    %v2691 = vunpack.c.l.b16 %v2631
    %v2692 = vunpack.c.l.b16 %v2632
    %v2693 = vunpack.c.l.b16 %v2633
    %v2694 = vunpack.c.l.b16 %v2634
    %v2695 = vunpack.c.l.b16 %v2635
    %v2696 = vunpack.c.l.b16 %v2636
    %v2697 = vunpack.c.l.b16 %v2637
    %v2698 = vpack.c.b16 %v2683, %v2682
    %v2699 = vpack.c.b16 %v2685, %v2684
    %v2700 = vpack.c.b16 %v2687, %v2686
    %v2701 = vpack.c.b16 %v2689, %v2688
    %v2702 = vpack.c.b16 %v2691, %v2690
    %v2703 = vpack.c.b16 %v2693, %v2692
    %v2704 = vpack.c.b16 %v2695, %v2694
    %v2705 = vpack.c.b16 %v2697, %v2696
    %2714 = vmatpush.bf16.msra.mxu0 %v2705
    %2715 = vmatpush.bf16.msra.mxu0 %v2704
    %2716 = vmatpush.bf16.msra.mxu0 %v2703
    %2717 = vmatpush.bf16.msra.mxu0 %v2702
    %2718 = vmatpush.bf16.msra.mxu0 %v2701
    %2719 = vmatpush.bf16.msra.mxu0 %v2700
    %2720 = vmatpush.bf16.msra.mxu0 %v2699
    %2721 = vmatpush.bf16.msra.mxu0 %v2698
    %2722 = vmatmul.bf16.gmra.mxu0 %v2658
    %v2723 = vpop.f32.mrf.mxu0
    %v2724 = vadd.f32 %v2640, %v2723
    %v2725 = vpop.f32.mrf.mxu0
    %v2726 = vadd.f32 %v2640, %v2725
    %2727 = vmatmul.bf16.gmra.mxu0 %v2659
    %v2728 = vpop.f32.mrf.mxu0
    %v2729 = vadd.f32 %v2640, %v2728
    %v2730 = vpop.f32.mrf.mxu0
    %v2731 = vadd.f32 %v2640, %v2730
    %2732 = vmatmul.bf16.gmra.mxu0 %v2660
    %v2733 = vpop.f32.mrf.mxu0
    %v2734 = vadd.f32 %v2640, %v2733
    %v2735 = vpop.f32.mrf.mxu0
    %v2736 = vadd.f32 %v2640, %v2735
    %2737 = vmatmul.bf16.gmra.mxu0 %v2661
    %v2738 = vpop.f32.mrf.mxu0
    %v2739 = vadd.f32 %v2640, %v2738
    %v2740 = vpop.f32.mrf.mxu0
    %v2741 = vadd.f32 %v2640, %v2740
    %2742 = vdwg.mxu0
    %v2743 = vmax.f32 %v2724, 0.0
    %v2744 = vmax.f32 %v2726, 0.0
    %v2745 = vmax.f32 %v2729, 0.0
    %v2746 = vmax.f32 %v2731, 0.0
    %v2747 = vmax.f32 %v2734, 0.0
    %v2748 = vmax.f32 %v2736, 0.0
    %v2749 = vmax.f32 %v2739, 0.0
    %v2750 = vmax.f32 %v2741, 0.0
    %v2751 = vpack.c.bf16 %v2744, %v2743
    %v2752 = vpack.c.bf16 %v2746, %v2745
    %v2753 = vpack.c.bf16 %v2748, %v2747
    %v2754 = vpack.c.bf16 %v2750, %v2749
    %v2755 = vld [vmem:[#allocation7] sm:$0xf]
    %v2756 = vld [vmem:[#allocation7 + $0x4] sm:$0xf]
    %v2757 = vld [vmem:[#allocation7 + $0x8] sm:$0xf]
    %v2758 = vld [vmem:[#allocation7 + $0xc] sm:$0xf]
    %v2759 = vld [vmem:[#allocation7 + $0x10] sm:$0xf]
    %v2760 = vld [vmem:[#allocation7 + $0x14] sm:$0xf]
    %v2761 = vld [vmem:[#allocation7 + $0x18] sm:$0xf]
    %v2762 = vld [vmem:[#allocation7 + $0x1c] sm:$0xf]
    %v2763 = vld [vmem:[#allocation7 + $0x20] sm:$0xf]
    %v2764 = vld [vmem:[#allocation7 + $0x24] sm:$0xf]
    %v2765 = vld [vmem:[#allocation7 + $0x28] sm:$0xf]
    %v2766 = vld [vmem:[#allocation7 + $0x2c] sm:$0xf]
    %v2767 = vld [vmem:[#allocation7 + $0x30] sm:$0xf]
    %v2768 = vld [vmem:[#allocation7 + $0x34] sm:$0xf]
    %v2769 = vld [vmem:[#allocation7 + $0x38] sm:$0xf]
    %v2770 = vld [vmem:[#allocation7 + $0x3c] sm:$0xf]
    %v2771 = vld [vmem:[%s5] sm:$0x1]
    %v2773 = vperm.slane %v2771, 0
    %v2791 = vunpack.c.l.b16 %v2755
    %v2792 = vunpack.c.l.b16 %v2756
    %v2793 = vunpack.c.l.b16 %v2757
    %v2794 = vunpack.c.l.b16 %v2758
    %v2795 = vunpack.c.l.b16 %v2759
    %v2796 = vunpack.c.l.b16 %v2760
    %v2797 = vunpack.c.l.b16 %v2761
    %v2798 = vunpack.c.l.b16 %v2762
    %v2799 = vunpack.c.l.b16 %v2763
    %v2800 = vunpack.c.l.b16 %v2764
    %v2801 = vunpack.c.l.b16 %v2765
    %v2802 = vunpack.c.l.b16 %v2766
    %v2803 = vunpack.c.l.b16 %v2767
    %v2804 = vunpack.c.l.b16 %v2768
    %v2805 = vunpack.c.l.b16 %v2769
    %v2806 = vunpack.c.l.b16 %v2770
    %v2807 = vpack.c.b16 %v2792, %v2791
    %v2808 = vpack.c.b16 %v2794, %v2793
    %v2809 = vpack.c.b16 %v2796, %v2795
    %v2810 = vpack.c.b16 %v2798, %v2797
    %v2811 = vpack.c.b16 %v2800, %v2799
    %v2812 = vpack.c.b16 %v2802, %v2801
    %v2813 = vpack.c.b16 %v2804, %v2803
    %v2814 = vpack.c.b16 %v2806, %v2805
    %2823 = vmatpush.bf16.msra.mxu0 %v2814
    %2824 = vmatpush.bf16.msra.mxu0 %v2813
    %2825 = vmatpush.bf16.msra.mxu0 %v2812
    %2826 = vmatpush.bf16.msra.mxu0 %v2811
    %2827 = vmatpush.bf16.msra.mxu0 %v2810
    %2828 = vmatpush.bf16.msra.mxu0 %v2809
    %2829 = vmatpush.bf16.msra.mxu0 %v2808
    %2830 = vmatpush.bf16.msra.mxu0 %v2807
    %2831 = vmatmul.bf16.gmra.mxu0 %v2751
    %v2832 = vpop.f32.mrf.mxu0
    %v2833 = vadd.f32 %v2773, %v2832
    %v2834 = vpop.f32.mrf.mxu0
    %v2835 = vadd.f32 %v2773, %v2834
    %2836 = vmatmul.bf16.gmra.mxu0 %v2752
    %v2837 = vpop.f32.mrf.mxu0
    %v2838 = vadd.f32 %v2773, %v2837
    %v2839 = vpop.f32.mrf.mxu0
    %v2840 = vadd.f32 %v2773, %v2839
    %2841 = vmatmul.bf16.gmra.mxu0 %v2753
    %v2842 = vpop.f32.mrf.mxu0
    %v2843 = vadd.f32 %v2773, %v2842
    %v2844 = vpop.f32.mrf.mxu0
    %v2845 = vadd.f32 %v2773, %v2844
    %2846 = vmatmul.bf16.gmra.mxu0 %v2754
    %v2847 = vpop.f32.mrf.mxu0
    %v2848 = vadd.f32 %v2773, %v2847
    %v2849 = vpop.f32.mrf.mxu0
    %v2850 = vadd.f32 %v2773, %v2849
    %2851 = vdwg.mxu0
    %2852 = vmax.xlane.f32.xlu0 %v2833
    %v2853 = vpop.xlane.xlu0 %2852
    %2854 = vmax.xlane.f32.xlu0 %v2835
    %v2855 = vpop.xlane.xlu0 %2854
    %2856 = vmax.xlane.f32.xlu0 %v2838
    %v2857 = vpop.xlane.xlu0 %2856
    %2858 = vmax.xlane.f32.xlu0 %v2840
    %v2859 = vpop.xlane.xlu0 %2858
    %2860 = vmax.xlane.f32.xlu0 %v2843
    %v2861 = vpop.xlane.xlu0 %2860
    %2862 = vmax.xlane.f32.xlu0 %v2845
    %v2863 = vpop.xlane.xlu0 %2862
    %2864 = vmax.xlane.f32.xlu0 %v2848
    %v2865 = vpop.xlane.xlu0 %2864
    %2866 = vmax.xlane.f32.xlu0 %v2850
    %v2867 = vpop.xlane.xlu0 %2866
    %v2868 = vsub.f32 %v2833, %v2853
    %v2869 = vsub.f32 %v2835, %v2855
    %v2870 = vsub.f32 %v2838, %v2857
    %v2871 = vsub.f32 %v2840, %v2859
    %v2872 = vsub.f32 %v2843, %v2861
    %v2873 = vsub.f32 %v2845, %v2863
    %v2874 = vsub.f32 %v2848, %v2865
    %v2875 = vsub.f32 %v2850, %v2867
    %v2876 = vmul.f32 %v2868, 1.442695
    %v2877 = vpow.pop %v2876
    %v2878 = vmul.f32 %v2869, 1.442695
    %v2879 = vpow.pop %v2878
    %v2880 = vmul.f32 %v2870, 1.442695
    %v2881 = vpow.pop %v2880
    %v2882 = vmul.f32 %v2871, 1.442695
    %v2883 = vpow.pop %v2882
    %v2884 = vmul.f32 %v2872, 1.442695
    %v2885 = vpow.pop %v2884
    %v2886 = vmul.f32 %v2873, 1.442695
    %v2887 = vpow.pop %v2886
    %v2888 = vmul.f32 %v2874, 1.442695
    %v2889 = vpow.pop %v2888
    %v2890 = vmul.f32 %v2875, 1.442695
    %v2891 = vpow.pop %v2890
    %2892 = vadd.xlane.f32.xlu0 %v2877
    %v2893 = vpop.xlane.xlu0 %2892
    %2894 = vadd.xlane.f32.xlu0 %v2879
    %v2895 = vpop.xlane.xlu0 %2894
    %2896 = vadd.xlane.f32.xlu0 %v2881
    %v2897 = vpop.xlane.xlu0 %2896
    %2898 = vadd.xlane.f32.xlu0 %v2883
    %v2899 = vpop.xlane.xlu0 %2898
    %2900 = vadd.xlane.f32.xlu0 %v2885
    %v2901 = vpop.xlane.xlu0 %2900
    %2902 = vadd.xlane.f32.xlu0 %v2887
    %v2903 = vpop.xlane.xlu0 %2902
    %2904 = vadd.xlane.f32.xlu0 %v2889
    %v2905 = vpop.xlane.xlu0 %2904
    %2906 = vadd.xlane.f32.xlu0 %v2891
    %v2907 = vpop.xlane.xlu0 %2906
    %v2908 = vlog2.pop %v2893
    %v2909 = vmul.f32 %v2908, 0.6931472
    %v2910 = vlog2.pop %v2895
    %v2911 = vmul.f32 %v2910, 0.6931472
    %v2912 = vlog2.pop %v2897
    %v2913 = vmul.f32 %v2912, 0.6931472
    %v2914 = vlog2.pop %v2899
    %v2915 = vmul.f32 %v2914, 0.6931472
    %v2916 = vlog2.pop %v2901
    %v2917 = vmul.f32 %v2916, 0.6931472
    %v2918 = vlog2.pop %v2903
    %v2919 = vmul.f32 %v2918, 0.6931472
    %v2920 = vlog2.pop %v2905
    %v2921 = vmul.f32 %v2920, 0.6931472
    %v2922 = vlog2.pop %v2907
    %v2923 = vmul.f32 %v2922, 0.6931472
    %v2924 = vsub.f32 %v2868, %v2909
    %v2925 = vsub.f32 %v2869, %v2911
    %v2926 = vsub.f32 %v2870, %v2913
    %v2927 = vsub.f32 %v2871, %v2915
    %v2928 = vsub.f32 %v2872, %v2917
    %v2929 = vsub.f32 %v2873, %v2919
    %v2930 = vsub.f32 %v2874, %v2921
    %v2931 = vsub.f32 %v2875, %v2923
    %2932 = vst [vmem:[%s6] sm:$0xff] %v2924
    %2933 = vst [vmem:[%s6 + $0x8] sm:$0xff] %v2925
    %2934 = vst [vmem:[%s6 + $0x10] sm:$0xff] %v2926
    %2935 = vst [vmem:[%s6 + $0x18] sm:$0xff] %v2927
    %2936 = vst [vmem:[%s6 + $0x20] sm:$0xff] %v2928
    %2937 = vst [vmem:[%s6 + $0x28] sm:$0xff] %v2929
    %2938 = vst [vmem:[%s6 + $0x30] sm:$0xff] %v2930
    %2939 = vst [vmem:[%s6 + $0x38] sm:$0xff] %v2931
    // Predicated region
    $region38: #{_lambda_.3} parent=1 // pred_check
      _
    $region39: #{_lambda_.3} parent=1 // pred_check_branch
      %2941 = sbr.rel (0) target = $region41
    $region40: #{_lambda_.3} parent=1 // pred_region
      _
    $region41: #{_lambda_.3} parent=1 // pred_fallthru
      _
    // Predicated region
    $region42: #{_lambda_.3} parent=1 // pred_check
      _
    $region43: #{_lambda_.3} parent=1 // pred_check_branch
      %2943 = sbr.rel (0) target = $region45
    $region44: #{_lambda_.3} parent=1 // pred_region
      _
    $region45: #{_lambda_.3} parent=1 // pred_fallthru
      _
    // Predicated region
    $region46: #{_lambda_.3} parent=1 // pred_check
      _
    $region47: #{_lambda_.3} parent=1 // pred_check_branch
      %2945 = sbr.rel (0) target = $region49
    $region48: #{_lambda_.3} parent=1 // pred_region
      _
    $region49: #{_lambda_.3} parent=1 // pred_fallthru
      _
    // Predicated region
    $region50: #{_lambda_.3} parent=1 // pred_check
      _
    $region51: #{_lambda_.3} parent=1 // pred_check_branch
      %2947 = sbr.rel (0) target = $region53
    $region52: #{_lambda_.3} parent=1 // pred_region
      _
    $region53: #{_lambda_.3} parent=1 // pred_fallthru
      _
    // Predicated region
    $region54: #{_lambda_.3} parent=1 // pred_check
      _
    $region55: #{_lambda_.3} parent=1 // pred_check_branch
      %2949 = sbr.rel (0) target = $region57
    $region56: #{_lambda_.3} parent=1 // pred_region
      _
    $region57: #{_lambda_.3} parent=1 // pred_fallthru
      _
    // Predicated region
    $region58: #{_lambda_.3} parent=1 // pred_check
      _
    $region59: #{_lambda_.3} parent=1 // pred_check_branch
      %2951 = sbr.rel (0) target = $region61
    $region60: #{_lambda_.3} parent=1 // pred_region
      _
    $region61: #{_lambda_.3} parent=1 // pred_fallthru
      _
    %2952 = vsyncpa [#allocation6], 1
    %2953 = vsyncpa [#allocation8], 1

</llo_original>
